<compile_context>
chip_gen: v7x
topology: tpu7x:2x2x1
jax: 0.10.0
libtpu: 0.0.40
codegen_flags: <defaults>
</compile_context>

<pallas_src>
import math
import functools

import jax
import jax.numpy as jnp
from jax import lax
from jax.experimental import pallas as pl
from jax.experimental.pallas import tpu as pltpu


LN_EPS = 1e-5


def _layer_norm(x, gamma, beta, eps=LN_EPS):
    mu = jnp.mean(x, axis=-1, keepdims=True)
    var = jnp.mean(jnp.square(x - mu), axis=-1, keepdims=True)
    return (x - mu) * lax.rsqrt(var + eps) * gamma + beta


def _block_offset(stride, causal):
    # PyTorch: causal_shift = stride//2 if causal else 0; slice starts at
    # causal_shift + stride//2 and advances by `stride`.
    return ((stride // 2) if causal else 0) + stride // 2


def _out_len(t, strides, causal):
    for s in strides:
        t = -(-(t - _block_offset(s, causal)) // s)    # ceil((t - off) / s)
    return t


def _round_up(x, m):
    return -(-x // m) * m


def _pick_batch_block(batch, requested):
    """Largest divisor of `batch` <= requested, preferring >=2 grid steps (v7x)."""
    divs = [d for d in range(1, batch + 1) if batch % d == 0 and d <= requested]
    multi = [d for d in divs if batch // d >= 2]
    return max(multi) if multi else max(divs)


# ---------------------------------------------------------------------------
# Fused kernel: whole StridedTransformerEncoder forward for Bb batch elements.
# ---------------------------------------------------------------------------
def _fused_encoder_kernel(x_ref, pe_ref, *rest, num_heads, strides, causal, t0, bb):
    *param_refs, o_ref, scr_ref = rest
    it = iter(param_refs)

    def nxt():
        return next(it)[...]

    H = num_heads
    pe_full = pe_ref[...]                                      # (T0, D) f32

    # ---- expandingLayer: Conv1d(Cin, D, 1) == pointwise matmul (+ bias) ----
    w_exp = nxt()
    b_exp = nxt()
    cdt = w_exp.dtype                                          # matmul operand dtype
    cin = x_ref.shape[-1]
    x2d = x_ref[...].reshape(bb * t0, cin)
    h = jnp.dot(x2d.astype(cdt), w_exp,
                preferred_element_type=jnp.float32) + b_exp    # (Bb*T0, D) f32
    D = h.shape[-1]
    dh = D // H
    T = t0
    h = h.reshape(bb, T, D)

    for s in strides:                                          # static unroll
        wqkv = nxt(); bqkv = nxt(); wo = nxt(); bo = nxt()
        g1 = nxt(); b1 = nxt(); w1 = nxt(); w2 = nxt()
        g2 = nxt(); b2 = nxt()

        # positional encoding re-applied before every block (StridedEncoder)
        src = h + pe_full[:T]                                  # (Bb, T, D)

        # ---- MHA: single fused QKV matmul, per-head scores, single out-proj ----
        src2d = src.reshape(bb * T, D)
        qkv = jnp.dot(src2d.astype(cdt), wqkv,
                      preferred_element_type=jnp.float32) + bqkv   # (Bb*T, 3D)
        ctx_heads = []
        for hh in range(H):
            lo = hh * dh
            q = qkv[:, lo:lo + dh].reshape(bb, T, dh)          # Q pre-scaled
            k = qkv[:, D + lo:D + lo + dh].reshape(bb, T, dh)
            v = qkv[:, 2 * D + lo:2 * D + lo + dh].reshape(bb, T, dh)
            sc = jnp.einsum("bqd,bkd->bqk", q.astype(cdt), k.astype(cdt),
                            preferred_element_type=jnp.float32)    # (Bb,T,T)
            sc = sc - jnp.max(sc, axis=-1, keepdims=True)
            p = jnp.exp(sc)
            p = p * pl.reciprocal(jnp.sum(p, axis=-1, keepdims=True), approx=True)
            ctx_heads.append(
                jnp.einsum("bqk,bkd->bqd", p.astype(cdt), v.astype(cdt),
                           preferred_element_type=jnp.float32))    # (Bb,T,dh)
        ctx = jnp.concatenate(ctx_heads, axis=-1)              # concat heads -> (Bb,T,D)
        attn = jnp.dot(ctx.reshape(bb * T, D).astype(cdt), wo,
                       preferred_element_type=jnp.float32) + bo    # (Bb*T, D)

        xres = src + attn.reshape(bb, T, D)                    # pre-LN residual

        # ---- strided row selection (src + attn)[:, off::s, :] via strided load ----
        off = _block_offset(s, causal)
        L = -(-(T - off) // s)                                 # ceil((T - off) / s)
        scr_ref[:, :T, :] = xres
        sel = scr_ref[:, pl.ds(off, L, stride=s), :]           # (Bb, L, D)
        # LN is per-row, so LN1(selected rows) == selected rows of LN1(src+attn)
        sel2 = _layer_norm(sel, g1, b1)                        # == src2[:, off::s, :]

        # conv1(k=1) -> relu -> conv2(k=1, stride=s) == dense FFN on selected rows
        ff = jnp.maximum(jnp.dot(sel2.reshape(bb * L, D).astype(cdt), w1,
                                 preferred_element_type=jnp.float32), 0.0)
        ff = jnp.dot(ff.astype(cdt), w2, preferred_element_type=jnp.float32)
        h = _layer_norm(sel2 + ff.reshape(bb, L, D), g2, b2)   # (Bb, L, D)
        T = L

    # ---- stridedShrinkLayer: Conv1d(D, Cout, 1); Cout zero-padded to 128 lanes
    #      so the store path is lane-dense / unmasked (sliced back outside). ----
    w_shr = nxt()
    b_shr = nxt()
    out = jnp.dot(h.reshape(bb * T, D).astype(cdt), w_shr,
                  preferred_element_type=jnp.float32) + b_shr
    o_ref[...] = out.reshape(bb, T, w_shr.shape[-1]).astype(o_ref.dtype)


# ---------------------------------------------------------------------------
# One-time (outside-jit) weight re-layout: the kernel never transposes.
# ---------------------------------------------------------------------------
def prepare_params(params, num_heads, max_seq_len, compute_dtype=jnp.float32):
    """Returns the flat list of arrays the kernel consumes, pre-transposed,
    with the 1/sqrt(dh) scale folded into Q and the output channels padded to
    a multiple of 128 lanes.  Run ONCE, outside the jitted forward."""
    H = num_heads
    D = params["w_exp"].shape[0]
    dh = D // H
    scale = 1.0 / math.sqrt(dh)
    cdt = compute_dtype

    flat = [params["pe"][:max_seq_len].astype(jnp.float32),    # (T0, D)
            params["w_exp"].T.astype(cdt),                     # (Cin, D)
            params["b_exp"].astype(jnp.float32)]               # (1, D)

    # scale vector: 1/sqrt(dh) on the D query columns, 1 on key/value columns
    qs = jnp.concatenate([jnp.full((D,), scale, jnp.float32),
                          jnp.ones((2 * D,), jnp.float32)])[None, :]   # (1, 3D)

    for p in params["blocks"]:
        flat += [
            (p["wqkv"].T * qs).astype(cdt),                    # (D, 3D) fused QKV
            (p["bqkv"] * qs).astype(jnp.float32),              # (1, 3D)
            p["wo"].T.astype(cdt),                             # (D, D)
            p["bo"].astype(jnp.float32),                       # (1, D)
            p["g1"].astype(jnp.float32), p["b1"].astype(jnp.float32),
            p["w1"].T.astype(cdt),                             # (D, Dc)
            p["w2"].T.astype(cdt),                             # (Dc, D)
            p["g2"].astype(jnp.float32), p["b2"].astype(jnp.float32),
        ]

    cout = params["w_shr"].shape[0]
    cpad = _round_up(cout, 128)
    w_shr_t = jnp.zeros((D, cpad), cdt).at[:, :cout].set(params["w_shr"].T.astype(cdt))
    b_shr_p = jnp.zeros((1, cpad), jnp.float32).at[:, :cout].set(
        params["b_shr"].astype(jnp.float32))
    flat += [w_shr_t, b_shr_p]
    return flat


# ---------------------------------------------------------------------------
# Wrapper: single pallas_call over a batch-blocked parallel grid.
# ---------------------------------------------------------------------------
def strided_transformer_encoder(x, prepared, *, strides, num_heads, out_features,
                                causal=False, batch_block=8):
    """x: (B, T, inFeatures) -> (B, T_out, outFeatures)."""
    B, T0, Cin = x.shape
    pe = prepared[0]
    weights = list(prepared[1:])
    D = weights[0].shape[-1]
    cpad = weights[-1].shape[-1]
    assert pe.shape[0] >= T0
    pe = pe[:T0]

    bb = _pick_batch_block(B, batch_block)
    assert B % bb == 0
    L_final = _out_len(T0, strides, causal)

    in_specs = [pl.BlockSpec((bb, T0, Cin), lambda i: (i, 0, 0)),
                pl.BlockSpec((T0, D), lambda i: (0, 0))]
    for w in weights:
        in_specs.append(pl.BlockSpec(w.shape, lambda i, _z=(0,) * w.ndim: _z))

    kern = functools.partial(_fused_encoder_kernel, num_heads=num_heads,
                             strides=tuple(strides), causal=causal, t0=T0, bb=bb)

    out_padded = pl.pallas_call(
        kern,
        out_shape=jax.ShapeDtypeStruct((B, L_final, cpad), x.dtype),
        grid=(B // bb,),
        in_specs=in_specs,
        out_specs=pl.BlockSpec((bb, L_final, cpad), lambda i: (i, 0, 0)),
        scratch_shapes=[pltpu.VMEM((bb, T0, D), jnp.float32)],
        compiler_params=pltpu.CompilerParams(
            dimension_semantics=("parallel",),        # megacore sharding on v7x
            vmem_limit_bytes=32 * 1024 * 1024),
    )(x, pe, *weights)

    return out_padded[..., :out_features]


# ---------------------------------------------------------------------------
# Parameter setup (PyTorch-layout weights) + PE table + pure-JAX reference.
# ---------------------------------------------------------------------------
def make_positional_encoding(d_model, max_len=5000):
    pos = jnp.arange(max_len, dtype=jnp.float32)[:, None]
    div = jnp.exp(jnp.arange(0, d_model, 2, dtype=jnp.float32)
                  * (-math.log(10000.0) / d_model))
    pe = jnp.zeros((max_len, d_model), dtype=jnp.float32)
    pe = pe.at[:, 0::2].set(jnp.sin(pos * div))
    pe = pe.at[:, 1::2].set(jnp.cos(pos * div))
    return pe


def init_params(key, in_features, out_features, d_model, d_channel, strides):
    def nrm(k, shape, s=0.05):
        return s * jax.random.normal(k, shape, dtype=jnp.float32)

    n_blocks = len(strides)
    keys = jax.random.split(key, 4 + 6 * n_blocks)
    params = {
        "w_exp": nrm(keys[0], (d_model, in_features)),
        "b_exp": nrm(keys[1], (1, d_model)),
        "w_shr": nrm(keys[2], (out_features, d_model)),
        "b_shr": nrm(keys[3], (1, out_features)),
        "pe": make_positional_encoding(d_model),
        "blocks": [],
    }
    for i in range(n_blocks):
        kk = keys[4 + 6 * i: 4 + 6 * (i + 1)]
        params["blocks"].append({
            "wqkv": nrm(kk[0], (3 * d_model, d_model)),   # MHA in_proj_weight
            "bqkv": nrm(kk[1], (1, 3 * d_model)),         # MHA in_proj_bias
            "wo": nrm(kk[2], (d_model, d_model)),         # MHA out_proj.weight
            "bo": nrm(kk[3], (1, d_model)),               # MHA out_proj.bias
            "g1": jnp.ones((1, d_model), jnp.float32),
            "b1": jnp.zeros((1, d_model), jnp.float32),
            "w1": nrm(kk[4], (d_channel, d_model)),       # conv1 (k=1, bias=False)
            "w2": nrm(kk[5], (d_model, d_channel)),       # conv2 (k=1, bias=False)
            "g2": jnp.ones((1, d_model), jnp.float32),
            "b2": jnp.zeros((1, d_model), jnp.float32),
        })
    return params


def reference_forward(x, params, strides, num_heads, causal=False):
    """Plain-JAX mirror of the PyTorch module (for correctness checking)."""
    D = params["w_exp"].shape[0]
    H = num_heads
    dh = D // H
    pe = params["pe"]
    h = jnp.einsum("btc,dc->btd", x, params["w_exp"]) + params["b_exp"]
    for i, s in enumerate(strides):
        p = params["blocks"][i]
        T = h.shape[1]
        src = h + pe[None, :T, :]
        qkv = jnp.einsum("btd,ed->bte", src, p["wqkv"]) + p["bqkv"]
        q, k, v = qkv[..., :D], qkv[..., D:2 * D], qkv[..., 2 * D:]
        heads = []
        for hh in range(H):
            lo = hh * dh
            sc = jnp.einsum("bqd,bkd->bqk", q[..., lo:lo + dh],
                            k[..., lo:lo + dh]) / math.sqrt(dh)
            pr = jax.nn.softmax(sc, axis=-1)
            heads.append(jnp.einsum("bqk,bkd->bqd", pr, v[..., lo:lo + dh]))
        ctx = jnp.concatenate(heads, axis=-1)
        attn = jnp.einsum("btd,ed->bte", ctx, p["wo"]) + p["bo"]
        src2 = _layer_norm(src + attn, p["g1"], p["b1"])
        off = _block_offset(s, causal)
        sel = src2[:, off::s, :]
        ff = jnp.maximum(jnp.einsum("bld,cd->blc", sel, p["w1"]), 0.0)
        ff = jnp.einsum("blc,dc->bld", ff, p["w2"])
        h = _layer_norm(sel + ff, p["g2"], p["b2"])
    return jnp.einsum("bld,od->blo", h, params["w_shr"]) + params["b_shr"]


if __name__ == "__main__":
    B, T = 4, 16
    in_features, out_features = 16, 12
    d_model, num_heads, d_channel = 32, 4, 64
    strides = (2, 2)
    causal = False

    key = jax.random.PRNGKey(0)
    k_par, k_x = jax.random.split(key)
    params = init_params(k_par, in_features, out_features, d_model, d_channel, strides)
    x = jax.random.normal(k_x, (B, T, in_features), dtype=jnp.float32)

    # One-time weight re-layout, hoisted out of the jitted per-call path.
    # Use compute_dtype=jnp.bfloat16 on v6e/v7x for bf16-native MXU operands.
    prepared = prepare_params(params, num_heads, max_seq_len=T,
                              compute_dtype=jnp.float32)

    fwd = jax.jit(functools.partial(strided_transformer_encoder,
                                    strides=strides, num_heads=num_heads,
                                    out_features=out_features, causal=causal,
                                    batch_block=8))
    out = jax.block_until_ready(fwd(x, prepared))

    # T=16 -> stride 2 (offset 1) -> 8 -> stride 2 (offset 1) -> 4 positions
    assert out.shape == (B, 4, out_features), out.shape
    assert bool(jnp.all(jnp.isfinite(out)))

    ref = reference_forward(x, params, strides, num_heads, causal)
    assert ref.shape == out.shape
    assert bool(jnp.allclose(out, ref, rtol=1e-2, atol=1e-2)), (
        float(jnp.max(jnp.abs(out - ref))))

    print("KERNEL_OK")
</pallas_src>

<mosaic_0001>
module attributes {stable_mosaic.version = 11 : i64} {
  func.func @_fused_encoder_kernel(%arg0: i32, %arg1: memref<2x16x16xf32, #tpu.memory_space<vmem>>, %arg2: memref<16x32xf32, #tpu.memory_space<vmem>>, %arg3: memref<16x32xf32, #tpu.memory_space<vmem>>, %arg4: memref<1x32xf32, #tpu.memory_space<vmem>>, %arg5: memref<32x96xf32, #tpu.memory_space<vmem>>, %arg6: memref<1x96xf32, #tpu.memory_space<vmem>>, %arg7: memref<32x32xf32, #tpu.memory_space<vmem>>, %arg8: memref<1x32xf32, #tpu.memory_space<vmem>>, %arg9: memref<1x32xf32, #tpu.memory_space<vmem>>, %arg10: memref<1x32xf32, #tpu.memory_space<vmem>>, %arg11: memref<32x64xf32, #tpu.memory_space<vmem>>, %arg12: memref<64x32xf32, #tpu.memory_space<vmem>>, %arg13: memref<1x32xf32, #tpu.memory_space<vmem>>, %arg14: memref<1x32xf32, #tpu.memory_space<vmem>>, %arg15: memref<32x96xf32, #tpu.memory_space<vmem>>, %arg16: memref<1x96xf32, #tpu.memory_space<vmem>>, %arg17: memref<32x32xf32, #tpu.memory_space<vmem>>, %arg18: memref<1x32xf32, #tpu.memory_space<vmem>>, %arg19: memref<1x32xf32, #tpu.memory_space<vmem>>, %arg20: memref<1x32xf32, #tpu.memory_space<vmem>>, %arg21: memref<32x64xf32, #tpu.memory_space<vmem>>, %arg22: memref<64x32xf32, #tpu.memory_space<vmem>>, %arg23: memref<1x32xf32, #tpu.memory_space<vmem>>, %arg24: memref<1x32xf32, #tpu.memory_space<vmem>>, %arg25: memref<32x128xf32, #tpu.memory_space<vmem>>, %arg26: memref<1x128xf32, #tpu.memory_space<vmem>>, %arg27: memref<2x4x128xf32, #tpu.memory_space<vmem>>, %arg28: memref<2x16x32xf32, #tpu.memory_space<vmem>>) attributes {dimension_semantics = [#tpu.dimension_semantics<parallel>], iteration_bounds = array<i64: 2>, scalar_prefetch = 0 : i64, scratch_operands = 1 : i64, tpu.core_type = #tpu.core_type<tc>, window_params = [{transform_indices = @transform_0, window_bounds = array<i64: 2, 16, 16>}, {pipeline_mode = #tpu.pipeline_mode<synchronous>, transform_indices = @transform_1, window_bounds = array<i64: 16, 32>}, {pipeline_mode = #tpu.pipeline_mode<synchronous>, transform_indices = @transform_2, window_bounds = array<i64: 16, 32>}, {pipeline_mode = #tpu.pipeline_mode<synchronous>, transform_indices = @transform_3, window_bounds = array<i64: 1, 32>}, {pipeline_mode = #tpu.pipeline_mode<synchronous>, transform_indices = @transform_4, window_bounds = array<i64: 32, 96>}, {pipeline_mode = #tpu.pipeline_mode<synchronous>, transform_indices = @transform_5, window_bounds = array<i64: 1, 96>}, {pipeline_mode = #tpu.pipeline_mode<synchronous>, transform_indices = @transform_6, window_bounds = array<i64: 32, 32>}, {pipeline_mode = #tpu.pipeline_mode<synchronous>, transform_indices = @transform_7, window_bounds = array<i64: 1, 32>}, {pipeline_mode = #tpu.pipeline_mode<synchronous>, transform_indices = @transform_8, window_bounds = array<i64: 1, 32>}, {pipeline_mode = #tpu.pipeline_mode<synchronous>, transform_indices = @transform_9, window_bounds = array<i64: 1, 32>}, {pipeline_mode = #tpu.pipeline_mode<synchronous>, transform_indices = @transform_10, window_bounds = array<i64: 32, 64>}, {pipeline_mode = #tpu.pipeline_mode<synchronous>, transform_indices = @transform_11, window_bounds = array<i64: 64, 32>}, {pipeline_mode = #tpu.pipeline_mode<synchronous>, transform_indices = @transform_12, window_bounds = array<i64: 1, 32>}, {pipeline_mode = #tpu.pipeline_mode<synchronous>, transform_indices = @transform_13, window_bounds = array<i64: 1, 32>}, {pipeline_mode = #tpu.pipeline_mode<synchronous>, transform_indices = @transform_14, window_bounds = array<i64: 32, 96>}, {pipeline_mode = #tpu.pipeline_mode<synchronous>, transform_indices = @transform_15, window_bounds = array<i64: 1, 96>}, {pipeline_mode = #tpu.pipeline_mode<synchronous>, transform_indices = @transform_16, window_bounds = array<i64: 32, 32>}, {pipeline_mode = #tpu.pipeline_mode<synchronous>, transform_indices = @transform_17, window_bounds = array<i64: 1, 32>}, {pipeline_mode = #tpu.pipeline_mode<synchronous>, transform_indices = @transform_18, window_bounds = array<i64: 1, 32>}, {pipeline_mode = #tpu.pipeline_mode<synchronous>, transform_indices = @transform_19, window_bounds = array<i64: 1, 32>}, {pipeline_mode = #tpu.pipeline_mode<synchronous>, transform_indices = @transform_20, window_bounds = array<i64: 32, 64>}, {pipeline_mode = #tpu.pipeline_mode<synchronous>, transform_indices = @transform_21, window_bounds = array<i64: 64, 32>}, {pipeline_mode = #tpu.pipeline_mode<synchronous>, transform_indices = @transform_22, window_bounds = array<i64: 1, 32>}, {pipeline_mode = #tpu.pipeline_mode<synchronous>, transform_indices = @transform_23, window_bounds = array<i64: 1, 32>}, {pipeline_mode = #tpu.pipeline_mode<synchronous>, transform_indices = @transform_24, window_bounds = array<i64: 32, 128>}, {pipeline_mode = #tpu.pipeline_mode<synchronous>, transform_indices = @transform_25, window_bounds = array<i64: 1, 128>}, {transform_indices = @transform_26, window_bounds = array<i64: 2, 4, 128>}]} {
    %c0 = arith.constant 0 : index
    %c0_0 = arith.constant 0 : index
    %0 = vector.load %arg2[%c0, %c0_0] : memref<16x32xf32, #tpu.memory_space<vmem>>, vector<16x32xf32>
    %c0_1 = arith.constant 0 : index
    %c0_2 = arith.constant 0 : index
    %1 = vector.load %arg3[%c0_1, %c0_2] : memref<16x32xf32, #tpu.memory_space<vmem>>, vector<16x32xf32>
    %c0_3 = arith.constant 0 : index
    %c0_4 = arith.constant 0 : index
    %2 = vector.load %arg4[%c0_3, %c0_4] : memref<1x32xf32, #tpu.memory_space<vmem>>, vector<1x32xf32>
    %c0_5 = arith.constant 0 : index
    %c0_6 = arith.constant 0 : index
    %c0_7 = arith.constant 0 : index
    %3 = vector.load %arg1[%c0_5, %c0_6, %c0_7] : memref<2x16x16xf32, #tpu.memory_space<vmem>>, vector<2x16x16xf32>
    %4 = vector.shape_cast %3 : vector<2x16x16xf32> to vector<32x16xf32>
    %cst = arith.constant dense<0.000000e+00> : vector<32x32xf32>
    %5 = tpu.matmul %4, %1, %cst {dimension_numbers = #tpu.dot_dimension_numbers<[1], [0], [0], [1], [0, 0, 1, 1], [], []>} : vector<32x16xf32>, vector<16x32xf32>, vector<32x32xf32> -> vector<32x32xf32>
    %6 = vector.broadcast %2 : vector<1x32xf32> to vector<32x32xf32>
    %7 = arith.addf %5, %6 : vector<32x32xf32>
    %8 = vector.shape_cast %7 : vector<32x32xf32> to vector<2x16x32xf32>
    %c0_8 = arith.constant 0 : index
    %c0_9 = arith.constant 0 : index
    %9 = vector.load %arg5[%c0_8, %c0_9] : memref<32x96xf32, #tpu.memory_space<vmem>>, vector<32x96xf32>
    %c0_10 = arith.constant 0 : index
    %c0_11 = arith.constant 0 : index
    %10 = vector.load %arg6[%c0_10, %c0_11] : memref<1x96xf32, #tpu.memory_space<vmem>>, vector<1x96xf32>
    %c0_12 = arith.constant 0 : index
    %c0_13 = arith.constant 0 : index
    %11 = vector.load %arg7[%c0_12, %c0_13] : memref<32x32xf32, #tpu.memory_space<vmem>>, vector<32x32xf32>
    %c0_14 = arith.constant 0 : index
    %c0_15 = arith.constant 0 : index
    %12 = vector.load %arg8[%c0_14, %c0_15] : memref<1x32xf32, #tpu.memory_space<vmem>>, vector<1x32xf32>
    %c0_16 = arith.constant 0 : index
    %c0_17 = arith.constant 0 : index
    %13 = vector.load %arg9[%c0_16, %c0_17] : memref<1x32xf32, #tpu.memory_space<vmem>>, vector<1x32xf32>
    %c0_18 = arith.constant 0 : index
    %c0_19 = arith.constant 0 : index
    %14 = vector.load %arg10[%c0_18, %c0_19] : memref<1x32xf32, #tpu.memory_space<vmem>>, vector<1x32xf32>
    %c0_20 = arith.constant 0 : index
    %c0_21 = arith.constant 0 : index
    %15 = vector.load %arg11[%c0_20, %c0_21] : memref<32x64xf32, #tpu.memory_space<vmem>>, vector<32x64xf32>
    %c0_22 = arith.constant 0 : index
    %c0_23 = arith.constant 0 : index
    %16 = vector.load %arg12[%c0_22, %c0_23] : memref<64x32xf32, #tpu.memory_space<vmem>>, vector<64x32xf32>
    %c0_24 = arith.constant 0 : index
    %c0_25 = arith.constant 0 : index
    %17 = vector.load %arg13[%c0_24, %c0_25] : memref<1x32xf32, #tpu.memory_space<vmem>>, vector<1x32xf32>
    %c0_26 = arith.constant 0 : index
    %c0_27 = arith.constant 0 : index
    %18 = vector.load %arg14[%c0_26, %c0_27] : memref<1x32xf32, #tpu.memory_space<vmem>>, vector<1x32xf32>
    %19 = vector.shape_cast %0 : vector<16x32xf32> to vector<1x16x32xf32>
    %20 = vector.broadcast %19 : vector<1x16x32xf32> to vector<2x16x32xf32>
    %21 = arith.addf %8, %20 : vector<2x16x32xf32>
    %22 = vector.shape_cast %21 : vector<2x16x32xf32> to vector<32x32xf32>
    %cst_28 = arith.constant dense<0.000000e+00> : vector<32x96xf32>
    %23 = tpu.matmul %22, %9, %cst_28 {dimension_numbers = #tpu.dot_dimension_numbers<[1], [0], [0], [1], [0, 0, 1, 1], [], []>} : vector<32x32xf32>, vector<32x96xf32>, vector<32x96xf32> -> vector<32x96xf32>
    %24 = vector.broadcast %10 : vector<1x96xf32> to vector<32x96xf32>
    %25 = arith.addf %23, %24 : vector<32x96xf32>
    %26 = vector.extract_strided_slice %25 {offsets = [0, 0], sizes = [32, 8], strides = [1, 1]} : vector<32x96xf32> to vector<32x8xf32>
    %27 = vector.shape_cast %26 : vector<32x8xf32> to vector<2x16x8xf32>
    %28 = vector.extract_strided_slice %25 {offsets = [0, 32], sizes = [32, 8], strides = [1, 1]} : vector<32x96xf32> to vector<32x8xf32>
    %29 = vector.shape_cast %28 : vector<32x8xf32> to vector<2x16x8xf32>
    %30 = vector.extract_strided_slice %25 {offsets = [0, 64], sizes = [32, 8], strides = [1, 1]} : vector<32x96xf32> to vector<32x8xf32>
    %31 = vector.shape_cast %30 : vector<32x8xf32> to vector<2x16x8xf32>
    "tpu.trace_start"() <{level = 10 : i32, message = "bqd,bkd->bqk"}> : () -> ()
    %cst_29 = arith.constant dense<0.000000e+00> : vector<2x16x16xf32>
    %32 = tpu.matmul %27, %29, %cst_29 {dimension_numbers = #tpu.dot_dimension_numbers<[2], [2], [1], [1], [0, 0, 0, 1, 1, 1], [0], [0]>} : vector<2x16x8xf32>, vector<2x16x8xf32>, vector<2x16x16xf32> -> vector<2x16x16xf32>
    "tpu.trace_stop"() : () -> ()
    %cst_30 = arith.constant dense<0xFF800000> : vector<2x16xf32>
    %33 = vector.multi_reduction <maximumf>, %32, %cst_30 [2] : vector<2x16x16xf32> to vector<2x16xf32>
    %34 = vector.shape_cast %33 : vector<2x16xf32> to vector<2x16x1xf32>
    %35 = vector.broadcast %34 : vector<2x16x1xf32> to vector<2x16x16xf32>
    %36 = arith.subf %32, %35 : vector<2x16x16xf32>
    %37 = math.exp %36 : vector<2x16x16xf32>
    %cst_31 = arith.constant dense<0.000000e+00> : vector<2x16xf32>
    %38 = vector.multi_reduction <add>, %37, %cst_31 [2] : vector<2x16x16xf32> to vector<2x16xf32>
    %39 = vector.shape_cast %38 : vector<2x16xf32> to vector<2x16x1xf32>
    %40 = tpu.reciprocal %39 {approx = true} : vector<2x16x1xf32> -> vector<2x16x1xf32>
    %41 = vector.broadcast %40 : vector<2x16x1xf32> to vector<2x16x16xf32>
    %42 = arith.mulf %37, %41 : vector<2x16x16xf32>
    "tpu.trace_start"() <{level = 10 : i32, message = "bqk,bkd->bqd"}> : () -> ()
    %cst_32 = arith.constant dense<0.000000e+00> : vector<2x16x8xf32>
    %43 = tpu.matmul %42, %31, %cst_32 {dimension_numbers = #tpu.dot_dimension_numbers<[2], [1], [1], [2], [0, 0, 0, 1, 1, 2], [0], [0]>} : vector<2x16x16xf32>, vector<2x16x8xf32>, vector<2x16x8xf32> -> vector<2x16x8xf32>
    "tpu.trace_stop"() : () -> ()
    %44 = vector.extract_strided_slice %25 {offsets = [0, 8], sizes = [32, 8], strides = [1, 1]} : vector<32x96xf32> to vector<32x8xf32>
    %45 = vector.shape_cast %44 : vector<32x8xf32> to vector<2x16x8xf32>
    %46 = vector.extract_strided_slice %25 {offsets = [0, 40], sizes = [32, 8], strides = [1, 1]} : vector<32x96xf32> to vector<32x8xf32>
    %47 = vector.shape_cast %46 : vector<32x8xf32> to vector<2x16x8xf32>
    %48 = vector.extract_strided_slice %25 {offsets = [0, 72], sizes = [32, 8], strides = [1, 1]} : vector<32x96xf32> to vector<32x8xf32>
    %49 = vector.shape_cast %48 : vector<32x8xf32> to vector<2x16x8xf32>
    "tpu.trace_start"() <{level = 10 : i32, message = "bqd,bkd->bqk"}> : () -> ()
    %cst_33 = arith.constant dense<0.000000e+00> : vector<2x16x16xf32>
    %50 = tpu.matmul %45, %47, %cst_33 {dimension_numbers = #tpu.dot_dimension_numbers<[2], [2], [1], [1], [0, 0, 0, 1, 1, 1], [0], [0]>} : vector<2x16x8xf32>, vector<2x16x8xf32>, vector<2x16x16xf32> -> vector<2x16x16xf32>
    "tpu.trace_stop"() : () -> ()
    %cst_34 = arith.constant dense<0xFF800000> : vector<2x16xf32>
    %51 = vector.multi_reduction <maximumf>, %50, %cst_34 [2] : vector<2x16x16xf32> to vector<2x16xf32>
    %52 = vector.shape_cast %51 : vector<2x16xf32> to vector<2x16x1xf32>
    %53 = vector.broadcast %52 : vector<2x16x1xf32> to vector<2x16x16xf32>
    %54 = arith.subf %50, %53 : vector<2x16x16xf32>
    %55 = math.exp %54 : vector<2x16x16xf32>
    %cst_35 = arith.constant dense<0.000000e+00> : vector<2x16xf32>
    %56 = vector.multi_reduction <add>, %55, %cst_35 [2] : vector<2x16x16xf32> to vector<2x16xf32>
    %57 = vector.shape_cast %56 : vector<2x16xf32> to vector<2x16x1xf32>
    %58 = tpu.reciprocal %57 {approx = true} : vector<2x16x1xf32> -> vector<2x16x1xf32>
    %59 = vector.broadcast %58 : vector<2x16x1xf32> to vector<2x16x16xf32>
    %60 = arith.mulf %55, %59 : vector<2x16x16xf32>
    "tpu.trace_start"() <{level = 10 : i32, message = "bqk,bkd->bqd"}> : () -> ()
    %cst_36 = arith.constant dense<0.000000e+00> : vector<2x16x8xf32>
    %61 = tpu.matmul %60, %49, %cst_36 {dimension_numbers = #tpu.dot_dimension_numbers<[2], [1], [1], [2], [0, 0, 0, 1, 1, 2], [0], [0]>} : vector<2x16x16xf32>, vector<2x16x8xf32>, vector<2x16x8xf32> -> vector<2x16x8xf32>
    "tpu.trace_stop"() : () -> ()
    %62 = vector.extract_strided_slice %25 {offsets = [0, 16], sizes = [32, 8], strides = [1, 1]} : vector<32x96xf32> to vector<32x8xf32>
    %63 = vector.shape_cast %62 : vector<32x8xf32> to vector<2x16x8xf32>
    %64 = vector.extract_strided_slice %25 {offsets = [0, 48], sizes = [32, 8], strides = [1, 1]} : vector<32x96xf32> to vector<32x8xf32>
    %65 = vector.shape_cast %64 : vector<32x8xf32> to vector<2x16x8xf32>
    %66 = vector.extract_strided_slice %25 {offsets = [0, 80], sizes = [32, 8], strides = [1, 1]} : vector<32x96xf32> to vector<32x8xf32>
    %67 = vector.shape_cast %66 : vector<32x8xf32> to vector<2x16x8xf32>
    "tpu.trace_start"() <{level = 10 : i32, message = "bqd,bkd->bqk"}> : () -> ()
    %cst_37 = arith.constant dense<0.000000e+00> : vector<2x16x16xf32>
    %68 = tpu.matmul %63, %65, %cst_37 {dimension_numbers = #tpu.dot_dimension_numbers<[2], [2], [1], [1], [0, 0, 0, 1, 1, 1], [0], [0]>} : vector<2x16x8xf32>, vector<2x16x8xf32>, vector<2x16x16xf32> -> vector<2x16x16xf32>
    "tpu.trace_stop"() : () -> ()
    %cst_38 = arith.constant dense<0xFF800000> : vector<2x16xf32>
    %69 = vector.multi_reduction <maximumf>, %68, %cst_38 [2] : vector<2x16x16xf32> to vector<2x16xf32>
    %70 = vector.shape_cast %69 : vector<2x16xf32> to vector<2x16x1xf32>
    %71 = vector.broadcast %70 : vector<2x16x1xf32> to vector<2x16x16xf32>
    %72 = arith.subf %68, %71 : vector<2x16x16xf32>
    %73 = math.exp %72 : vector<2x16x16xf32>
    %cst_39 = arith.constant dense<0.000000e+00> : vector<2x16xf32>
    %74 = vector.multi_reduction <add>, %73, %cst_39 [2] : vector<2x16x16xf32> to vector<2x16xf32>
    %75 = vector.shape_cast %74 : vector<2x16xf32> to vector<2x16x1xf32>
    %76 = tpu.reciprocal %75 {approx = true} : vector<2x16x1xf32> -> vector<2x16x1xf32>
    %77 = vector.broadcast %76 : vector<2x16x1xf32> to vector<2x16x16xf32>
    %78 = arith.mulf %73, %77 : vector<2x16x16xf32>
    "tpu.trace_start"() <{level = 10 : i32, message = "bqk,bkd->bqd"}> : () -> ()
    %cst_40 = arith.constant dense<0.000000e+00> : vector<2x16x8xf32>
    %79 = tpu.matmul %78, %67, %cst_40 {dimension_numbers = #tpu.dot_dimension_numbers<[2], [1], [1], [2], [0, 0, 0, 1, 1, 2], [0], [0]>} : vector<2x16x16xf32>, vector<2x16x8xf32>, vector<2x16x8xf32> -> vector<2x16x8xf32>
    "tpu.trace_stop"() : () -> ()
    %80 = vector.extract_strided_slice %25 {offsets = [0, 24], sizes = [32, 8], strides = [1, 1]} : vector<32x96xf32> to vector<32x8xf32>
    %81 = vector.shape_cast %80 : vector<32x8xf32> to vector<2x16x8xf32>
    %82 = vector.extract_strided_slice %25 {offsets = [0, 56], sizes = [32, 8], strides = [1, 1]} : vector<32x96xf32> to vector<32x8xf32>
    %83 = vector.shape_cast %82 : vector<32x8xf32> to vector<2x16x8xf32>
    %84 = vector.extract_strided_slice %25 {offsets = [0, 88], sizes = [32, 8], strides = [1, 1]} : vector<32x96xf32> to vector<32x8xf32>
    %85 = vector.shape_cast %84 : vector<32x8xf32> to vector<2x16x8xf32>
    "tpu.trace_start"() <{level = 10 : i32, message = "bqd,bkd->bqk"}> : () -> ()
    %cst_41 = arith.constant dense<0.000000e+00> : vector<2x16x16xf32>
    %86 = tpu.matmul %81, %83, %cst_41 {dimension_numbers = #tpu.dot_dimension_numbers<[2], [2], [1], [1], [0, 0, 0, 1, 1, 1], [0], [0]>} : vector<2x16x8xf32>, vector<2x16x8xf32>, vector<2x16x16xf32> -> vector<2x16x16xf32>
    "tpu.trace_stop"() : () -> ()
    %cst_42 = arith.constant dense<0xFF800000> : vector<2x16xf32>
    %87 = vector.multi_reduction <maximumf>, %86, %cst_42 [2] : vector<2x16x16xf32> to vector<2x16xf32>
    %88 = vector.shape_cast %87 : vector<2x16xf32> to vector<2x16x1xf32>
    %89 = vector.broadcast %88 : vector<2x16x1xf32> to vector<2x16x16xf32>
    %90 = arith.subf %86, %89 : vector<2x16x16xf32>
    %91 = math.exp %90 : vector<2x16x16xf32>
    %cst_43 = arith.constant dense<0.000000e+00> : vector<2x16xf32>
    %92 = vector.multi_reduction <add>, %91, %cst_43 [2] : vector<2x16x16xf32> to vector<2x16xf32>
    %93 = vector.shape_cast %92 : vector<2x16xf32> to vector<2x16x1xf32>
    %94 = tpu.reciprocal %93 {approx = true} : vector<2x16x1xf32> -> vector<2x16x1xf32>
    %95 = vector.broadcast %94 : vector<2x16x1xf32> to vector<2x16x16xf32>
    %96 = arith.mulf %91, %95 : vector<2x16x16xf32>
    "tpu.trace_start"() <{level = 10 : i32, message = "bqk,bkd->bqd"}> : () -> ()
    %cst_44 = arith.constant dense<0.000000e+00> : vector<2x16x8xf32>
    %97 = tpu.matmul %96, %85, %cst_44 {dimension_numbers = #tpu.dot_dimension_numbers<[2], [1], [1], [2], [0, 0, 0, 1, 1, 2], [0], [0]>} : vector<2x16x16xf32>, vector<2x16x8xf32>, vector<2x16x8xf32> -> vector<2x16x8xf32>
    "tpu.trace_stop"() : () -> ()
    %98 = tpu.concatenate %43, %61, %79, %97 in 2 : vector<2x16x8xf32>, vector<2x16x8xf32>, vector<2x16x8xf32>, vector<2x16x8xf32> -> vector<2x16x32xf32>
    %99 = vector.shape_cast %98 : vector<2x16x32xf32> to vector<32x32xf32>
    %cst_45 = arith.constant dense<0.000000e+00> : vector<32x32xf32>
    %100 = tpu.matmul %99, %11, %cst_45 {dimension_numbers = #tpu.dot_dimension_numbers<[1], [0], [0], [1], [0, 0, 1, 1], [], []>} : vector<32x32xf32>, vector<32x32xf32>, vector<32x32xf32> -> vector<32x32xf32>
    %101 = vector.broadcast %12 : vector<1x32xf32> to vector<32x32xf32>
    %102 = arith.addf %100, %101 : vector<32x32xf32>
    %103 = vector.shape_cast %102 : vector<32x32xf32> to vector<2x16x32xf32>
    %104 = arith.addf %21, %103 : vector<2x16x32xf32>
    %c0_46 = arith.constant 0 : index
    %c0_47 = arith.constant 0 : index
    %c0_48 = arith.constant 0 : index
    %105 = vector.load %arg28[%c0_46, %c0_47, %c0_48] : memref<2x16x32xf32, #tpu.memory_space<vmem>>, vector<2x16x32xf32>
    tpu.vector_store %arg28[%c0_46, %c0_47, %c0_48], %104 {strides = array<i32>} : memref<2x16x32xf32, #tpu.memory_space<vmem>>, vector<2x16x32xf32>,
    %c0_49 = arith.constant 0 : index
    %c1 = arith.constant 1 : index
    %c0_50 = arith.constant 0 : index
    %106 = tpu.strided_load %arg28[%c0_49, %c1, %c0_50] {strides = array<i32: 1, 2, 1>} : memref<2x16x32xf32, #tpu.memory_space<vmem>>, vector<2x8x32xf32>
    %cst_51 = arith.constant dense<0.000000e+00> : vector<2x8xf32>
    %107 = vector.multi_reduction <add>, %106, %cst_51 [2] : vector<2x8x32xf32> to vector<2x8xf32>
    %108 = vector.shape_cast %107 : vector<2x8xf32> to vector<2x8x1xf32>
    %cst_52 = arith.constant 3.200000e+01 : f32
    %109 = vector.broadcast %cst_52 : f32 to vector<2x8x1xf32>
    %110 = arith.divf %108, %109 : vector<2x8x1xf32>
    %111 = vector.broadcast %110 : vector<2x8x1xf32> to vector<2x8x32xf32>
    %112 = arith.subf %106, %111 : vector<2x8x32xf32>
    %113 = arith.mulf %112, %112 : vector<2x8x32xf32>
    %cst_53 = arith.constant dense<0.000000e+00> : vector<2x8xf32>
    %114 = vector.multi_reduction <add>, %113, %cst_53 [2] : vector<2x8x32xf32> to vector<2x8xf32>
    %115 = vector.shape_cast %114 : vector<2x8xf32> to vector<2x8x1xf32>
    %cst_54 = arith.constant 3.200000e+01 : f32
    %116 = vector.broadcast %cst_54 : f32 to vector<2x8x1xf32>
    %117 = arith.divf %115, %116 : vector<2x8x1xf32>
    %118 = vector.broadcast %110 : vector<2x8x1xf32> to vector<2x8x32xf32>
    %119 = arith.subf %106, %118 : vector<2x8x32xf32>
    %cst_55 = arith.constant 9.99999974E-6 : f32
    %120 = vector.broadcast %cst_55 : f32 to vector<2x8x1xf32>
    %121 = arith.addf %117, %120 : vector<2x8x1xf32>
    %122 = math.rsqrt %121 : vector<2x8x1xf32>
    %123 = vector.broadcast %122 : vector<2x8x1xf32> to vector<2x8x32xf32>
    %124 = arith.mulf %119, %123 : vector<2x8x32xf32>
    %125 = vector.shape_cast %13 : vector<1x32xf32> to vector<1x1x32xf32>
    %126 = vector.broadcast %125 : vector<1x1x32xf32> to vector<2x8x32xf32>
    %127 = arith.mulf %124, %126 : vector<2x8x32xf32>
    %128 = vector.shape_cast %14 : vector<1x32xf32> to vector<1x1x32xf32>
    %129 = vector.broadcast %128 : vector<1x1x32xf32> to vector<2x8x32xf32>
    %130 = arith.addf %127, %129 : vector<2x8x32xf32>
    %131 = vector.shape_cast %130 : vector<2x8x32xf32> to vector<16x32xf32>
    %cst_56 = arith.constant dense<0.000000e+00> : vector<16x64xf32>
    %132 = tpu.matmul %131, %15, %cst_56 {dimension_numbers = #tpu.dot_dimension_numbers<[1], [0], [0], [1], [0, 0, 1, 1], [], []>} : vector<16x32xf32>, vector<32x64xf32>, vector<16x64xf32> -> vector<16x64xf32>
    %cst_57 = arith.constant 0.000000e+00 : f32
    %133 = vector.broadcast %cst_57 : f32 to vector<16x64xf32>
    %134 = arith.maximumf %132, %133 : vector<16x64xf32>
    %cst_58 = arith.constant dense<0.000000e+00> : vector<16x32xf32>
    %135 = tpu.matmul %134, %16, %cst_58 {dimension_numbers = #tpu.dot_dimension_numbers<[1], [0], [0], [1], [0, 0, 1, 1], [], []>} : vector<16x64xf32>, vector<64x32xf32>, vector<16x32xf32> -> vector<16x32xf32>
    %136 = vector.shape_cast %135 : vector<16x32xf32> to vector<2x8x32xf32>
    %137 = arith.addf %130, %136 : vector<2x8x32xf32>
    %cst_59 = arith.constant dense<0.000000e+00> : vector<2x8xf32>
    %138 = vector.multi_reduction <add>, %137, %cst_59 [2] : vector<2x8x32xf32> to vector<2x8xf32>
    %139 = vector.shape_cast %138 : vector<2x8xf32> to vector<2x8x1xf32>
    %cst_60 = arith.constant 3.200000e+01 : f32
    %140 = vector.broadcast %cst_60 : f32 to vector<2x8x1xf32>
    %141 = arith.divf %139, %140 : vector<2x8x1xf32>
    %142 = vector.broadcast %141 : vector<2x8x1xf32> to vector<2x8x32xf32>
    %143 = arith.subf %137, %142 : vector<2x8x32xf32>
    %144 = arith.mulf %143, %143 : vector<2x8x32xf32>
    %cst_61 = arith.constant dense<0.000000e+00> : vector<2x8xf32>
    %145 = vector.multi_reduction <add>, %144, %cst_61 [2] : vector<2x8x32xf32> to vector<2x8xf32>
    %146 = vector.shape_cast %145 : vector<2x8xf32> to vector<2x8x1xf32>
    %cst_62 = arith.constant 3.200000e+01 : f32
    %147 = vector.broadcast %cst_62 : f32 to vector<2x8x1xf32>
    %148 = arith.divf %146, %147 : vector<2x8x1xf32>
    %149 = vector.broadcast %141 : vector<2x8x1xf32> to vector<2x8x32xf32>
    %150 = arith.subf %137, %149 : vector<2x8x32xf32>
    %cst_63 = arith.constant 9.99999974E-6 : f32
    %151 = vector.broadcast %cst_63 : f32 to vector<2x8x1xf32>
    %152 = arith.addf %148, %151 : vector<2x8x1xf32>
    %153 = math.rsqrt %152 : vector<2x8x1xf32>
    %154 = vector.broadcast %153 : vector<2x8x1xf32> to vector<2x8x32xf32>
    %155 = arith.mulf %150, %154 : vector<2x8x32xf32>
    %156 = vector.shape_cast %17 : vector<1x32xf32> to vector<1x1x32xf32>
    %157 = vector.broadcast %156 : vector<1x1x32xf32> to vector<2x8x32xf32>
    %158 = arith.mulf %155, %157 : vector<2x8x32xf32>
    %159 = vector.shape_cast %18 : vector<1x32xf32> to vector<1x1x32xf32>
    %160 = vector.broadcast %159 : vector<1x1x32xf32> to vector<2x8x32xf32>
    %161 = arith.addf %158, %160 : vector<2x8x32xf32>
    %c0_64 = arith.constant 0 : index
    %c0_65 = arith.constant 0 : index
    %162 = vector.load %arg15[%c0_64, %c0_65] : memref<32x96xf32, #tpu.memory_space<vmem>>, vector<32x96xf32>
    %c0_66 = arith.constant 0 : index
    %c0_67 = arith.constant 0 : index
    %163 = vector.load %arg16[%c0_66, %c0_67] : memref<1x96xf32, #tpu.memory_space<vmem>>, vector<1x96xf32>
    %c0_68 = arith.constant 0 : index
    %c0_69 = arith.constant 0 : index
    %164 = vector.load %arg17[%c0_68, %c0_69] : memref<32x32xf32, #tpu.memory_space<vmem>>, vector<32x32xf32>
    %c0_70 = arith.constant 0 : index
    %c0_71 = arith.constant 0 : index
    %165 = vector.load %arg18[%c0_70, %c0_71] : memref<1x32xf32, #tpu.memory_space<vmem>>, vector<1x32xf32>
    %c0_72 = arith.constant 0 : index
    %c0_73 = arith.constant 0 : index
    %166 = vector.load %arg19[%c0_72, %c0_73] : memref<1x32xf32, #tpu.memory_space<vmem>>, vector<1x32xf32>
    %c0_74 = arith.constant 0 : index
    %c0_75 = arith.constant 0 : index
    %167 = vector.load %arg20[%c0_74, %c0_75] : memref<1x32xf32, #tpu.memory_space<vmem>>, vector<1x32xf32>
    %c0_76 = arith.constant 0 : index
    %c0_77 = arith.constant 0 : index
    %168 = vector.load %arg21[%c0_76, %c0_77] : memref<32x64xf32, #tpu.memory_space<vmem>>, vector<32x64xf32>
    %c0_78 = arith.constant 0 : index
    %c0_79 = arith.constant 0 : index
    %169 = vector.load %arg22[%c0_78, %c0_79] : memref<64x32xf32, #tpu.memory_space<vmem>>, vector<64x32xf32>
    %c0_80 = arith.constant 0 : index
    %c0_81 = arith.constant 0 : index
    %170 = vector.load %arg23[%c0_80, %c0_81] : memref<1x32xf32, #tpu.memory_space<vmem>>, vector<1x32xf32>
    %c0_82 = arith.constant 0 : index
    %c0_83 = arith.constant 0 : index
    %171 = vector.load %arg24[%c0_82, %c0_83] : memref<1x32xf32, #tpu.memory_space<vmem>>, vector<1x32xf32>
    %172 = vector.extract_strided_slice %0 {offsets = [0, 0], sizes = [8, 32], strides = [1, 1]} : vector<16x32xf32> to vector<8x32xf32>
    %173 = vector.shape_cast %172 : vector<8x32xf32> to vector<1x8x32xf32>
    %174 = vector.broadcast %173 : vector<1x8x32xf32> to vector<2x8x32xf32>
    %175 = arith.addf %161, %174 : vector<2x8x32xf32>
    %176 = vector.shape_cast %175 : vector<2x8x32xf32> to vector<16x32xf32>
    %cst_84 = arith.constant dense<0.000000e+00> : vector<16x96xf32>
    %177 = tpu.matmul %176, %162, %cst_84 {dimension_numbers = #tpu.dot_dimension_numbers<[1], [0], [0], [1], [0, 0, 1, 1], [], []>} : vector<16x32xf32>, vector<32x96xf32>, vector<16x96xf32> -> vector<16x96xf32>
    %178 = vector.broadcast %163 : vector<1x96xf32> to vector<16x96xf32>
    %179 = arith.addf %177, %178 : vector<16x96xf32>
    %180 = vector.extract_strided_slice %179 {offsets = [0, 0], sizes = [16, 8], strides = [1, 1]} : vector<16x96xf32> to vector<16x8xf32>
    %181 = vector.shape_cast %180 : vector<16x8xf32> to vector<2x8x8xf32>
    %182 = vector.extract_strided_slice %179 {offsets = [0, 32], sizes = [16, 8], strides = [1, 1]} : vector<16x96xf32> to vector<16x8xf32>
    %183 = vector.shape_cast %182 : vector<16x8xf32> to vector<2x8x8xf32>
    %184 = vector.extract_strided_slice %179 {offsets = [0, 64], sizes = [16, 8], strides = [1, 1]} : vector<16x96xf32> to vector<16x8xf32>
    %185 = vector.shape_cast %184 : vector<16x8xf32> to vector<2x8x8xf32>
    "tpu.trace_start"() <{level = 10 : i32, message = "bqd,bkd->bqk"}> : () -> ()
    %cst_85 = arith.constant dense<0.000000e+00> : vector<2x8x8xf32>
    %186 = tpu.matmul %181, %183, %cst_85 {dimension_numbers = #tpu.dot_dimension_numbers<[2], [2], [1], [1], [0, 0, 0, 1, 1, 1], [0], [0]>} : vector<2x8x8xf32>, vector<2x8x8xf32>, vector<2x8x8xf32> -> vector<2x8x8xf32>
    "tpu.trace_stop"() : () -> ()
    %cst_86 = arith.constant dense<0xFF800000> : vector<2x8xf32>
    %187 = vector.multi_reduction <maximumf>, %186, %cst_86 [2] : vector<2x8x8xf32> to vector<2x8xf32>
    %188 = vector.shape_cast %187 : vector<2x8xf32> to vector<2x8x1xf32>
    %189 = vector.broadcast %188 : vector<2x8x1xf32> to vector<2x8x8xf32>
    %190 = arith.subf %186, %189 : vector<2x8x8xf32>
    %191 = math.exp %190 : vector<2x8x8xf32>
    %cst_87 = arith.constant dense<0.000000e+00> : vector<2x8xf32>
    %192 = vector.multi_reduction <add>, %191, %cst_87 [2] : vector<2x8x8xf32> to vector<2x8xf32>
    %193 = vector.shape_cast %192 : vector<2x8xf32> to vector<2x8x1xf32>
    %194 = tpu.reciprocal %193 {approx = true} : vector<2x8x1xf32> -> vector<2x8x1xf32>
    %195 = vector.broadcast %194 : vector<2x8x1xf32> to vector<2x8x8xf32>
    %196 = arith.mulf %191, %195 : vector<2x8x8xf32>
    "tpu.trace_start"() <{level = 10 : i32, message = "bqk,bkd->bqd"}> : () -> ()
    %cst_88 = arith.constant dense<0.000000e+00> : vector<2x8x8xf32>
    %197 = tpu.matmul %196, %185, %cst_88 {dimension_numbers = #tpu.dot_dimension_numbers<[2], [1], [1], [2], [0, 0, 0, 1, 1, 2], [0], [0]>} : vector<2x8x8xf32>, vector<2x8x8xf32>, vector<2x8x8xf32> -> vector<2x8x8xf32>
    "tpu.trace_stop"() : () -> ()
    %198 = vector.extract_strided_slice %179 {offsets = [0, 8], sizes = [16, 8], strides = [1, 1]} : vector<16x96xf32> to vector<16x8xf32>
    %199 = vector.shape_cast %198 : vector<16x8xf32> to vector<2x8x8xf32>
    %200 = vector.extract_strided_slice %179 {offsets = [0, 40], sizes = [16, 8], strides = [1, 1]} : vector<16x96xf32> to vector<16x8xf32>
    %201 = vector.shape_cast %200 : vector<16x8xf32> to vector<2x8x8xf32>
    %202 = vector.extract_strided_slice %179 {offsets = [0, 72], sizes = [16, 8], strides = [1, 1]} : vector<16x96xf32> to vector<16x8xf32>
    %203 = vector.shape_cast %202 : vector<16x8xf32> to vector<2x8x8xf32>
    "tpu.trace_start"() <{level = 10 : i32, message = "bqd,bkd->bqk"}> : () -> ()
    %cst_89 = arith.constant dense<0.000000e+00> : vector<2x8x8xf32>
    %204 = tpu.matmul %199, %201, %cst_89 {dimension_numbers = #tpu.dot_dimension_numbers<[2], [2], [1], [1], [0, 0, 0, 1, 1, 1], [0], [0]>} : vector<2x8x8xf32>, vector<2x8x8xf32>, vector<2x8x8xf32> -> vector<2x8x8xf32>
    "tpu.trace_stop"() : () -> ()
    %cst_90 = arith.constant dense<0xFF800000> : vector<2x8xf32>
    %205 = vector.multi_reduction <maximumf>, %204, %cst_90 [2] : vector<2x8x8xf32> to vector<2x8xf32>
    %206 = vector.shape_cast %205 : vector<2x8xf32> to vector<2x8x1xf32>
    %207 = vector.broadcast %206 : vector<2x8x1xf32> to vector<2x8x8xf32>
    %208 = arith.subf %204, %207 : vector<2x8x8xf32>
    %209 = math.exp %208 : vector<2x8x8xf32>
    %cst_91 = arith.constant dense<0.000000e+00> : vector<2x8xf32>
    %210 = vector.multi_reduction <add>, %209, %cst_91 [2] : vector<2x8x8xf32> to vector<2x8xf32>
    %211 = vector.shape_cast %210 : vector<2x8xf32> to vector<2x8x1xf32>
    %212 = tpu.reciprocal %211 {approx = true} : vector<2x8x1xf32> -> vector<2x8x1xf32>
    %213 = vector.broadcast %212 : vector<2x8x1xf32> to vector<2x8x8xf32>
    %214 = arith.mulf %209, %213 : vector<2x8x8xf32>
    "tpu.trace_start"() <{level = 10 : i32, message = "bqk,bkd->bqd"}> : () -> ()
    %cst_92 = arith.constant dense<0.000000e+00> : vector<2x8x8xf32>
    %215 = tpu.matmul %214, %203, %cst_92 {dimension_numbers = #tpu.dot_dimension_numbers<[2], [1], [1], [2], [0, 0, 0, 1, 1, 2], [0], [0]>} : vector<2x8x8xf32>, vector<2x8x8xf32>, vector<2x8x8xf32> -> vector<2x8x8xf32>
    "tpu.trace_stop"() : () -> ()
    %216 = vector.extract_strided_slice %179 {offsets = [0, 16], sizes = [16, 8], strides = [1, 1]} : vector<16x96xf32> to vector<16x8xf32>
    %217 = vector.shape_cast %216 : vector<16x8xf32> to vector<2x8x8xf32>
    %218 = vector.extract_strided_slice %179 {offsets = [0, 48], sizes = [16, 8], strides = [1, 1]} : vector<16x96xf32> to vector<16x8xf32>
    %219 = vector.shape_cast %218 : vector<16x8xf32> to vector<2x8x8xf32>
    %220 = vector.extract_strided_slice %179 {offsets = [0, 80], sizes = [16, 8], strides = [1, 1]} : vector<16x96xf32> to vector<16x8xf32>
    %221 = vector.shape_cast %220 : vector<16x8xf32> to vector<2x8x8xf32>
    "tpu.trace_start"() <{level = 10 : i32, message = "bqd,bkd->bqk"}> : () -> ()
    %cst_93 = arith.constant dense<0.000000e+00> : vector<2x8x8xf32>
    %222 = tpu.matmul %217, %219, %cst_93 {dimension_numbers = #tpu.dot_dimension_numbers<[2], [2], [1], [1], [0, 0, 0, 1, 1, 1], [0], [0]>} : vector<2x8x8xf32>, vector<2x8x8xf32>, vector<2x8x8xf32> -> vector<2x8x8xf32>
    "tpu.trace_stop"() : () -> ()
    %cst_94 = arith.constant dense<0xFF800000> : vector<2x8xf32>
    %223 = vector.multi_reduction <maximumf>, %222, %cst_94 [2] : vector<2x8x8xf32> to vector<2x8xf32>
    %224 = vector.shape_cast %223 : vector<2x8xf32> to vector<2x8x1xf32>
    %225 = vector.broadcast %224 : vector<2x8x1xf32> to vector<2x8x8xf32>
    %226 = arith.subf %222, %225 : vector<2x8x8xf32>
    %227 = math.exp %226 : vector<2x8x8xf32>
    %cst_95 = arith.constant dense<0.000000e+00> : vector<2x8xf32>
    %228 = vector.multi_reduction <add>, %227, %cst_95 [2] : vector<2x8x8xf32> to vector<2x8xf32>
    %229 = vector.shape_cast %228 : vector<2x8xf32> to vector<2x8x1xf32>
    %230 = tpu.reciprocal %229 {approx = true} : vector<2x8x1xf32> -> vector<2x8x1xf32>
    %231 = vector.broadcast %230 : vector<2x8x1xf32> to vector<2x8x8xf32>
    %232 = arith.mulf %227, %231 : vector<2x8x8xf32>
    "tpu.trace_start"() <{level = 10 : i32, message = "bqk,bkd->bqd"}> : () -> ()
    %cst_96 = arith.constant dense<0.000000e+00> : vector<2x8x8xf32>
    %233 = tpu.matmul %232, %221, %cst_96 {dimension_numbers = #tpu.dot_dimension_numbers<[2], [1], [1], [2], [0, 0, 0, 1, 1, 2], [0], [0]>} : vector<2x8x8xf32>, vector<2x8x8xf32>, vector<2x8x8xf32> -> vector<2x8x8xf32>
    "tpu.trace_stop"() : () -> ()
    %234 = vector.extract_strided_slice %179 {offsets = [0, 24], sizes = [16, 8], strides = [1, 1]} : vector<16x96xf32> to vector<16x8xf32>
    %235 = vector.shape_cast %234 : vector<16x8xf32> to vector<2x8x8xf32>
    %236 = vector.extract_strided_slice %179 {offsets = [0, 56], sizes = [16, 8], strides = [1, 1]} : vector<16x96xf32> to vector<16x8xf32>
    %237 = vector.shape_cast %236 : vector<16x8xf32> to vector<2x8x8xf32>
    %238 = vector.extract_strided_slice %179 {offsets = [0, 88], sizes = [16, 8], strides = [1, 1]} : vector<16x96xf32> to vector<16x8xf32>
    %239 = vector.shape_cast %238 : vector<16x8xf32> to vector<2x8x8xf32>
    "tpu.trace_start"() <{level = 10 : i32, message = "bqd,bkd->bqk"}> : () -> ()
    %cst_97 = arith.constant dense<0.000000e+00> : vector<2x8x8xf32>
    %240 = tpu.matmul %235, %237, %cst_97 {dimension_numbers = #tpu.dot_dimension_numbers<[2], [2], [1], [1], [0, 0, 0, 1, 1, 1], [0], [0]>} : vector<2x8x8xf32>, vector<2x8x8xf32>, vector<2x8x8xf32> -> vector<2x8x8xf32>
    "tpu.trace_stop"() : () -> ()
    %cst_98 = arith.constant dense<0xFF800000> : vector<2x8xf32>
    %241 = vector.multi_reduction <maximumf>, %240, %cst_98 [2] : vector<2x8x8xf32> to vector<2x8xf32>
    %242 = vector.shape_cast %241 : vector<2x8xf32> to vector<2x8x1xf32>
    %243 = vector.broadcast %242 : vector<2x8x1xf32> to vector<2x8x8xf32>
    %244 = arith.subf %240, %243 : vector<2x8x8xf32>
    %245 = math.exp %244 : vector<2x8x8xf32>
    %cst_99 = arith.constant dense<0.000000e+00> : vector<2x8xf32>
    %246 = vector.multi_reduction <add>, %245, %cst_99 [2] : vector<2x8x8xf32> to vector<2x8xf32>
    %247 = vector.shape_cast %246 : vector<2x8xf32> to vector<2x8x1xf32>
    %248 = tpu.reciprocal %247 {approx = true} : vector<2x8x1xf32> -> vector<2x8x1xf32>
    %249 = vector.broadcast %248 : vector<2x8x1xf32> to vector<2x8x8xf32>
    %250 = arith.mulf %245, %249 : vector<2x8x8xf32>
    "tpu.trace_start"() <{level = 10 : i32, message = "bqk,bkd->bqd"}> : () -> ()
    %cst_100 = arith.constant dense<0.000000e+00> : vector<2x8x8xf32>
    %251 = tpu.matmul %250, %239, %cst_100 {dimension_numbers = #tpu.dot_dimension_numbers<[2], [1], [1], [2], [0, 0, 0, 1, 1, 2], [0], [0]>} : vector<2x8x8xf32>, vector<2x8x8xf32>, vector<2x8x8xf32> -> vector<2x8x8xf32>
    "tpu.trace_stop"() : () -> ()
    %252 = tpu.concatenate %197, %215, %233, %251 in 2 : vector<2x8x8xf32>, vector<2x8x8xf32>, vector<2x8x8xf32>, vector<2x8x8xf32> -> vector<2x8x32xf32>
    %253 = vector.shape_cast %252 : vector<2x8x32xf32> to vector<16x32xf32>
    %cst_101 = arith.constant dense<0.000000e+00> : vector<16x32xf32>
    %254 = tpu.matmul %253, %164, %cst_101 {dimension_numbers = #tpu.dot_dimension_numbers<[1], [0], [0], [1], [0, 0, 1, 1], [], []>} : vector<16x32xf32>, vector<32x32xf32>, vector<16x32xf32> -> vector<16x32xf32>
    %255 = vector.broadcast %165 : vector<1x32xf32> to vector<16x32xf32>
    %256 = arith.addf %254, %255 : vector<16x32xf32>
    %257 = vector.shape_cast %256 : vector<16x32xf32> to vector<2x8x32xf32>
    %258 = arith.addf %175, %257 : vector<2x8x32xf32>
    %c0_102 = arith.constant 0 : index
    %c0_103 = arith.constant 0 : index
    %c0_104 = arith.constant 0 : index
    %259 = vector.load %arg28[%c0_102, %c0_103, %c0_104] : memref<2x16x32xf32, #tpu.memory_space<vmem>>, vector<2x8x32xf32>
    tpu.vector_store %arg28[%c0_102, %c0_103, %c0_104], %258 {strides = array<i32>} : memref<2x16x32xf32, #tpu.memory_space<vmem>>, vector<2x8x32xf32>,
    %c0_105 = arith.constant 0 : index
    %c1_106 = arith.constant 1 : index
    %c0_107 = arith.constant 0 : index
    %260 = tpu.strided_load %arg28[%c0_105, %c1_106, %c0_107] {strides = array<i32: 1, 2, 1>} : memref<2x16x32xf32, #tpu.memory_space<vmem>>, vector<2x4x32xf32>
    %cst_108 = arith.constant dense<0.000000e+00> : vector<2x4xf32>
    %261 = vector.multi_reduction <add>, %260, %cst_108 [2] : vector<2x4x32xf32> to vector<2x4xf32>
    %262 = vector.shape_cast %261 : vector<2x4xf32> to vector<2x4x1xf32>
    %cst_109 = arith.constant 3.200000e+01 : f32
    %263 = vector.broadcast %cst_109 : f32 to vector<2x4x1xf32>
    %264 = arith.divf %262, %263 : vector<2x4x1xf32>
    %265 = vector.broadcast %264 : vector<2x4x1xf32> to vector<2x4x32xf32>
    %266 = arith.subf %260, %265 : vector<2x4x32xf32>
    %267 = arith.mulf %266, %266 : vector<2x4x32xf32>
    %cst_110 = arith.constant dense<0.000000e+00> : vector<2x4xf32>
    %268 = vector.multi_reduction <add>, %267, %cst_110 [2] : vector<2x4x32xf32> to vector<2x4xf32>
    %269 = vector.shape_cast %268 : vector<2x4xf32> to vector<2x4x1xf32>
    %cst_111 = arith.constant 3.200000e+01 : f32
    %270 = vector.broadcast %cst_111 : f32 to vector<2x4x1xf32>
    %271 = arith.divf %269, %270 : vector<2x4x1xf32>
    %272 = vector.broadcast %264 : vector<2x4x1xf32> to vector<2x4x32xf32>
    %273 = arith.subf %260, %272 : vector<2x4x32xf32>
    %cst_112 = arith.constant 9.99999974E-6 : f32
    %274 = vector.broadcast %cst_112 : f32 to vector<2x4x1xf32>
    %275 = arith.addf %271, %274 : vector<2x4x1xf32>
    %276 = math.rsqrt %275 : vector<2x4x1xf32>
    %277 = vector.broadcast %276 : vector<2x4x1xf32> to vector<2x4x32xf32>
    %278 = arith.mulf %273, %277 : vector<2x4x32xf32>
    %279 = vector.shape_cast %166 : vector<1x32xf32> to vector<1x1x32xf32>
    %280 = vector.broadcast %279 : vector<1x1x32xf32> to vector<2x4x32xf32>
    %281 = arith.mulf %278, %280 : vector<2x4x32xf32>
    %282 = vector.shape_cast %167 : vector<1x32xf32> to vector<1x1x32xf32>
    %283 = vector.broadcast %282 : vector<1x1x32xf32> to vector<2x4x32xf32>
    %284 = arith.addf %281, %283 : vector<2x4x32xf32>
    %285 = vector.shape_cast %284 : vector<2x4x32xf32> to vector<8x32xf32>
    %cst_113 = arith.constant dense<0.000000e+00> : vector<8x64xf32>
    %286 = tpu.matmul %285, %168, %cst_113 {dimension_numbers = #tpu.dot_dimension_numbers<[1], [0], [0], [1], [0, 0, 1, 1], [], []>} : vector<8x32xf32>, vector<32x64xf32>, vector<8x64xf32> -> vector<8x64xf32>
    %cst_114 = arith.constant 0.000000e+00 : f32
    %287 = vector.broadcast %cst_114 : f32 to vector<8x64xf32>
    %288 = arith.maximumf %286, %287 : vector<8x64xf32>
    %cst_115 = arith.constant dense<0.000000e+00> : vector<8x32xf32>
    %289 = tpu.matmul %288, %169, %cst_115 {dimension_numbers = #tpu.dot_dimension_numbers<[1], [0], [0], [1], [0, 0, 1, 1], [], []>} : vector<8x64xf32>, vector<64x32xf32>, vector<8x32xf32> -> vector<8x32xf32>
    %290 = vector.shape_cast %289 : vector<8x32xf32> to vector<2x4x32xf32>
    %291 = arith.addf %284, %290 : vector<2x4x32xf32>
    %cst_116 = arith.constant dense<0.000000e+00> : vector<2x4xf32>
    %292 = vector.multi_reduction <add>, %291, %cst_116 [2] : vector<2x4x32xf32> to vector<2x4xf32>
    %293 = vector.shape_cast %292 : vector<2x4xf32> to vector<2x4x1xf32>
    %cst_117 = arith.constant 3.200000e+01 : f32
    %294 = vector.broadcast %cst_117 : f32 to vector<2x4x1xf32>
    %295 = arith.divf %293, %294 : vector<2x4x1xf32>
    %296 = vector.broadcast %295 : vector<2x4x1xf32> to vector<2x4x32xf32>
    %297 = arith.subf %291, %296 : vector<2x4x32xf32>
    %298 = arith.mulf %297, %297 : vector<2x4x32xf32>
    %cst_118 = arith.constant dense<0.000000e+00> : vector<2x4xf32>
    %299 = vector.multi_reduction <add>, %298, %cst_118 [2] : vector<2x4x32xf32> to vector<2x4xf32>
    %300 = vector.shape_cast %299 : vector<2x4xf32> to vector<2x4x1xf32>
    %cst_119 = arith.constant 3.200000e+01 : f32
    %301 = vector.broadcast %cst_119 : f32 to vector<2x4x1xf32>
    %302 = arith.divf %300, %301 : vector<2x4x1xf32>
    %303 = vector.broadcast %295 : vector<2x4x1xf32> to vector<2x4x32xf32>
    %304 = arith.subf %291, %303 : vector<2x4x32xf32>
    %cst_120 = arith.constant 9.99999974E-6 : f32
    %305 = vector.broadcast %cst_120 : f32 to vector<2x4x1xf32>
    %306 = arith.addf %302, %305 : vector<2x4x1xf32>
    %307 = math.rsqrt %306 : vector<2x4x1xf32>
    %308 = vector.broadcast %307 : vector<2x4x1xf32> to vector<2x4x32xf32>
    %309 = arith.mulf %304, %308 : vector<2x4x32xf32>
    %310 = vector.shape_cast %170 : vector<1x32xf32> to vector<1x1x32xf32>
    %311 = vector.broadcast %310 : vector<1x1x32xf32> to vector<2x4x32xf32>
    %312 = arith.mulf %309, %311 : vector<2x4x32xf32>
    %313 = vector.shape_cast %171 : vector<1x32xf32> to vector<1x1x32xf32>
    %314 = vector.broadcast %313 : vector<1x1x32xf32> to vector<2x4x32xf32>
    %315 = arith.addf %312, %314 : vector<2x4x32xf32>
    %c0_121 = arith.constant 0 : index
    %c0_122 = arith.constant 0 : index
    %316 = vector.load %arg25[%c0_121, %c0_122] : memref<32x128xf32, #tpu.memory_space<vmem>>, vector<32x128xf32>
    %c0_123 = arith.constant 0 : index
    %c0_124 = arith.constant 0 : index
    %317 = vector.load %arg26[%c0_123, %c0_124] : memref<1x128xf32, #tpu.memory_space<vmem>>, vector<1x128xf32>
    %318 = vector.shape_cast %315 : vector<2x4x32xf32> to vector<8x32xf32>
    %cst_125 = arith.constant dense<0.000000e+00> : vector<8x128xf32>
    %319 = tpu.matmul %318, %316, %cst_125 {dimension_numbers = #tpu.dot_dimension_numbers<[1], [0], [0], [1], [0, 0, 1, 1], [], []>} : vector<8x32xf32>, vector<32x128xf32>, vector<8x128xf32> -> vector<8x128xf32>
    %320 = vector.broadcast %317 : vector<1x128xf32> to vector<8x128xf32>
    %321 = arith.addf %319, %320 : vector<8x128xf32>
    %322 = vector.shape_cast %321 : vector<8x128xf32> to vector<2x4x128xf32>
    %c0_126 = arith.constant 0 : index
    %c0_127 = arith.constant 0 : index
    %c0_128 = arith.constant 0 : index
    %323 = vector.load %arg27[%c0_126, %c0_127, %c0_128] : memref<2x4x128xf32, #tpu.memory_space<vmem>>, vector<2x4x128xf32>
    tpu.vector_store %arg27[%c0_126, %c0_127, %c0_128], %322 {strides = array<i32>} : memref<2x4x128xf32, #tpu.memory_space<vmem>>, vector<2x4x128xf32>,
    return
  }
  func.func @transform_0(%arg0: i32) -> (i32, i32, i32) {
    %c0_i32 = arith.constant 0 : i32
    %c0_i32_0 = arith.constant 0 : i32
    %c0_i32_1 = arith.constant 0 : i32
    return %arg0, %c0_i32, %c0_i32_0 : i32, i32, i32
  }
  func.func @transform_1(%arg0: i32) -> (i32, i32) {
    %c0_i32 = arith.constant 0 : i32
    %c0_i32_0 = arith.constant 0 : i32
    %c0_i32_1 = arith.constant 0 : i32
    return %c0_i32, %c0_i32_0 : i32, i32
  }
  func.func @transform_2(%arg0: i32) -> (i32, i32) {
    %c0_i32 = arith.constant 0 : i32
    %c0_i32_0 = arith.constant 0 : i32
    %c0_i32_1 = arith.constant 0 : i32
    return %c0_i32, %c0_i32_0 : i32, i32
  }
  func.func @transform_3(%arg0: i32) -> (i32, i32) {
    %c0_i32 = arith.constant 0 : i32
    %c0_i32_0 = arith.constant 0 : i32
    %c0_i32_1 = arith.constant 0 : i32
    return %c0_i32, %c0_i32_0 : i32, i32
  }
  func.func @transform_4(%arg0: i32) -> (i32, i32) {
    %c0_i32 = arith.constant 0 : i32
    %c0_i32_0 = arith.constant 0 : i32
    %c0_i32_1 = arith.constant 0 : i32
    return %c0_i32, %c0_i32_0 : i32, i32
  }
  func.func @transform_5(%arg0: i32) -> (i32, i32) {
    %c0_i32 = arith.constant 0 : i32
    %c0_i32_0 = arith.constant 0 : i32
    %c0_i32_1 = arith.constant 0 : i32
    return %c0_i32, %c0_i32_0 : i32, i32
  }
  func.func @transform_6(%arg0: i32) -> (i32, i32) {
    %c0_i32 = arith.constant 0 : i32
    %c0_i32_0 = arith.constant 0 : i32
    %c0_i32_1 = arith.constant 0 : i32
    return %c0_i32, %c0_i32_0 : i32, i32
  }
  func.func @transform_7(%arg0: i32) -> (i32, i32) {
    %c0_i32 = arith.constant 0 : i32
    %c0_i32_0 = arith.constant 0 : i32
    %c0_i32_1 = arith.constant 0 : i32
    return %c0_i32, %c0_i32_0 : i32, i32
  }
  func.func @transform_8(%arg0: i32) -> (i32, i32) {
    %c0_i32 = arith.constant 0 : i32
    %c0_i32_0 = arith.constant 0 : i32
    %c0_i32_1 = arith.constant 0 : i32
    return %c0_i32, %c0_i32_0 : i32, i32
  }
  func.func @transform_9(%arg0: i32) -> (i32, i32) {
    %c0_i32 = arith.constant 0 : i32
    %c0_i32_0 = arith.constant 0 : i32
    %c0_i32_1 = arith.constant 0 : i32
    return %c0_i32, %c0_i32_0 : i32, i32
  }
  func.func @transform_10(%arg0: i32) -> (i32, i32) {
    %c0_i32 = arith.constant 0 : i32
    %c0_i32_0 = arith.constant 0 : i32
    %c0_i32_1 = arith.constant 0 : i32
    return %c0_i32, %c0_i32_0 : i32, i32
  }
  func.func @transform_11(%arg0: i32) -> (i32, i32) {
    %c0_i32 = arith.constant 0 : i32
    %c0_i32_0 = arith.constant 0 : i32
    %c0_i32_1 = arith.constant 0 : i32
    return %c0_i32, %c0_i32_0 : i32, i32
  }
  func.func @transform_12(%arg0: i32) -> (i32, i32) {
    %c0_i32 = arith.constant 0 : i32
    %c0_i32_0 = arith.constant 0 : i32
    %c0_i32_1 = arith.constant 0 : i32
    return %c0_i32, %c0_i32_0 : i32, i32
  }
  func.func @transform_13(%arg0: i32) -> (i32, i32) {
    %c0_i32 = arith.constant 0 : i32
    %c0_i32_0 = arith.constant 0 : i32
    %c0_i32_1 = arith.constant 0 : i32
    return %c0_i32, %c0_i32_0 : i32, i32
  }
  func.func @transform_14(%arg0: i32) -> (i32, i32) {
    %c0_i32 = arith.constant 0 : i32
    %c0_i32_0 = arith.constant 0 : i32
    %c0_i32_1 = arith.constant 0 : i32
    return %c0_i32, %c0_i32_0 : i32, i32
  }
  func.func @transform_15(%arg0: i32) -> (i32, i32) {
    %c0_i32 = arith.constant 0 : i32
    %c0_i32_0 = arith.constant 0 : i32
    %c0_i32_1 = arith.constant 0 : i32
    return %c0_i32, %c0_i32_0 : i32, i32
  }
  func.func @transform_16(%arg0: i32) -> (i32, i32) {
    %c0_i32 = arith.constant 0 : i32
    %c0_i32_0 = arith.constant 0 : i32
    %c0_i32_1 = arith.constant 0 : i32
    return %c0_i32, %c0_i32_0 : i32, i32
  }
  func.func @transform_17(%arg0: i32) -> (i32, i32) {
    %c0_i32 = arith.constant 0 : i32
    %c0_i32_0 = arith.constant 0 : i32
    %c0_i32_1 = arith.constant 0 : i32
    return %c0_i32, %c0_i32_0 : i32, i32
  }
  func.func @transform_18(%arg0: i32) -> (i32, i32) {
    %c0_i32 = arith.constant 0 : i32
    %c0_i32_0 = arith.constant 0 : i32
    %c0_i32_1 = arith.constant 0 : i32
    return %c0_i32, %c0_i32_0 : i32, i32
  }
  func.func @transform_19(%arg0: i32) -> (i32, i32) {
    %c0_i32 = arith.constant 0 : i32
    %c0_i32_0 = arith.constant 0 : i32
    %c0_i32_1 = arith.constant 0 : i32
    return %c0_i32, %c0_i32_0 : i32, i32
  }
  func.func @transform_20(%arg0: i32) -> (i32, i32) {
    %c0_i32 = arith.constant 0 : i32
    %c0_i32_0 = arith.constant 0 : i32
    %c0_i32_1 = arith.constant 0 : i32
    return %c0_i32, %c0_i32_0 : i32, i32
  }
  func.func @transform_21(%arg0: i32) -> (i32, i32) {
    %c0_i32 = arith.constant 0 : i32
    %c0_i32_0 = arith.constant 0 : i32
    %c0_i32_1 = arith.constant 0 : i32
    return %c0_i32, %c0_i32_0 : i32, i32
  }
  func.func @transform_22(%arg0: i32) -> (i32, i32) {
    %c0_i32 = arith.constant 0 : i32
    %c0_i32_0 = arith.constant 0 : i32
    %c0_i32_1 = arith.constant 0 : i32
    return %c0_i32, %c0_i32_0 : i32, i32
  }
  func.func @transform_23(%arg0: i32) -> (i32, i32) {
    %c0_i32 = arith.constant 0 : i32
    %c0_i32_0 = arith.constant 0 : i32
    %c0_i32_1 = arith.constant 0 : i32
    return %c0_i32, %c0_i32_0 : i32, i32
  }
  func.func @transform_24(%arg0: i32) -> (i32, i32) {
    %c0_i32 = arith.constant 0 : i32
    %c0_i32_0 = arith.constant 0 : i32
    %c0_i32_1 = arith.constant 0 : i32
    return %c0_i32, %c0_i32_0 : i32, i32
  }
  func.func @transform_25(%arg0: i32) -> (i32, i32) {
    %c0_i32 = arith.constant 0 : i32
    %c0_i32_0 = arith.constant 0 : i32
    %c0_i32_1 = arith.constant 0 : i32
    return %c0_i32, %c0_i32_0 : i32, i32
  }
  func.func @transform_26(%arg0: i32) -> (i32, i32, i32) {
    %c0_i32 = arith.constant 0 : i32
    %c0_i32_0 = arith.constant 0 : i32
    %c0_i32_1 = arith.constant 0 : i32
    return %arg0, %c0_i32, %c0_i32_0 : i32, i32, i32
  }
}

</mosaic_0001>

<llo_original>
// kernel: strided_transformer_encoder.1
$region0: #{strided_transformer_encoder.1}
  #allocation0 [shape = 'u32[]', space=smem, size = 0x4, offset = 0x4, fixed_abs, tag = 'smem constant byte address 0x4 - core index']
  #allocation1 [shape = 'u32[144,128]{1,0:T(1,128)}', space=vmem, size = 0x12000, scoped, tag = 'internal scratch']
  #allocation2 [shape = 'f32[2,16,32]{2,1,0:T(8,128)}', space=vmem, size = 0x4000, scoped, tag = 'scratch operand']
  %s0 = inlined_call_operand.vmem [shape: f32[4,16,16], index: 0, kind: input, shape index: {}]
  %s1 = inlined_call_operand.hbm [shape: f32[16,32], index: 1, kind: input, shape index: {}]
  %s2 = inlined_call_operand.hbm [shape: f32[16,32], index: 2, kind: input, shape index: {}]
  %s3 = inlined_call_operand.hbm [shape: f32[1,32], index: 3, kind: input, shape index: {}]
  %s4 = inlined_call_operand.vmem [shape: f32[32,96], index: 4, kind: input, shape index: {}]
  %s5 = inlined_call_operand.hbm [shape: f32[1,96], index: 5, kind: input, shape index: {}]
  %s6 = inlined_call_operand.vmem [shape: f32[32,32], index: 6, kind: input, shape index: {}]
  %s7 = inlined_call_operand.hbm [shape: f32[1,32], index: 7, kind: input, shape index: {}]
  %s8 = inlined_call_operand.hbm [shape: f32[1,32], index: 8, kind: input, shape index: {}]
  %s9 = inlined_call_operand.hbm [shape: f32[1,32], index: 9, kind: input, shape index: {}]
  %s10 = inlined_call_operand.vmem [shape: f32[32,64], index: 10, kind: input, shape index: {}]
  %s11 = inlined_call_operand.vmem [shape: f32[64,32], index: 11, kind: input, shape index: {}]
  %s12 = inlined_call_operand.hbm [shape: f32[1,32], index: 12, kind: input, shape index: {}]
  %s13 = inlined_call_operand.hbm [shape: f32[1,32], index: 13, kind: input, shape index: {}]
  %s14 = inlined_call_operand.hbm [shape: f32[32,96], index: 14, kind: input, shape index: {}]
  %s15 = inlined_call_operand.hbm [shape: f32[1,96], index: 15, kind: input, shape index: {}]
  %s16 = inlined_call_operand.hbm [shape: f32[32,32], index: 16, kind: input, shape index: {}]
  %s17 = inlined_call_operand.hbm [shape: f32[1,32], index: 17, kind: input, shape index: {}]
  %s18 = inlined_call_operand.vmem [shape: f32[1,32], index: 18, kind: input, shape index: {}]
  %s19 = inlined_call_operand.vmem [shape: f32[1,32], index: 19, kind: input, shape index: {}]
  %s20 = inlined_call_operand.vmem [shape: f32[32,64], index: 20, kind: input, shape index: {}]
  %s21 = inlined_call_operand.vmem [shape: f32[64,32], index: 21, kind: input, shape index: {}]
  %s22 = inlined_call_operand.vmem [shape: f32[1,32], index: 22, kind: input, shape index: {}]
  %s23 = inlined_call_operand.vmem [shape: f32[1,32], index: 23, kind: input, shape index: {}]
  %s24 = inlined_call_operand.hbm [shape: f32[32,128], index: 24, kind: input, shape index: {}]
  %s25 = inlined_call_operand.vmem [shape: f32[1,128], index: 25, kind: input, shape index: {}]
  %s26 = inlined_call_operand.hbm [shape: f32[4,4,128], index: 26, kind: output, shape index: {}]
  %s27 = sld [smem:[#allocation0]]
  $region193: #{strided_transformer_encoder.1} parent=0
    _
  %s29 = ssub.s32 1, %s27
  %s30 = scalar_select 0, %s29, %s27
  $region1: #{strided_transformer_encoder.1} parent=0
    #allocation3 [shape = 'u8[8192]{0}', space=vmem, size = 0x2000, scoped, tag = 'input window, operand 1, single buffered']
    #allocation4 [shape = 's32[2]{0}', space=sflag, size = 0x8, scoped, tag = 'scoped memory for strided_transformer_encoder.1']
    #allocation5 [shape = 's32[2]{0}', space=sflag, size = 0x8, scoped, tag = 'scoped memory for strided_transformer_encoder.1']
    #allocation6 [shape = 'u8[8192]{0}', space=vmem, size = 0x2000, scoped, tag = 'input window, operand 2, single buffered']
    #allocation7 [shape = 's32[1]{0}', space=sflag, size = 0x4, scoped, tag = 'scoped memory for strided_transformer_encoder.1']
    #allocation8 [shape = 'u8[512]{0}', space=vmem, size = 0x400, scoped, tag = 'input window, operand 3, single buffered']
    #allocation9 [shape = 'u8[512]{0}', space=vmem, size = 0x400, scoped, tag = 'input window, operand 5, single buffered']
    #allocation10 [shape = 's32[1]{0}', space=sflag, size = 0x4, scoped, tag = 'scoped memory for strided_transformer_encoder.1']
    #allocation11 [shape = 'u8[512]{0}', space=vmem, size = 0x400, scoped, tag = 'input window, operand 7, single buffered']
    #allocation12 [shape = 'u8[512]{0}', space=vmem, size = 0x400, scoped, tag = 'input window, operand 8, single buffered']
    #allocation13 [shape = 's32[1]{0}', space=sflag, size = 0x4, scoped, tag = 'scoped memory for strided_transformer_encoder.1']
    #allocation14 [shape = 'u8[512]{0}', space=vmem, size = 0x400, scoped, tag = 'input window, operand 9, single buffered']
    #allocation15 [shape = 'u8[512]{0}', space=vmem, size = 0x400, scoped, tag = 'input window, operand 12, single buffered']
    #allocation16 [shape = 's32[1]{0}', space=sflag, size = 0x4, scoped, tag = 'scoped memory for strided_transformer_encoder.1']
    #allocation17 [shape = 'u8[512]{0}', space=vmem, size = 0x400, scoped, tag = 'input window, operand 13, single buffered']
    #allocation18 [shape = 'u8[16384]{0}', space=vmem, size = 0x4000, scoped, tag = 'input window, operand 14, single buffered']
    #allocation19 [shape = 's32[1]{0}', space=sflag, size = 0x4, scoped, tag = 'scoped memory for strided_transformer_encoder.1']
    #allocation20 [shape = 'u8[512]{0}', space=vmem, size = 0x400, scoped, tag = 'input window, operand 15, single buffered']
    #allocation21 [shape = 'u8[16384]{0}', space=vmem, size = 0x4000, scoped, tag = 'input window, operand 16, single buffered']
    #allocation22 [shape = 's32[1]{0}', space=sflag, size = 0x4, scoped, tag = 'scoped memory for strided_transformer_encoder.1']
    #allocation23 [shape = 'u8[512]{0}', space=vmem, size = 0x400, scoped, tag = 'input window, operand 17, single buffered']
    #allocation24 [shape = 'u8[16384]{0}', space=vmem, size = 0x4000, scoped, tag = 'input window, operand 24, single buffered']
    #allocation25 [shape = 's32[1]{0}', space=sflag, size = 0x4, scoped, tag = 'scoped memory for strided_transformer_encoder.1']
    #allocation26 [shape = 'u8[8192]{0}', space=vmem, size = 0x2000, scoped, tag = 'output window, operand 0']
    %31 = vsyncpa [#allocation4], 0
    %32 = vsyncpa [#allocation7], 0
    %33 = vsyncpa [#allocation10], 0
    %34 = vsyncpa [#allocation13], 0
    %35 = vsyncpa [#allocation16], 0
    %36 = vsyncpa [#allocation19], 0
    %37 = vsyncpa [#allocation22], 0
    %38 = vsyncpa [#allocation25], 0
    %39 = vsyncpa [#allocation5], 0
    %s40 = scalar_lea.sflag [#allocation5], 1
    %41 = vsyncpa %s40, 0
    loop: start=0, step=1, limit=4
    $region2: #{strided_transformer_encoder.1} parent=1 // loop_pre_header
      _
    $region3: #{strided_transformer_encoder.1} parent=1 // loop_header
      %s43 = sphi 0, %s47
      %p44 = scmp.ge.s32.totalorder %s43, 4
      %s53 = sphi 0, %s55
      %s56 = sphi 0, %s53
      %s57 = sphi 0, %s56
      %s73 = sphi 0, %s57
      %s77 = sphi 0, %s77
      %s79 = sphi 0, %s77
      %s80 = sphi 0, %s79
      %s94 = sphi 0, %s80
      %s98 = sphi 0, %s98
      %s100 = sphi 0, %s98
      %s101 = sphi 0, %s100
      %s115 = sphi 0, %s101
      %s119 = sphi 0, %s119
      %s121 = sphi 0, %s119
      %s122 = sphi 0, %s121
      %s136 = sphi 0, %s122
      %s140 = sphi 0, %s140
      %s142 = sphi 0, %s140
      %s143 = sphi 0, %s142
      %s157 = sphi 0, %s143
      %s161 = sphi 0, %s161
      %s163 = sphi 0, %s161
      %s164 = sphi 0, %s163
      %s178 = sphi 0, %s164
      %s182 = sphi 0, %s182
      %s184 = sphi 0, %s182
      %s185 = sphi 0, %s184
      %s199 = sphi 0, %s185
      %s203 = sphi 0, %s203
      %s205 = sphi 0, %s203
      %s206 = sphi 0, %s205
      %s220 = sphi 0, %s206
      %s224 = sphi 0, %s224
      %s226 = sphi 0, %s224
      %s227 = sphi 0, %s226
      %s241 = sphi 0, %s227
      %s245 = sphi 0, %s245
      %s247 = sphi 0, %s245
      %s248 = sphi 0, %s247
      %s262 = sphi 0, %s248
      %s266 = sphi 0, %s266
      %s268 = sphi 0, %s266
      %s269 = sphi 0, %s268
      %s283 = sphi 0, %s269
      %s287 = sphi 0, %s287
      %s289 = sphi 0, %s287
      %s290 = sphi 0, %s289
      %s304 = sphi 0, %s290
      %s308 = sphi 0, %s308
      %s310 = sphi 0, %s308
      %s311 = sphi 0, %s310
      %s325 = sphi 0, %s311
      %s329 = sphi 0, %s329
      %s331 = sphi 0, %s329
      %s332 = sphi 0, %s331
      %s346 = sphi 0, %s332
      %s350 = sphi 0, %s350
      %s352 = sphi 0, %s350
      %s353 = sphi 0, %s352
      %s367 = sphi 0, %s353
      %s371 = sphi 0, %s371
      %s373 = sphi 0, %s371
      %s374 = sphi 0, %s373
      %s388 = sphi 0, %s374
      %s392 = sphi 0, %s392
      %s394 = sphi 0, %s392
      %s395 = sphi 0, %s394
      %s409 = sphi 0, %s395
      %s413 = sphi 0, %s413
      %s415 = sphi 0, %s413
      %s416 = sphi 0, %s415
      %s430 = sphi 0, %s416
      %s434 = sphi 0, %s434
      %s436 = sphi 0, %s434
      %s437 = sphi 0, %s436
      %s451 = sphi 0, %s437
      %s455 = sphi 0, %s455
      %s457 = sphi 0, %s455
      %s458 = sphi 0, %s457
      %s472 = sphi 0, %s458
      %s476 = sphi 0, %s476
      %s478 = sphi 0, %s476
      %s479 = sphi 0, %s478
      %s493 = sphi 0, %s479
      %s497 = sphi 0, %s497
      %s499 = sphi 0, %s497
      %s500 = sphi 0, %s499
      %s514 = sphi 0, %s500
      %s518 = sphi 0, %s518
      %s520 = sphi 0, %s518
      %s521 = sphi 0, %s520
      %s535 = sphi 0, %s521
      %s539 = sphi 0, %s539
      %s541 = sphi 0, %s539
      %s542 = sphi 0, %s541
      %s556 = sphi 0, %s542
      %s560 = sphi 0, %s560
      %s562 = sphi 0, %s560
      %s563 = sphi 0, %s562
      %s577 = sphi 0, %s563
      %s581 = sphi 0, %s581
      %s583 = sphi 0, %s581
      %s584 = sphi 0, %s583
      %s598 = sphi 0, %s584
      %s604 = sphi 0, %s606
      %s607 = sphi 0, %s604
      %s608 = sphi 0, %s607
      %s624 = sphi 0, %s608
    $region4: #{strided_transformer_encoder.1} parent=1 // loop_header_branch
      %46 = sbr.rel (%p44) target = $region8
    $region5: #{strided_transformer_encoder.1} parent=1 // loop_body
      %s48 = ssub.s32 %s43, 1
      %s49 = ssub.s32 %s43, 2
      %s50 = sadd.s32 %s43, 1
      %s51 = ssub.s32 %s43, %s50
      %p52 = scmp.eq.s32.totalorder %s51, 0
      %s54 = sadd.s32 %s53, 1
      %s55 = scalar_select %p52, %s53, %s54
      %p58 = pneg %p52
      %p59 = scmp.eq.s32.totalorder %s43, 1
      %p60 = por %p58, %p59
      %p61 = scmp.ne.s32.totalorder %s53, %s56
      %p62 = scmp.eq.s32.totalorder %s43, 0
      %p63 = por %p61, %p62
      %p64 = scmp.ne.s32.totalorder %s53, %s56
      %p65 = scmp.eq.s32.totalorder %s48, 1
      %p66 = por %p64, %p65
      %p67 = scmp.ne.s32.totalorder %s56, %s57
      %p68 = scmp.eq.s32.totalorder %s48, 0
      %p69 = por %p67, %p68
      %p70 = scmp.ne.s32.totalorder %s56, %s57
      %p71 = scmp.eq.s32.totalorder %s49, 1
      %p72 = por %p70, %p71
      %p74 = scmp.ne.s32.totalorder %s57, %s73
      %p75 = scmp.eq.s32.totalorder %s49, 0
      %p76 = por %p74, %p75
      %s78 = sadd.s32 %s77, 1
      %p81 = scmp.eq.s32.totalorder %s43, 1
      %p82 = scmp.ne.s32.totalorder %s77, %s79
      %p83 = scmp.eq.s32.totalorder %s43, 0
      %p84 = por %p82, %p83
      %p85 = scmp.ne.s32.totalorder %s77, %s79
      %p86 = scmp.eq.s32.totalorder %s48, 1
      %p87 = por %p85, %p86
      %p88 = scmp.ne.s32.totalorder %s79, %s80
      %p89 = scmp.eq.s32.totalorder %s48, 0
      %p90 = por %p88, %p89
      %p91 = scmp.ne.s32.totalorder %s79, %s80
      %p92 = scmp.eq.s32.totalorder %s49, 1
      %p93 = por %p91, %p92
      %p95 = scmp.ne.s32.totalorder %s80, %s94
      %p96 = scmp.eq.s32.totalorder %s49, 0
      %p97 = por %p95, %p96
      %s99 = sadd.s32 %s98, 1
      %p102 = scmp.eq.s32.totalorder %s43, 1
      %p103 = scmp.ne.s32.totalorder %s98, %s100
      %p104 = scmp.eq.s32.totalorder %s43, 0
      %p105 = por %p103, %p104
      %p106 = scmp.ne.s32.totalorder %s98, %s100
      %p107 = scmp.eq.s32.totalorder %s48, 1
      %p108 = por %p106, %p107
      %p109 = scmp.ne.s32.totalorder %s100, %s101
      %p110 = scmp.eq.s32.totalorder %s48, 0
      %p111 = por %p109, %p110
      %p112 = scmp.ne.s32.totalorder %s100, %s101
      %p113 = scmp.eq.s32.totalorder %s49, 1
      %p114 = por %p112, %p113
      %p116 = scmp.ne.s32.totalorder %s101, %s115
      %p117 = scmp.eq.s32.totalorder %s49, 0
      %p118 = por %p116, %p117
      %s120 = sadd.s32 %s119, 1
      %p123 = scmp.eq.s32.totalorder %s43, 1
      %p124 = scmp.ne.s32.totalorder %s119, %s121
      %p125 = scmp.eq.s32.totalorder %s43, 0
      %p126 = por %p124, %p125
      %p127 = scmp.ne.s32.totalorder %s119, %s121
      %p128 = scmp.eq.s32.totalorder %s48, 1
      %p129 = por %p127, %p128
      %p130 = scmp.ne.s32.totalorder %s121, %s122
      %p131 = scmp.eq.s32.totalorder %s48, 0
      %p132 = por %p130, %p131
      %p133 = scmp.ne.s32.totalorder %s121, %s122
      %p134 = scmp.eq.s32.totalorder %s49, 1
      %p135 = por %p133, %p134
      %p137 = scmp.ne.s32.totalorder %s122, %s136
      %p138 = scmp.eq.s32.totalorder %s49, 0
      %p139 = por %p137, %p138
      %s141 = sadd.s32 %s140, 1
      %p144 = scmp.eq.s32.totalorder %s43, 1
      %p145 = scmp.ne.s32.totalorder %s140, %s142
      %p146 = scmp.eq.s32.totalorder %s43, 0
      %p147 = por %p145, %p146
      %p148 = scmp.ne.s32.totalorder %s140, %s142
      %p149 = scmp.eq.s32.totalorder %s48, 1
      %p150 = por %p148, %p149
      %p151 = scmp.ne.s32.totalorder %s142, %s143
      %p152 = scmp.eq.s32.totalorder %s48, 0
      %p153 = por %p151, %p152
      %p154 = scmp.ne.s32.totalorder %s142, %s143
      %p155 = scmp.eq.s32.totalorder %s49, 1
      %p156 = por %p154, %p155
      %p158 = scmp.ne.s32.totalorder %s143, %s157
      %p159 = scmp.eq.s32.totalorder %s49, 0
      %p160 = por %p158, %p159
      %s162 = sadd.s32 %s161, 1
      %p165 = scmp.eq.s32.totalorder %s43, 1
      %p166 = scmp.ne.s32.totalorder %s161, %s163
      %p167 = scmp.eq.s32.totalorder %s43, 0
      %p168 = por %p166, %p167
      %p169 = scmp.ne.s32.totalorder %s161, %s163
      %p170 = scmp.eq.s32.totalorder %s48, 1
      %p171 = por %p169, %p170
      %p172 = scmp.ne.s32.totalorder %s163, %s164
      %p173 = scmp.eq.s32.totalorder %s48, 0
      %p174 = por %p172, %p173
      %p175 = scmp.ne.s32.totalorder %s163, %s164
      %p176 = scmp.eq.s32.totalorder %s49, 1
      %p177 = por %p175, %p176
      %p179 = scmp.ne.s32.totalorder %s164, %s178
      %p180 = scmp.eq.s32.totalorder %s49, 0
      %p181 = por %p179, %p180
      %s183 = sadd.s32 %s182, 1
      %p186 = scmp.eq.s32.totalorder %s43, 1
      %p187 = scmp.ne.s32.totalorder %s182, %s184
      %p188 = scmp.eq.s32.totalorder %s43, 0
      %p189 = por %p187, %p188
      %p190 = scmp.ne.s32.totalorder %s182, %s184
      %p191 = scmp.eq.s32.totalorder %s48, 1
      %p192 = por %p190, %p191
      %p193 = scmp.ne.s32.totalorder %s184, %s185
      %p194 = scmp.eq.s32.totalorder %s48, 0
      %p195 = por %p193, %p194
      %p196 = scmp.ne.s32.totalorder %s184, %s185
      %p197 = scmp.eq.s32.totalorder %s49, 1
      %p198 = por %p196, %p197
      %p200 = scmp.ne.s32.totalorder %s185, %s199
      %p201 = scmp.eq.s32.totalorder %s49, 0
      %p202 = por %p200, %p201
      %s204 = sadd.s32 %s203, 1
      %p207 = scmp.eq.s32.totalorder %s43, 1
      %p208 = scmp.ne.s32.totalorder %s203, %s205
      %p209 = scmp.eq.s32.totalorder %s43, 0
      %p210 = por %p208, %p209
      %p211 = scmp.ne.s32.totalorder %s203, %s205
      %p212 = scmp.eq.s32.totalorder %s48, 1
      %p213 = por %p211, %p212
      %p214 = scmp.ne.s32.totalorder %s205, %s206
      %p215 = scmp.eq.s32.totalorder %s48, 0
      %p216 = por %p214, %p215
      %p217 = scmp.ne.s32.totalorder %s205, %s206
      %p218 = scmp.eq.s32.totalorder %s49, 1
      %p219 = por %p217, %p218
      %p221 = scmp.ne.s32.totalorder %s206, %s220
      %p222 = scmp.eq.s32.totalorder %s49, 0
      %p223 = por %p221, %p222
      %s225 = sadd.s32 %s224, 1
      %p228 = scmp.eq.s32.totalorder %s43, 1
      %p229 = scmp.ne.s32.totalorder %s224, %s226
      %p230 = scmp.eq.s32.totalorder %s43, 0
      %p231 = por %p229, %p230
      %p232 = scmp.ne.s32.totalorder %s224, %s226
      %p233 = scmp.eq.s32.totalorder %s48, 1
      %p234 = por %p232, %p233
      %p235 = scmp.ne.s32.totalorder %s226, %s227
      %p236 = scmp.eq.s32.totalorder %s48, 0
      %p237 = por %p235, %p236
      %p238 = scmp.ne.s32.totalorder %s226, %s227
      %p239 = scmp.eq.s32.totalorder %s49, 1
      %p240 = por %p238, %p239
      %p242 = scmp.ne.s32.totalorder %s227, %s241
      %p243 = scmp.eq.s32.totalorder %s49, 0
      %p244 = por %p242, %p243
      %s246 = sadd.s32 %s245, 1
      %p249 = scmp.eq.s32.totalorder %s43, 1
      %p250 = scmp.ne.s32.totalorder %s245, %s247
      %p251 = scmp.eq.s32.totalorder %s43, 0
      %p252 = por %p250, %p251
      %p253 = scmp.ne.s32.totalorder %s245, %s247
      %p254 = scmp.eq.s32.totalorder %s48, 1
      %p255 = por %p253, %p254
      %p256 = scmp.ne.s32.totalorder %s247, %s248
      %p257 = scmp.eq.s32.totalorder %s48, 0
      %p258 = por %p256, %p257
      %p259 = scmp.ne.s32.totalorder %s247, %s248
      %p260 = scmp.eq.s32.totalorder %s49, 1
      %p261 = por %p259, %p260
      %p263 = scmp.ne.s32.totalorder %s248, %s262
      %p264 = scmp.eq.s32.totalorder %s49, 0
      %p265 = por %p263, %p264
      %s267 = sadd.s32 %s266, 1
      %p270 = scmp.eq.s32.totalorder %s43, 1
      %p271 = scmp.ne.s32.totalorder %s266, %s268
      %p272 = scmp.eq.s32.totalorder %s43, 0
      %p273 = por %p271, %p272
      %p274 = scmp.ne.s32.totalorder %s266, %s268
      %p275 = scmp.eq.s32.totalorder %s48, 1
      %p276 = por %p274, %p275
      %p277 = scmp.ne.s32.totalorder %s268, %s269
      %p278 = scmp.eq.s32.totalorder %s48, 0
      %p279 = por %p277, %p278
      %p280 = scmp.ne.s32.totalorder %s268, %s269
      %p281 = scmp.eq.s32.totalorder %s49, 1
      %p282 = por %p280, %p281
      %p284 = scmp.ne.s32.totalorder %s269, %s283
      %p285 = scmp.eq.s32.totalorder %s49, 0
      %p286 = por %p284, %p285
      %s288 = sadd.s32 %s287, 1
      %p291 = scmp.eq.s32.totalorder %s43, 1
      %p292 = scmp.ne.s32.totalorder %s287, %s289
      %p293 = scmp.eq.s32.totalorder %s43, 0
      %p294 = por %p292, %p293
      %p295 = scmp.ne.s32.totalorder %s287, %s289
      %p296 = scmp.eq.s32.totalorder %s48, 1
      %p297 = por %p295, %p296
      %p298 = scmp.ne.s32.totalorder %s289, %s290
      %p299 = scmp.eq.s32.totalorder %s48, 0
      %p300 = por %p298, %p299
      %p301 = scmp.ne.s32.totalorder %s289, %s290
      %p302 = scmp.eq.s32.totalorder %s49, 1
      %p303 = por %p301, %p302
      %p305 = scmp.ne.s32.totalorder %s290, %s304
      %p306 = scmp.eq.s32.totalorder %s49, 0
      %p307 = por %p305, %p306
      %s309 = sadd.s32 %s308, 1
      %p312 = scmp.eq.s32.totalorder %s43, 1
      %p313 = scmp.ne.s32.totalorder %s308, %s310
      %p314 = scmp.eq.s32.totalorder %s43, 0
      %p315 = por %p313, %p314
      %p316 = scmp.ne.s32.totalorder %s308, %s310
      %p317 = scmp.eq.s32.totalorder %s48, 1
      %p318 = por %p316, %p317
      %p319 = scmp.ne.s32.totalorder %s310, %s311
      %p320 = scmp.eq.s32.totalorder %s48, 0
      %p321 = por %p319, %p320
      %p322 = scmp.ne.s32.totalorder %s310, %s311
      %p323 = scmp.eq.s32.totalorder %s49, 1
      %p324 = por %p322, %p323
      %p326 = scmp.ne.s32.totalorder %s311, %s325
      %p327 = scmp.eq.s32.totalorder %s49, 0
      %p328 = por %p326, %p327
      %s330 = sadd.s32 %s329, 1
      %p333 = scmp.eq.s32.totalorder %s43, 1
      %p334 = scmp.ne.s32.totalorder %s329, %s331
      %p335 = scmp.eq.s32.totalorder %s43, 0
      %p336 = por %p334, %p335
      %p337 = scmp.ne.s32.totalorder %s329, %s331
      %p338 = scmp.eq.s32.totalorder %s48, 1
      %p339 = por %p337, %p338
      %p340 = scmp.ne.s32.totalorder %s331, %s332
      %p341 = scmp.eq.s32.totalorder %s48, 0
      %p342 = por %p340, %p341
      %p343 = scmp.ne.s32.totalorder %s331, %s332
      %p344 = scmp.eq.s32.totalorder %s49, 1
      %p345 = por %p343, %p344
      %p347 = scmp.ne.s32.totalorder %s332, %s346
      %p348 = scmp.eq.s32.totalorder %s49, 0
      %p349 = por %p347, %p348
      %s351 = sadd.s32 %s350, 1
      %p354 = scmp.eq.s32.totalorder %s43, 1
      %p355 = scmp.ne.s32.totalorder %s350, %s352
      %p356 = scmp.eq.s32.totalorder %s43, 0
      %p357 = por %p355, %p356
      %p358 = scmp.ne.s32.totalorder %s350, %s352
      %p359 = scmp.eq.s32.totalorder %s48, 1
      %p360 = por %p358, %p359
      %p361 = scmp.ne.s32.totalorder %s352, %s353
      %p362 = scmp.eq.s32.totalorder %s48, 0
      %p363 = por %p361, %p362
      %p364 = scmp.ne.s32.totalorder %s352, %s353
      %p365 = scmp.eq.s32.totalorder %s49, 1
      %p366 = por %p364, %p365
      %p368 = scmp.ne.s32.totalorder %s353, %s367
      %p369 = scmp.eq.s32.totalorder %s49, 0
      %p370 = por %p368, %p369
      %s372 = sadd.s32 %s371, 1
      %p375 = scmp.eq.s32.totalorder %s43, 1
      %p376 = scmp.ne.s32.totalorder %s371, %s373
      %p377 = scmp.eq.s32.totalorder %s43, 0
      %p378 = por %p376, %p377
      %p379 = scmp.ne.s32.totalorder %s371, %s373
      %p380 = scmp.eq.s32.totalorder %s48, 1
      %p381 = por %p379, %p380
      %p382 = scmp.ne.s32.totalorder %s373, %s374
      %p383 = scmp.eq.s32.totalorder %s48, 0
      %p384 = por %p382, %p383
      %p385 = scmp.ne.s32.totalorder %s373, %s374
      %p386 = scmp.eq.s32.totalorder %s49, 1
      %p387 = por %p385, %p386
      %p389 = scmp.ne.s32.totalorder %s374, %s388
      %p390 = scmp.eq.s32.totalorder %s49, 0
      %p391 = por %p389, %p390
      %s393 = sadd.s32 %s392, 1
      %p396 = scmp.eq.s32.totalorder %s43, 1
      %p397 = scmp.ne.s32.totalorder %s392, %s394
      %p398 = scmp.eq.s32.totalorder %s43, 0
      %p399 = por %p397, %p398
      %p400 = scmp.ne.s32.totalorder %s392, %s394
      %p401 = scmp.eq.s32.totalorder %s48, 1
      %p402 = por %p400, %p401
      %p403 = scmp.ne.s32.totalorder %s394, %s395
      %p404 = scmp.eq.s32.totalorder %s48, 0
      %p405 = por %p403, %p404
      %p406 = scmp.ne.s32.totalorder %s394, %s395
      %p407 = scmp.eq.s32.totalorder %s49, 1
      %p408 = por %p406, %p407
      %p410 = scmp.ne.s32.totalorder %s395, %s409
      %p411 = scmp.eq.s32.totalorder %s49, 0
      %p412 = por %p410, %p411
      %s414 = sadd.s32 %s413, 1
      %p417 = scmp.eq.s32.totalorder %s43, 1
      %p418 = scmp.ne.s32.totalorder %s413, %s415
      %p419 = scmp.eq.s32.totalorder %s43, 0
      %p420 = por %p418, %p419
      %p421 = scmp.ne.s32.totalorder %s413, %s415
      %p422 = scmp.eq.s32.totalorder %s48, 1
      %p423 = por %p421, %p422
      %p424 = scmp.ne.s32.totalorder %s415, %s416
      %p425 = scmp.eq.s32.totalorder %s48, 0
      %p426 = por %p424, %p425
      %p427 = scmp.ne.s32.totalorder %s415, %s416
      %p428 = scmp.eq.s32.totalorder %s49, 1
      %p429 = por %p427, %p428
      %p431 = scmp.ne.s32.totalorder %s416, %s430
      %p432 = scmp.eq.s32.totalorder %s49, 0
      %p433 = por %p431, %p432
      %s435 = sadd.s32 %s434, 1
      %p438 = scmp.eq.s32.totalorder %s43, 1
      %p439 = scmp.ne.s32.totalorder %s434, %s436
      %p440 = scmp.eq.s32.totalorder %s43, 0
      %p441 = por %p439, %p440
      %p442 = scmp.ne.s32.totalorder %s434, %s436
      %p443 = scmp.eq.s32.totalorder %s48, 1
      %p444 = por %p442, %p443
      %p445 = scmp.ne.s32.totalorder %s436, %s437
      %p446 = scmp.eq.s32.totalorder %s48, 0
      %p447 = por %p445, %p446
      %p448 = scmp.ne.s32.totalorder %s436, %s437
      %p449 = scmp.eq.s32.totalorder %s49, 1
      %p450 = por %p448, %p449
      %p452 = scmp.ne.s32.totalorder %s437, %s451
      %p453 = scmp.eq.s32.totalorder %s49, 0
      %p454 = por %p452, %p453
      %s456 = sadd.s32 %s455, 1
      %p459 = scmp.eq.s32.totalorder %s43, 1
      %p460 = scmp.ne.s32.totalorder %s455, %s457
      %p461 = scmp.eq.s32.totalorder %s43, 0
      %p462 = por %p460, %p461
      %p463 = scmp.ne.s32.totalorder %s455, %s457
      %p464 = scmp.eq.s32.totalorder %s48, 1
      %p465 = por %p463, %p464
      %p466 = scmp.ne.s32.totalorder %s457, %s458
      %p467 = scmp.eq.s32.totalorder %s48, 0
      %p468 = por %p466, %p467
      %p469 = scmp.ne.s32.totalorder %s457, %s458
      %p470 = scmp.eq.s32.totalorder %s49, 1
      %p471 = por %p469, %p470
      %p473 = scmp.ne.s32.totalorder %s458, %s472
      %p474 = scmp.eq.s32.totalorder %s49, 0
      %p475 = por %p473, %p474
      %s477 = sadd.s32 %s476, 1
      %p480 = scmp.eq.s32.totalorder %s43, 1
      %p481 = scmp.ne.s32.totalorder %s476, %s478
      %p482 = scmp.eq.s32.totalorder %s43, 0
      %p483 = por %p481, %p482
      %p484 = scmp.ne.s32.totalorder %s476, %s478
      %p485 = scmp.eq.s32.totalorder %s48, 1
      %p486 = por %p484, %p485
      %p487 = scmp.ne.s32.totalorder %s478, %s479
      %p488 = scmp.eq.s32.totalorder %s48, 0
      %p489 = por %p487, %p488
      %p490 = scmp.ne.s32.totalorder %s478, %s479
      %p491 = scmp.eq.s32.totalorder %s49, 1
      %p492 = por %p490, %p491
      %p494 = scmp.ne.s32.totalorder %s479, %s493
      %p495 = scmp.eq.s32.totalorder %s49, 0
      %p496 = por %p494, %p495
      %s498 = sadd.s32 %s497, 1
      %p501 = scmp.eq.s32.totalorder %s43, 1
      %p502 = scmp.ne.s32.totalorder %s497, %s499
      %p503 = scmp.eq.s32.totalorder %s43, 0
      %p504 = por %p502, %p503
      %p505 = scmp.ne.s32.totalorder %s497, %s499
      %p506 = scmp.eq.s32.totalorder %s48, 1
      %p507 = por %p505, %p506
      %p508 = scmp.ne.s32.totalorder %s499, %s500
      %p509 = scmp.eq.s32.totalorder %s48, 0
      %p510 = por %p508, %p509
      %p511 = scmp.ne.s32.totalorder %s499, %s500
      %p512 = scmp.eq.s32.totalorder %s49, 1
      %p513 = por %p511, %p512
      %p515 = scmp.ne.s32.totalorder %s500, %s514
      %p516 = scmp.eq.s32.totalorder %s49, 0
      %p517 = por %p515, %p516
      %s519 = sadd.s32 %s518, 1
      %p522 = scmp.eq.s32.totalorder %s43, 1
      %p523 = scmp.ne.s32.totalorder %s518, %s520
      %p524 = scmp.eq.s32.totalorder %s43, 0
      %p525 = por %p523, %p524
      %p526 = scmp.ne.s32.totalorder %s518, %s520
      %p527 = scmp.eq.s32.totalorder %s48, 1
      %p528 = por %p526, %p527
      %p529 = scmp.ne.s32.totalorder %s520, %s521
      %p530 = scmp.eq.s32.totalorder %s48, 0
      %p531 = por %p529, %p530
      %p532 = scmp.ne.s32.totalorder %s520, %s521
      %p533 = scmp.eq.s32.totalorder %s49, 1
      %p534 = por %p532, %p533
      %p536 = scmp.ne.s32.totalorder %s521, %s535
      %p537 = scmp.eq.s32.totalorder %s49, 0
      %p538 = por %p536, %p537
      %s540 = sadd.s32 %s539, 1
      %p543 = scmp.eq.s32.totalorder %s43, 1
      %p544 = scmp.ne.s32.totalorder %s539, %s541
      %p545 = scmp.eq.s32.totalorder %s43, 0
      %p546 = por %p544, %p545
      %p547 = scmp.ne.s32.totalorder %s539, %s541
      %p548 = scmp.eq.s32.totalorder %s48, 1
      %p549 = por %p547, %p548
      %p550 = scmp.ne.s32.totalorder %s541, %s542
      %p551 = scmp.eq.s32.totalorder %s48, 0
      %p552 = por %p550, %p551
      %p553 = scmp.ne.s32.totalorder %s541, %s542
      %p554 = scmp.eq.s32.totalorder %s49, 1
      %p555 = por %p553, %p554
      %p557 = scmp.ne.s32.totalorder %s542, %s556
      %p558 = scmp.eq.s32.totalorder %s49, 0
      %p559 = por %p557, %p558
      %s561 = sadd.s32 %s560, 1
      %p564 = scmp.eq.s32.totalorder %s43, 1
      %p565 = scmp.ne.s32.totalorder %s560, %s562
      %p566 = scmp.eq.s32.totalorder %s43, 0
      %p567 = por %p565, %p566
      %p568 = scmp.ne.s32.totalorder %s560, %s562
      %p569 = scmp.eq.s32.totalorder %s48, 1
      %p570 = por %p568, %p569
      %p571 = scmp.ne.s32.totalorder %s562, %s563
      %p572 = scmp.eq.s32.totalorder %s48, 0
      %p573 = por %p571, %p572
      %p574 = scmp.ne.s32.totalorder %s562, %s563
      %p575 = scmp.eq.s32.totalorder %s49, 1
      %p576 = por %p574, %p575
      %p578 = scmp.ne.s32.totalorder %s563, %s577
      %p579 = scmp.eq.s32.totalorder %s49, 0
      %p580 = por %p578, %p579
      %s582 = sadd.s32 %s581, 1
      %p585 = scmp.eq.s32.totalorder %s43, 1
      %p586 = scmp.ne.s32.totalorder %s581, %s583
      %p587 = scmp.eq.s32.totalorder %s43, 0
      %p588 = por %p586, %p587
      %p589 = scmp.ne.s32.totalorder %s581, %s583
      %p590 = scmp.eq.s32.totalorder %s48, 1
      %p591 = por %p589, %p590
      %p592 = scmp.ne.s32.totalorder %s583, %s584
      %p593 = scmp.eq.s32.totalorder %s48, 0
      %p594 = por %p592, %p593
      %p595 = scmp.ne.s32.totalorder %s583, %s584
      %p596 = scmp.eq.s32.totalorder %s49, 1
      %p597 = por %p595, %p596
      %p599 = scmp.ne.s32.totalorder %s584, %s598
      %p600 = scmp.eq.s32.totalorder %s49, 0
      %p601 = por %p599, %p600
      %s602 = ssub.s32 %s43, %s50
      %p603 = scmp.eq.s32.totalorder %s602, 0
      %s605 = sadd.s32 %s604, 1
      %s606 = scalar_select %p603, %s604, %s605
      %p609 = pneg %p603
      %p610 = scmp.eq.s32.totalorder %s43, 1
      %p611 = por %p609, %p610
      %p612 = scmp.ne.s32.totalorder %s604, %s607
      %p613 = scmp.eq.s32.totalorder %s43, 0
      %p614 = por %p612, %p613
      %p615 = scmp.ne.s32.totalorder %s604, %s607
      %p616 = scmp.eq.s32.totalorder %s48, 1
      %p617 = por %p615, %p616
      %p618 = scmp.ne.s32.totalorder %s607, %s608
      %p619 = scmp.eq.s32.totalorder %s48, 0
      %p620 = por %p618, %p619
      %p621 = scmp.ne.s32.totalorder %s607, %s608
      %p622 = scmp.eq.s32.totalorder %s49, 1
      %p623 = por %p621, %p622
      %p625 = scmp.ne.s32.totalorder %s608, %s624
      %p626 = scmp.eq.s32.totalorder %s49, 0
      %p627 = por %p625, %p626
      %p628 = scmp.le.s32.totalorder 1, %s43
      %p629 = scmp.lt.s32.totalorder %s43, 3
      %p630 = pnand %p628, %p629
      %p631 = pneg %p630
      // Predicated region
      $region9: #{strided_transformer_encoder.1} parent=5 // pred_check
        _
      $region10: #{strided_transformer_encoder.1} parent=5 // pred_check_branch
        %633 = sbr.rel (%p630) target = $region12
      $region11: #{strided_transformer_encoder.1} parent=5 // pred_region
        %s634 = ssub.s32 %s43, 1
        // Predicated region
        $region13: #{strided_transformer_encoder.1} parent=11 // pred_check
          %p635 = pneg %p90
        $region14: #{strided_transformer_encoder.1} parent=11 // pred_check_branch
          %637 = sbr.rel (%p635) target = $region16
        $region15: #{strided_transformer_encoder.1} parent=11 // pred_region
          %s639 = ssub.s32 256, 256
          %640 = vsyncadd [#allocation4], %s639
          %s641 = sshll.u32 [#allocation3], 4
          %s642 = int_to_ptr.vmem [resolvable:$true] %s641
          %647 = dma.hbm_to_vmem [thread:$0]  %s1, 256, %s642, [#allocation4], 128, 128, 8
        $region16: #{strided_transformer_encoder.1} parent=11 // pred_fallthru
          _
        // Predicated region
        $region17: #{strided_transformer_encoder.1} parent=11 // pred_check
          %p648 = pneg %p111
        $region18: #{strided_transformer_encoder.1} parent=11 // pred_check_branch
          %650 = sbr.rel (%p648) target = $region20
        $region19: #{strided_transformer_encoder.1} parent=11 // pred_region
          %s652 = ssub.s32 256, 256
          %653 = vsyncadd [#allocation7], %s652
          %s654 = sshll.u32 [#allocation6], 4
          %s655 = int_to_ptr.vmem [resolvable:$true] %s654
          %660 = dma.hbm_to_vmem [thread:$0]  %s2, 256, %s655, [#allocation7], 128, 128, 8
        $region20: #{strided_transformer_encoder.1} parent=11 // pred_fallthru
          _
        // Predicated region
        $region21: #{strided_transformer_encoder.1} parent=11 // pred_check
          %p661 = pneg %p132
        $region22: #{strided_transformer_encoder.1} parent=11 // pred_check_branch
          %663 = sbr.rel (%p661) target = $region24
        $region23: #{strided_transformer_encoder.1} parent=11 // pred_region
          %s665 = ssub.s32 16, 16
          %666 = vsyncadd [#allocation7], %s665
          %s668 = sshll.u32 [#allocation8], 4
          %s669 = int_to_ptr.vmem [resolvable:$true] %s668
          %671 = dma.hbm_to_vmem [thread:$0]  %s3, 16, %s669, [#allocation7]
        $region24: #{strided_transformer_encoder.1} parent=11 // pred_fallthru
          _
        // Predicated region
        $region25: #{strided_transformer_encoder.1} parent=11 // pred_check
          %p672 = pneg %p153
        $region26: #{strided_transformer_encoder.1} parent=11 // pred_check_branch
          %674 = sbr.rel (%p672) target = $region28
        $region27: #{strided_transformer_encoder.1} parent=11 // pred_region
          _
        $region28: #{strided_transformer_encoder.1} parent=11 // pred_fallthru
          _
        // Predicated region
        $region29: #{strided_transformer_encoder.1} parent=11 // pred_check
          %p675 = pneg %p174
        $region30: #{strided_transformer_encoder.1} parent=11 // pred_check_branch
          %677 = sbr.rel (%p675) target = $region32
        $region31: #{strided_transformer_encoder.1} parent=11 // pred_region
          %s679 = ssub.s32 16, 16
          %680 = vsyncadd [#allocation10], %s679
          %s682 = sshll.u32 [#allocation9], 4
          %s683 = int_to_ptr.vmem [resolvable:$true] %s682
          %685 = dma.hbm_to_vmem [thread:$0]  %s5, 16, %s683, [#allocation10]
        $region32: #{strided_transformer_encoder.1} parent=11 // pred_fallthru
          _
        // Predicated region
        $region33: #{strided_transformer_encoder.1} parent=11 // pred_check
          %p686 = pneg %p195
        $region34: #{strided_transformer_encoder.1} parent=11 // pred_check_branch
          %688 = sbr.rel (%p686) target = $region36
        $region35: #{strided_transformer_encoder.1} parent=11 // pred_region
          _
        $region36: #{strided_transformer_encoder.1} parent=11 // pred_fallthru
          _
        // Predicated region
        $region37: #{strided_transformer_encoder.1} parent=11 // pred_check
          %p689 = pneg %p216
        $region38: #{strided_transformer_encoder.1} parent=11 // pred_check_branch
          %691 = sbr.rel (%p689) target = $region40
        $region39: #{strided_transformer_encoder.1} parent=11 // pred_region
          %s693 = ssub.s32 16, 16
          %694 = vsyncadd [#allocation10], %s693
          %s696 = sshll.u32 [#allocation11], 4
          %s697 = int_to_ptr.vmem [resolvable:$true] %s696
          %699 = dma.hbm_to_vmem [thread:$0]  %s7, 16, %s697, [#allocation10]
        $region40: #{strided_transformer_encoder.1} parent=11 // pred_fallthru
          _
        // Predicated region
        $region41: #{strided_transformer_encoder.1} parent=11 // pred_check
          %p700 = pneg %p237
        $region42: #{strided_transformer_encoder.1} parent=11 // pred_check_branch
          %702 = sbr.rel (%p700) target = $region44
        $region43: #{strided_transformer_encoder.1} parent=11 // pred_region
          %s704 = ssub.s32 16, 16
          %705 = vsyncadd [#allocation13], %s704
          %s707 = sshll.u32 [#allocation12], 4
          %s708 = int_to_ptr.vmem [resolvable:$true] %s707
          %710 = dma.hbm_to_vmem [thread:$0]  %s8, 16, %s708, [#allocation13]
        $region44: #{strided_transformer_encoder.1} parent=11 // pred_fallthru
          _
        // Predicated region
        $region45: #{strided_transformer_encoder.1} parent=11 // pred_check
          %p711 = pneg %p258
        $region46: #{strided_transformer_encoder.1} parent=11 // pred_check_branch
          %713 = sbr.rel (%p711) target = $region48
        $region47: #{strided_transformer_encoder.1} parent=11 // pred_region
          %s715 = ssub.s32 16, 16
          %716 = vsyncadd [#allocation13], %s715
          %s718 = sshll.u32 [#allocation14], 4
          %s719 = int_to_ptr.vmem [resolvable:$true] %s718
          %721 = dma.hbm_to_vmem [thread:$0]  %s9, 16, %s719, [#allocation13]
        $region48: #{strided_transformer_encoder.1} parent=11 // pred_fallthru
          _
        // Predicated region
        $region49: #{strided_transformer_encoder.1} parent=11 // pred_check
          %p722 = pneg %p279
        $region50: #{strided_transformer_encoder.1} parent=11 // pred_check_branch
          %724 = sbr.rel (%p722) target = $region52
        $region51: #{strided_transformer_encoder.1} parent=11 // pred_region
          _
        $region52: #{strided_transformer_encoder.1} parent=11 // pred_fallthru
          _
        // Predicated region
        $region53: #{strided_transformer_encoder.1} parent=11 // pred_check
          %p725 = pneg %p300
        $region54: #{strided_transformer_encoder.1} parent=11 // pred_check_branch
          %727 = sbr.rel (%p725) target = $region56
        $region55: #{strided_transformer_encoder.1} parent=11 // pred_region
          _
        $region56: #{strided_transformer_encoder.1} parent=11 // pred_fallthru
          _
        // Predicated region
        $region57: #{strided_transformer_encoder.1} parent=11 // pred_check
          %p728 = pneg %p321
        $region58: #{strided_transformer_encoder.1} parent=11 // pred_check_branch
          %730 = sbr.rel (%p728) target = $region60
        $region59: #{strided_transformer_encoder.1} parent=11 // pred_region
          %s732 = ssub.s32 16, 16
          %733 = vsyncadd [#allocation16], %s732
          %s735 = sshll.u32 [#allocation15], 4
          %s736 = int_to_ptr.vmem [resolvable:$true] %s735
          %738 = dma.hbm_to_vmem [thread:$0]  %s12, 16, %s736, [#allocation16]
        $region60: #{strided_transformer_encoder.1} parent=11 // pred_fallthru
          _
        // Predicated region
        $region61: #{strided_transformer_encoder.1} parent=11 // pred_check
          %p739 = pneg %p342
        $region62: #{strided_transformer_encoder.1} parent=11 // pred_check_branch
          %741 = sbr.rel (%p739) target = $region64
        $region63: #{strided_transformer_encoder.1} parent=11 // pred_region
          %s743 = ssub.s32 16, 16
          %744 = vsyncadd [#allocation16], %s743
          %s746 = sshll.u32 [#allocation17], 4
          %s747 = int_to_ptr.vmem [resolvable:$true] %s746
          %749 = dma.hbm_to_vmem [thread:$0]  %s13, 16, %s747, [#allocation16]
        $region64: #{strided_transformer_encoder.1} parent=11 // pred_fallthru
          _
        // Predicated region
        $region65: #{strided_transformer_encoder.1} parent=11 // pred_check
          %p750 = pneg %p363
        $region66: #{strided_transformer_encoder.1} parent=11 // pred_check_branch
          %752 = sbr.rel (%p750) target = $region68
        $region67: #{strided_transformer_encoder.1} parent=11 // pred_region
          %s754 = ssub.s32 512, 512
          %755 = vsyncadd [#allocation19], %s754
          %s756 = sshll.u32 [#allocation18], 4
          %s757 = int_to_ptr.vmem [resolvable:$true] %s756
          %762 = dma.hbm_to_vmem [thread:$0]  %s14, 512, %s757, [#allocation19], 128, 128, 8
        $region68: #{strided_transformer_encoder.1} parent=11 // pred_fallthru
          _
        // Predicated region
        $region69: #{strided_transformer_encoder.1} parent=11 // pred_check
          %p763 = pneg %p384
        $region70: #{strided_transformer_encoder.1} parent=11 // pred_check_branch
          %765 = sbr.rel (%p763) target = $region72
        $region71: #{strided_transformer_encoder.1} parent=11 // pred_region
          %s767 = ssub.s32 16, 16
          %768 = vsyncadd [#allocation19], %s767
          %s770 = sshll.u32 [#allocation20], 4
          %s771 = int_to_ptr.vmem [resolvable:$true] %s770
          %773 = dma.hbm_to_vmem [thread:$0]  %s15, 16, %s771, [#allocation19]
        $region72: #{strided_transformer_encoder.1} parent=11 // pred_fallthru
          _
        // Predicated region
        $region73: #{strided_transformer_encoder.1} parent=11 // pred_check
          %p774 = pneg %p405
        $region74: #{strided_transformer_encoder.1} parent=11 // pred_check_branch
          %776 = sbr.rel (%p774) target = $region76
        $region75: #{strided_transformer_encoder.1} parent=11 // pred_region
          %s778 = ssub.s32 512, 512
          %779 = vsyncadd [#allocation22], %s778
          %s780 = sshll.u32 [#allocation21], 4
          %s781 = int_to_ptr.vmem [resolvable:$true] %s780
          %786 = dma.hbm_to_vmem [thread:$0]  %s16, 512, %s781, [#allocation22], 128, 128, 8
        $region76: #{strided_transformer_encoder.1} parent=11 // pred_fallthru
          _
        // Predicated region
        $region77: #{strided_transformer_encoder.1} parent=11 // pred_check
          %p787 = pneg %p426
        $region78: #{strided_transformer_encoder.1} parent=11 // pred_check_branch
          %789 = sbr.rel (%p787) target = $region80
        $region79: #{strided_transformer_encoder.1} parent=11 // pred_region
          %s791 = ssub.s32 16, 16
          %792 = vsyncadd [#allocation22], %s791
          %s794 = sshll.u32 [#allocation23], 4
          %s795 = int_to_ptr.vmem [resolvable:$true] %s794
          %797 = dma.hbm_to_vmem [thread:$0]  %s17, 16, %s795, [#allocation22]
        $region80: #{strided_transformer_encoder.1} parent=11 // pred_fallthru
          _
        // Predicated region
        $region81: #{strided_transformer_encoder.1} parent=11 // pred_check
          %p798 = pneg %p447
        $region82: #{strided_transformer_encoder.1} parent=11 // pred_check_branch
          %800 = sbr.rel (%p798) target = $region84
        $region83: #{strided_transformer_encoder.1} parent=11 // pred_region
          _
        $region84: #{strided_transformer_encoder.1} parent=11 // pred_fallthru
          _
        // Predicated region
        $region85: #{strided_transformer_encoder.1} parent=11 // pred_check
          %p801 = pneg %p468
        $region86: #{strided_transformer_encoder.1} parent=11 // pred_check_branch
          %803 = sbr.rel (%p801) target = $region88
        $region87: #{strided_transformer_encoder.1} parent=11 // pred_region
          _
        $region88: #{strided_transformer_encoder.1} parent=11 // pred_fallthru
          _
        // Predicated region
        $region89: #{strided_transformer_encoder.1} parent=11 // pred_check
          %p804 = pneg %p489
        $region90: #{strided_transformer_encoder.1} parent=11 // pred_check_branch
          %806 = sbr.rel (%p804) target = $region92
        $region91: #{strided_transformer_encoder.1} parent=11 // pred_region
          _
        $region92: #{strided_transformer_encoder.1} parent=11 // pred_fallthru
          _
        // Predicated region
        $region93: #{strided_transformer_encoder.1} parent=11 // pred_check
          %p807 = pneg %p510
        $region94: #{strided_transformer_encoder.1} parent=11 // pred_check_branch
          %809 = sbr.rel (%p807) target = $region96
        $region95: #{strided_transformer_encoder.1} parent=11 // pred_region
          _
        $region96: #{strided_transformer_encoder.1} parent=11 // pred_fallthru
          _
        // Predicated region
        $region97: #{strided_transformer_encoder.1} parent=11 // pred_check
          %p810 = pneg %p531
        $region98: #{strided_transformer_encoder.1} parent=11 // pred_check_branch
          %812 = sbr.rel (%p810) target = $region100
        $region99: #{strided_transformer_encoder.1} parent=11 // pred_region
          _
        $region100: #{strided_transformer_encoder.1} parent=11 // pred_fallthru
          _
        // Predicated region
        $region101: #{strided_transformer_encoder.1} parent=11 // pred_check
          %p813 = pneg %p552
        $region102: #{strided_transformer_encoder.1} parent=11 // pred_check_branch
          %815 = sbr.rel (%p813) target = $region104
        $region103: #{strided_transformer_encoder.1} parent=11 // pred_region
          _
        $region104: #{strided_transformer_encoder.1} parent=11 // pred_fallthru
          _
        // Predicated region
        $region105: #{strided_transformer_encoder.1} parent=11 // pred_check
          %p816 = pneg %p573
        $region106: #{strided_transformer_encoder.1} parent=11 // pred_check_branch
          %818 = sbr.rel (%p816) target = $region108
        $region107: #{strided_transformer_encoder.1} parent=11 // pred_region
          %s820 = ssub.s32 512, 512
          %821 = vsyncadd [#allocation25], %s820
          %s822 = sshll.u32 [#allocation24], 4
          %s823 = int_to_ptr.vmem [resolvable:$true] %s822
          %828 = dma.hbm_to_vmem [thread:$0]  %s24, 512, %s823, [#allocation25], 128, 128, 8
        $region108: #{strided_transformer_encoder.1} parent=11 // pred_fallthru
          _
        // Predicated region
        $region109: #{strided_transformer_encoder.1} parent=11 // pred_check
          %p829 = pneg %p594
        $region110: #{strided_transformer_encoder.1} parent=11 // pred_check_branch
          %831 = sbr.rel (%p829) target = $region112
        $region111: #{strided_transformer_encoder.1} parent=11 // pred_region
          _
        $region112: #{strided_transformer_encoder.1} parent=11 // pred_fallthru
          _
      $region12: #{strided_transformer_encoder.1} parent=5 // pred_fallthru
        _
      %p832 = scmp.lt.s32.totalorder %s43, 2
      // Predicated region
      $region113: #{strided_transformer_encoder.1} parent=5 // pred_check
        %p833 = pneg %p832
      $region114: #{strided_transformer_encoder.1} parent=5 // pred_check_branch
        %835 = sbr.rel (%p833) target = $region116
      $region115: #{strided_transformer_encoder.1} parent=5 // pred_region
        // Predicated region
        $region117: #{strided_transformer_encoder.1} parent=115 // pred_check
          %p836 = pneg %p63
        $region118: #{strided_transformer_encoder.1} parent=115 // pred_check_branch
          %838 = sbr.rel (%p836) target = $region120
        $region119: #{strided_transformer_encoder.1} parent=115 // pred_region
          %s839 = smul.u32 2, %s43
          %p840 = scmp.lt.s32.totalorder %s839, 3
          %s841 = scalar_select %p840, %s839, 3
          %s842 = smul.addr %s841, 2
          %s843 = smul.addr %s842, 8
          %s844 = scalar_lea.vmem %s0, %s843
          %s845 = smul.u32 2, %s43
        $region120: #{strided_transformer_encoder.1} parent=115 // pred_fallthru
          _
      $region116: #{strided_transformer_encoder.1} parent=5 // pred_fallthru
        _
      %p846 = scmp.le.s32.totalorder 1, %s43
      %p847 = scmp.lt.s32.totalorder %s43, 3
      %p848 = pnand %p846, %p847
      %p849 = pneg %p848
      // Predicated region
      $region121: #{strided_transformer_encoder.1} parent=5 // pred_check
        _
      $region122: #{strided_transformer_encoder.1} parent=5 // pred_check_branch
        %851 = sbr.rel (%p848) target = $region124
      $region123: #{strided_transformer_encoder.1} parent=5 // pred_region
        %s852 = ssub.s32 %s43, 1
        // Predicated region
        $region125: #{strided_transformer_encoder.1} parent=123 // pred_check
          %p853 = pneg %p90
        $region126: #{strided_transformer_encoder.1} parent=123 // pred_check_branch
          %855 = sbr.rel (%p853) target = $region128
        $region127: #{strided_transformer_encoder.1} parent=123 // pred_region
          %856 = dma.done [#allocation4], 256
        $region128: #{strided_transformer_encoder.1} parent=123 // pred_fallthru
          _
        // Predicated region
        $region129: #{strided_transformer_encoder.1} parent=123 // pred_check
          %p857 = pneg %p111
        $region130: #{strided_transformer_encoder.1} parent=123 // pred_check_branch
          %859 = sbr.rel (%p857) target = $region132
        $region131: #{strided_transformer_encoder.1} parent=123 // pred_region
          %860 = dma.done [#allocation7], 256
        $region132: #{strided_transformer_encoder.1} parent=123 // pred_fallthru
          _
        // Predicated region
        $region133: #{strided_transformer_encoder.1} parent=123 // pred_check
          %p861 = pneg %p132
        $region134: #{strided_transformer_encoder.1} parent=123 // pred_check_branch
          %863 = sbr.rel (%p861) target = $region136
        $region135: #{strided_transformer_encoder.1} parent=123 // pred_region
          %864 = dma.done [#allocation7], 16
        $region136: #{strided_transformer_encoder.1} parent=123 // pred_fallthru
          _
        // Predicated region
        $region137: #{strided_transformer_encoder.1} parent=123 // pred_check
          %p865 = pneg %p174
        $region138: #{strided_transformer_encoder.1} parent=123 // pred_check_branch
          %867 = sbr.rel (%p865) target = $region140
        $region139: #{strided_transformer_encoder.1} parent=123 // pred_region
          %868 = dma.done [#allocation10], 16
        $region140: #{strided_transformer_encoder.1} parent=123 // pred_fallthru
          _
        // Predicated region
        $region141: #{strided_transformer_encoder.1} parent=123 // pred_check
          %p869 = pneg %p216
        $region142: #{strided_transformer_encoder.1} parent=123 // pred_check_branch
          %871 = sbr.rel (%p869) target = $region144
        $region143: #{strided_transformer_encoder.1} parent=123 // pred_region
          %872 = dma.done [#allocation10], 16
        $region144: #{strided_transformer_encoder.1} parent=123 // pred_fallthru
          _
        // Predicated region
        $region145: #{strided_transformer_encoder.1} parent=123 // pred_check
          %p873 = pneg %p237
        $region146: #{strided_transformer_encoder.1} parent=123 // pred_check_branch
          %875 = sbr.rel (%p873) target = $region148
        $region147: #{strided_transformer_encoder.1} parent=123 // pred_region
          %876 = dma.done [#allocation13], 16
        $region148: #{strided_transformer_encoder.1} parent=123 // pred_fallthru
          _
        // Predicated region
        $region149: #{strided_transformer_encoder.1} parent=123 // pred_check
          %p877 = pneg %p258
        $region150: #{strided_transformer_encoder.1} parent=123 // pred_check_branch
          %879 = sbr.rel (%p877) target = $region152
        $region151: #{strided_transformer_encoder.1} parent=123 // pred_region
          %880 = dma.done [#allocation13], 16
        $region152: #{strided_transformer_encoder.1} parent=123 // pred_fallthru
          _
        // Predicated region
        $region153: #{strided_transformer_encoder.1} parent=123 // pred_check
          %p881 = pneg %p321
        $region154: #{strided_transformer_encoder.1} parent=123 // pred_check_branch
          %883 = sbr.rel (%p881) target = $region156
        $region155: #{strided_transformer_encoder.1} parent=123 // pred_region
          %884 = dma.done [#allocation16], 16
        $region156: #{strided_transformer_encoder.1} parent=123 // pred_fallthru
          _
        // Predicated region
        $region157: #{strided_transformer_encoder.1} parent=123 // pred_check
          %p885 = pneg %p342
        $region158: #{strided_transformer_encoder.1} parent=123 // pred_check_branch
          %887 = sbr.rel (%p885) target = $region160
        $region159: #{strided_transformer_encoder.1} parent=123 // pred_region
          %888 = dma.done [#allocation16], 16
        $region160: #{strided_transformer_encoder.1} parent=123 // pred_fallthru
          _
        // Predicated region
        $region161: #{strided_transformer_encoder.1} parent=123 // pred_check
          %p889 = pneg %p363
        $region162: #{strided_transformer_encoder.1} parent=123 // pred_check_branch
          %891 = sbr.rel (%p889) target = $region164
        $region163: #{strided_transformer_encoder.1} parent=123 // pred_region
          %892 = dma.done [#allocation19], 512
        $region164: #{strided_transformer_encoder.1} parent=123 // pred_fallthru
          _
        // Predicated region
        $region165: #{strided_transformer_encoder.1} parent=123 // pred_check
          %p893 = pneg %p384
        $region166: #{strided_transformer_encoder.1} parent=123 // pred_check_branch
          %895 = sbr.rel (%p893) target = $region168
        $region167: #{strided_transformer_encoder.1} parent=123 // pred_region
          %896 = dma.done [#allocation19], 16
        $region168: #{strided_transformer_encoder.1} parent=123 // pred_fallthru
          _
        // Predicated region
        $region169: #{strided_transformer_encoder.1} parent=123 // pred_check
          %p897 = pneg %p405
        $region170: #{strided_transformer_encoder.1} parent=123 // pred_check_branch
          %899 = sbr.rel (%p897) target = $region172
        $region171: #{strided_transformer_encoder.1} parent=123 // pred_region
          %900 = dma.done [#allocation22], 512
        $region172: #{strided_transformer_encoder.1} parent=123 // pred_fallthru
          _
        // Predicated region
        $region173: #{strided_transformer_encoder.1} parent=123 // pred_check
          %p901 = pneg %p426
        $region174: #{strided_transformer_encoder.1} parent=123 // pred_check_branch
          %903 = sbr.rel (%p901) target = $region176
        $region175: #{strided_transformer_encoder.1} parent=123 // pred_region
          %904 = dma.done [#allocation22], 16
        $region176: #{strided_transformer_encoder.1} parent=123 // pred_fallthru
          _
        // Predicated region
        $region177: #{strided_transformer_encoder.1} parent=123 // pred_check
          %p905 = pneg %p573
        $region178: #{strided_transformer_encoder.1} parent=123 // pred_check_branch
          %907 = sbr.rel (%p905) target = $region180
        $region179: #{strided_transformer_encoder.1} parent=123 // pred_region
          %908 = dma.done [#allocation25], 512
        $region180: #{strided_transformer_encoder.1} parent=123 // pred_fallthru
          _
        %s909 = smul.u32 2, %s48
        %p910 = scmp.lt.s32.totalorder %s909, 3
        %s911 = scalar_select %p910, %s909, 3
        %s912 = smul.addr %s911, 2
        %s913 = smul.addr %s912, 8
        %s914 = scalar_lea.vmem %s0, %s913
        %p915 = pneg %p69
        %p916 = pneg %p66
        %p917 = pneg %p90
        %p918 = pneg %p87
        %p919 = pneg %p111
        %p920 = pneg %p108
        %p921 = pneg %p132
        %p922 = pneg %p129
        %p923 = pneg %p153
        %p924 = pneg %p150
        %p925 = pneg %p174
        %p926 = pneg %p171
        %p927 = pneg %p195
        %p928 = pneg %p192
        %p929 = pneg %p216
        %p930 = pneg %p213
        %p931 = pneg %p237
        %p932 = pneg %p234
        %p933 = pneg %p258
        %p934 = pneg %p255
        %p935 = pneg %p279
        %p936 = pneg %p276
        %p937 = pneg %p300
        %p938 = pneg %p297
        %p939 = pneg %p321
        %p940 = pneg %p318
        %p941 = pneg %p342
        %p942 = pneg %p339
        %p943 = pneg %p363
        %p944 = pneg %p360
        %p945 = pneg %p384
        %p946 = pneg %p381
        %p947 = pneg %p405
        %p948 = pneg %p402
        %p949 = pneg %p426
        %p950 = pneg %p423
        %p951 = pneg %p447
        %p952 = pneg %p444
        %p953 = pneg %p468
        %p954 = pneg %p465
        %p955 = pneg %p489
        %p956 = pneg %p486
        %p957 = pneg %p510
        %p958 = pneg %p507
        %p959 = pneg %p531
        %p960 = pneg %p528
        %p961 = pneg %p552
        %p962 = pneg %p549
        %p963 = pneg %p573
        %p964 = pneg %p570
        %p965 = pneg %p594
        %p966 = pneg %p591
        %p967 = pneg %p620
        %p968 = pneg %p617
        %s969 = sand.u32 %s607, 1
        %s970 = scalar_lea.sflag [#allocation5], %s969
        %s971 = sand.u32 %s607, 1
        %s972 = smul.addr %s971, 8
        %s973 = scalar_lea.vmem [#allocation26], %s972
        %s974 = smul.u32 2, %s48
        %p975 = scmp.lt.s32.totalorder %s974, 3
        %s976 = scalar_select %p975, %s974, 3
        %s977 = smul.addr %s976, 2
        %s978 = smul.addr %s977, 8
        %s979 = scalar_lea.vmem %s0, %s978
        %s980 = smul.u32 2, %s48
        %s981 = smul.u32 2, %s48
        %v982 = vld [vmem:[#allocation3] sm:$0xff]
        %v983 = vld [vmem:[#allocation3 + $0x8] sm:$0xff]
        %v984 = vld [vmem:[#allocation6] sm:$0xff]
        %v985 = vld [vmem:[#allocation6 + $0x8] sm:$0xff]
        %v986 = vld [vmem:[#allocation8] sm:$0x1]
        %v987 = vld [vmem:[%s979] sm:$0xff]
        %v988 = vld [vmem:[%s979 + $0x8] sm:$0xff]
        %v989 = vld [vmem:[%s979 + $0x10] sm:$0xff]
        %v990 = vld [vmem:[%s979 + $0x18] sm:$0xff]
        %v992 = vlaneseq
        %v993 = vshrl.u32 %v992, 7
        %v994 = vsub.s32 0, %v993
        %v995 = vrot.slane %v986, %v994
        %vm997 = vcmask 130048
        %v999 = vsel %vm997, %v987, 0
        %v1002 = vsel %vm997, %v988, 0
        %v1005 = vsel %vm997, %v989, 0
        %v1008 = vsel %vm997, %v990, 0
        %1010 = vmatprep.subr.mxu0 0.0
        %1011 = vmatpush1.msra.mxu0 %v984
        %1012 = vmatprep.subr.mxu0 0.0
        %1013 = vmatpush1.msra.mxu0 %v985
        %1014 = vmatprep.subr.mxu0 0.0
        %1015 = vmatpush1.msra.mxu0 0.0
        %1016 = vmatprep.subr.mxu0 0.0
        %1017 = vmatpush1.msra.mxu0 0.0
        %1018 = vmatprep.subr.mxu0 0.0
        %1019 = vmatpush1.msra.mxu0 0.0
        %1020 = vmatprep.subr.mxu0 0.0
        %1021 = vmatpush1.msra.mxu0 0.0
        %1022 = vmatprep.subr.mxu0 0.0
        %1023 = vmatpush1.msra.mxu0 0.0
        %1024 = vmatprep.subr.mxu0 0.0
        %1025 = vmatpush1.msra.mxu0 0.0
        %1026 = vmatprep.subr.mxu0 0.0
        %1027 = vmatpush1.msra.mxu0 0.0
        %1028 = vmatprep.subr.mxu0 0.0
        %1029 = vmatpush1.msra.mxu0 0.0
        %1030 = vmatprep.subr.mxu0 0.0
        %1031 = vmatpush1.msra.mxu0 0.0
        %1032 = vmatprep.subr.mxu0 0.0
        %1033 = vmatpush1.msra.mxu0 0.0
        %1034 = vmatprep.subr.mxu0 0.0
        %1035 = vmatpush1.msra.mxu0 0.0
        %1036 = vmatprep.subr.mxu0 0.0
        %1037 = vmatpush1.msra.mxu0 0.0
        %1038 = vmatprep.subr.mxu0 0.0
        %1039 = vmatpush1.msra.mxu0 0.0
        %1040 = vmatprep.subr.mxu0 0.0
        %1041 = vmatpush1.msra.mxu0 0.0
        %1042 = vmatprep.subr.mxu0 0.0
        %1043 = vmatpush1.msra.mxu0 0.0
        %1044 = vmatprep.subr.mxu0 0.0
        %1045 = vmatpush1.msra.mxu0 0.0
        %1046 = vmatprep.subr.mxu0 0.0
        %1047 = vmatpush1.msra.mxu0 0.0
        %1048 = vmatprep.subr.mxu0 0.0
        %1049 = vmatpush1.msra.mxu0 0.0
        %1050 = vmatprep.subr.mxu0 0.0
        %1051 = vmatpush1.msra.mxu0 0.0
        %1052 = vmatprep.subr.mxu0 0.0
        %1053 = vmatpush1.msra.mxu0 0.0
        %1054 = vmatprep.subr.mxu0 0.0
        %1055 = vmatpush1.msra.mxu0 0.0
        %1056 = vmatprep.subr.mxu0 0.0
        %1057 = vmatpush1.msra.mxu0 0.0
        %1058 = vmatprep.subr.mxu0 0.0
        %1059 = vmatpush1.msra.mxu0 0.0
        %1060 = vmatprep.subr.mxu0 0.0
        %1061 = vmatpush1.msra.mxu0 0.0
        %1062 = vmatprep.subr.mxu0 0.0
        %1063 = vmatpush1.msra.mxu0 0.0
        %1064 = vmatprep.subr.mxu0 0.0
        %1065 = vmatpush1.msra.mxu0 0.0
        %1066 = vmatprep.subr.mxu0 0.0
        %1067 = vmatpush1.msra.mxu0 0.0
        %1068 = vmatprep.subr.mxu0 0.0
        %1069 = vmatpush1.msra.mxu0 0.0
        %1070 = vmatprep.subr.mxu0 0.0
        %1071 = vmatpush1.msra.mxu0 0.0
        %1072 = vmatprep.subr.mxu0 0.0
        %1073 = vmatpush1.msra.mxu0 0.0
        %1074 = vmatprep.mubr.f32.mxu0 0.0
        %1075 = vmatmul.mubr.f32.gmra.mrb[0].mxu0 %v999
        %v1076 = vpop.f32.mrb[0].mxu0
        %v1077 = vadd.f32 %v995, %v1076
        %v1078 = vpop.f32.mrb[0].mxu0
        %1079 = vmatprep.mubr.f32.mxu0 0.0
        %1080 = vmatmul.mubr.f32.gmra.mrb[0].mxu0 %v1002
        %v1081 = vpop.f32.mrb[0].mxu0
        %v1082 = vadd.f32 %v995, %v1081
        %v1083 = vpop.f32.mrb[0].mxu0
        %1084 = vmatprep.mubr.f32.mxu0 0.0
        %1085 = vmatmul.mubr.f32.gmra.mrb[0].mxu0 %v1005
        %v1086 = vpop.f32.mrb[0].mxu0
        %v1087 = vadd.f32 %v995, %v1086
        %v1088 = vpop.f32.mrb[0].mxu0
        %1089 = vmatprep.mubr.f32.mxu0 0.0
        %1090 = vmatmul.mubr.f32.gmra.mrb[0].mxu0 %v1008
        %v1091 = vpop.f32.mrb[0].mxu0
        %v1092 = vadd.f32 %v995, %v1091
        %v1093 = vpop.f32.mrb[0].mxu0
        %1094 = vdwg.mxu0
        %v1095 = vld [vmem:[%s4] sm:$0xff]
        %v1096 = vld [vmem:[%s4 + $0x8] sm:$0xff]
        %v1097 = vld [vmem:[%s4 + $0x10] sm:$0xff]
        %v1098 = vld [vmem:[%s4 + $0x18] sm:$0xff]
        %v1099 = vld [vmem:[#allocation9] sm:$0x1]
        %v1100 = vld [vmem:[%s6] sm:$0xff]
        %v1101 = vld [vmem:[%s6 + $0x8] sm:$0xff]
        %v1102 = vld [vmem:[%s6 + $0x10] sm:$0xff]
        %v1103 = vld [vmem:[%s6 + $0x18] sm:$0xff]
        %v1104 = vld [vmem:[#allocation11] sm:$0x1]
        %v1105 = vld [vmem:[#allocation12] sm:$0x1]
        %v1106 = vld [vmem:[#allocation14] sm:$0x1]
        %v1107 = vld [vmem:[%s10] sm:$0xff]
        %v1108 = vld [vmem:[%s10 + $0x8] sm:$0xff]
        %v1109 = vld [vmem:[%s10 + $0x10] sm:$0xff]
        %v1110 = vld [vmem:[%s10 + $0x18] sm:$0xff]
        %v1111 = vld [vmem:[%s11] sm:$0xff]
        %v1112 = vld [vmem:[%s11 + $0x8] sm:$0xff]
        %v1113 = vld [vmem:[%s11 + $0x10] sm:$0xff]
        %v1114 = vld [vmem:[%s11 + $0x18] sm:$0xff]
        %v1115 = vld [vmem:[%s11 + $0x20] sm:$0xff]
        %v1116 = vld [vmem:[%s11 + $0x28] sm:$0xff]
        %v1117 = vld [vmem:[%s11 + $0x30] sm:$0xff]
        %v1118 = vld [vmem:[%s11 + $0x38] sm:$0xff]
        %v1119 = vld [vmem:[#allocation15] sm:$0x1]
        %v1120 = vld [vmem:[#allocation17] sm:$0x1]
        %v1121 = vadd.f32 %v1077, %v982
        %v1122 = vadd.f32 %v1082, %v983
        %v1123 = vadd.f32 %v1087, %v982
        %v1124 = vadd.f32 %v1092, %v983
        %v1126 = vlaneseq
        %v1127 = vshrl.u32 %v1126, 7
        %v1128 = vsub.s32 0, %v1127
        %v1129 = vrot.slane %v1099, %v1128
        %vm1131 = vcmask 261120
        %v1133 = vsel %vm1131, %v1121, 0
        %v1136 = vsel %vm1131, %v1122, 0
        %v1139 = vsel %vm1131, %v1123, 0
        %v1142 = vsel %vm1131, %v1124, 0
        %1144 = vmatprep.subr.mxu0 0.0
        %1145 = vmatpush1.msra.mxu0 %v1095
        %1146 = vmatprep.subr.mxu0 0.0
        %1147 = vmatpush1.msra.mxu0 %v1096
        %1148 = vmatprep.subr.mxu0 0.0
        %1149 = vmatpush1.msra.mxu0 %v1097
        %1150 = vmatprep.subr.mxu0 0.0
        %1151 = vmatpush1.msra.mxu0 %v1098
        %1152 = vmatprep.subr.mxu0 0.0
        %1153 = vmatpush1.msra.mxu0 0.0
        %1154 = vmatprep.subr.mxu0 0.0
        %1155 = vmatpush1.msra.mxu0 0.0
        %1156 = vmatprep.subr.mxu0 0.0
        %1157 = vmatpush1.msra.mxu0 0.0
        %1158 = vmatprep.subr.mxu0 0.0
        %1159 = vmatpush1.msra.mxu0 0.0
        %1160 = vmatprep.subr.mxu0 0.0
        %1161 = vmatpush1.msra.mxu0 0.0
        %1162 = vmatprep.subr.mxu0 0.0
        %1163 = vmatpush1.msra.mxu0 0.0
        %1164 = vmatprep.subr.mxu0 0.0
        %1165 = vmatpush1.msra.mxu0 0.0
        %1166 = vmatprep.subr.mxu0 0.0
        %1167 = vmatpush1.msra.mxu0 0.0
        %1168 = vmatprep.subr.mxu0 0.0
        %1169 = vmatpush1.msra.mxu0 0.0
        %1170 = vmatprep.subr.mxu0 0.0
        %1171 = vmatpush1.msra.mxu0 0.0
        %1172 = vmatprep.subr.mxu0 0.0
        %1173 = vmatpush1.msra.mxu0 0.0
        %1174 = vmatprep.subr.mxu0 0.0
        %1175 = vmatpush1.msra.mxu0 0.0
        %1176 = vmatprep.subr.mxu0 0.0
        %1177 = vmatpush1.msra.mxu0 0.0
        %1178 = vmatprep.subr.mxu0 0.0
        %1179 = vmatpush1.msra.mxu0 0.0
        %1180 = vmatprep.subr.mxu0 0.0
        %1181 = vmatpush1.msra.mxu0 0.0
        %1182 = vmatprep.subr.mxu0 0.0
        %1183 = vmatpush1.msra.mxu0 0.0
        %1184 = vmatprep.subr.mxu0 0.0
        %1185 = vmatpush1.msra.mxu0 0.0
        %1186 = vmatprep.subr.mxu0 0.0
        %1187 = vmatpush1.msra.mxu0 0.0
        %1188 = vmatprep.subr.mxu0 0.0
        %1189 = vmatpush1.msra.mxu0 0.0
        %1190 = vmatprep.subr.mxu0 0.0
        %1191 = vmatpush1.msra.mxu0 0.0
        %1192 = vmatprep.subr.mxu0 0.0
        %1193 = vmatpush1.msra.mxu0 0.0
        %1194 = vmatprep.subr.mxu0 0.0
        %1195 = vmatpush1.msra.mxu0 0.0
        %1196 = vmatprep.subr.mxu0 0.0
        %1197 = vmatpush1.msra.mxu0 0.0
        %1198 = vmatprep.subr.mxu0 0.0
        %1199 = vmatpush1.msra.mxu0 0.0
        %1200 = vmatprep.subr.mxu0 0.0
        %1201 = vmatpush1.msra.mxu0 0.0
        %1202 = vmatprep.subr.mxu0 0.0
        %1203 = vmatpush1.msra.mxu0 0.0
        %1204 = vmatprep.subr.mxu0 0.0
        %1205 = vmatpush1.msra.mxu0 0.0
        %1206 = vmatprep.subr.mxu0 0.0
        %1207 = vmatpush1.msra.mxu0 0.0
        %1208 = vmatprep.mubr.f32.mxu0 0.0
        %1209 = vmatmul.mubr.f32.gmra.mrb[0].mxu0 %v1133
        %v1210 = vpop.f32.mrb[0].mxu0
        %v1211 = vadd.f32 %v1129, %v1210
        %v1212 = vpop.f32.mrb[0].mxu0
        %1213 = vmatprep.mubr.f32.mxu0 0.0
        %1214 = vmatmul.mubr.f32.gmra.mrb[0].mxu0 %v1136
        %v1215 = vpop.f32.mrb[0].mxu0
        %v1216 = vadd.f32 %v1129, %v1215
        %v1217 = vpop.f32.mrb[0].mxu0
        %1218 = vmatprep.mubr.f32.mxu0 0.0
        %1219 = vmatmul.mubr.f32.gmra.mrb[0].mxu0 %v1139
        %v1220 = vpop.f32.mrb[0].mxu0
        %v1221 = vadd.f32 %v1129, %v1220
        %v1222 = vpop.f32.mrb[0].mxu0
        %1223 = vmatprep.mubr.f32.mxu0 0.0
        %1224 = vmatmul.mubr.f32.gmra.mrb[0].mxu0 %v1142
        %v1225 = vpop.f32.mrb[0].mxu0
        %v1226 = vadd.f32 %v1129, %v1225
        %v1227 = vpop.f32.mrb[0].mxu0
        %1228 = vdwg.mxu0
        %1231 = vrot.lane.b32.xlu0 %v1211, 96
        %v1232 = vpop.permute.xlu0 %1231
        %1233 = vrot.lane.b32.xlu0 %v1216, 96
        %v1234 = vpop.permute.xlu0 %1233
        %vm1235 = vcmask 64512
        %v1236 = vsel %vm1235, %v1211, 0
        %v1238 = vsel %vm1235, %v1216, 0
        %v1240 = vsel %vm1235, %v1232, 0
        %v1242 = vsel %vm1235, %v1234, 0
        %1244 = vmatprep.subr.mxu0 0.0
        %1245 = vmatpush1.xpose.msra.mxu0 %v1240
        %1246 = vmatprep.subr.mxu0 0.0
        %1247 = vmatpush1.xpose.msra.mxu0 %v1242
        %1248 = vmatprep.subr.mxu0 0.0
        %1249 = vmatpush1.xpose.msra.mxu0 0.0
        %1250 = vmatprep.subr.mxu0 0.0
        %1251 = vmatpush1.xpose.msra.mxu0 0.0
        %1252 = vmatprep.subr.mxu0 0.0
        %1253 = vmatpush1.xpose.msra.mxu0 0.0
        %1254 = vmatprep.subr.mxu0 0.0
        %1255 = vmatpush1.xpose.msra.mxu0 0.0
        %1256 = vmatprep.subr.mxu0 0.0
        %1257 = vmatpush1.xpose.msra.mxu0 0.0
        %1258 = vmatprep.subr.mxu0 0.0
        %1259 = vmatpush1.xpose.msra.mxu0 0.0
        %1260 = vmatprep.subr.mxu0 0.0
        %1261 = vmatpush1.xpose.msra.mxu0 0.0
        %1262 = vmatprep.subr.mxu0 0.0
        %1263 = vmatpush1.xpose.msra.mxu0 0.0
        %1264 = vmatprep.subr.mxu0 0.0
        %1265 = vmatpush1.xpose.msra.mxu0 0.0
        %1266 = vmatprep.subr.mxu0 0.0
        %1267 = vmatpush1.xpose.msra.mxu0 0.0
        %1268 = vmatprep.subr.mxu0 0.0
        %1269 = vmatpush1.xpose.msra.mxu0 0.0
        %1270 = vmatprep.subr.mxu0 0.0
        %1271 = vmatpush1.xpose.msra.mxu0 0.0
        %1272 = vmatprep.subr.mxu0 0.0
        %1273 = vmatpush1.xpose.msra.mxu0 0.0
        %1274 = vmatprep.subr.mxu0 0.0
        %1275 = vmatpush1.xpose.msra.mxu0 0.0
        %1276 = vmatprep.subr.mxu0 0.0
        %1277 = vmatpush1.xpose.msra.mxu0 0.0
        %1278 = vmatprep.subr.mxu0 0.0
        %1279 = vmatpush1.xpose.msra.mxu0 0.0
        %1280 = vmatprep.subr.mxu0 0.0
        %1281 = vmatpush1.xpose.msra.mxu0 0.0
        %1282 = vmatprep.subr.mxu0 0.0
        %1283 = vmatpush1.xpose.msra.mxu0 0.0
        %1284 = vmatprep.subr.mxu0 0.0
        %1285 = vmatpush1.xpose.msra.mxu0 0.0
        %1286 = vmatprep.subr.mxu0 0.0
        %1287 = vmatpush1.xpose.msra.mxu0 0.0
        %1288 = vmatprep.subr.mxu0 0.0
        %1289 = vmatpush1.xpose.msra.mxu0 0.0
        %1290 = vmatprep.subr.mxu0 0.0
        %1291 = vmatpush1.xpose.msra.mxu0 0.0
        %1292 = vmatprep.subr.mxu0 0.0
        %1293 = vmatpush1.xpose.msra.mxu0 0.0
        %1294 = vmatprep.subr.mxu0 0.0
        %1295 = vmatpush1.xpose.msra.mxu0 0.0
        %1296 = vmatprep.subr.mxu0 0.0
        %1297 = vmatpush1.xpose.msra.mxu0 0.0
        %1298 = vmatprep.subr.mxu0 0.0
        %1299 = vmatpush1.xpose.msra.mxu0 0.0
        %1300 = vmatprep.subr.mxu0 0.0
        %1301 = vmatpush1.xpose.msra.mxu0 0.0
        %1302 = vmatprep.subr.mxu0 0.0
        %1303 = vmatpush1.xpose.msra.mxu0 0.0
        %1304 = vmatprep.subr.mxu0 0.0
        %1305 = vmatpush1.xpose.msra.mxu0 0.0
        %1306 = vmatprep.subr.mxu0 0.0
        %1307 = vmatpush1.xpose.msra.mxu0 0.0
        %1308 = vmatprep.mubr.f32.mxu0 0.0
        %1309 = vmatmul.mubr.f32.gmra.mrb[0].mxu0 %v1236
        %v1310 = vpop.f32.mrb[0].mxu0
        %v1311 = vadd.f32 0.0, %v1310
        %v1312 = vpop.f32.mrb[0].mxu0
        %1313 = vmatprep.mubr.f32.mxu0 0.0
        %1314 = vmatmul.mubr.f32.gmra.mrb[0].mxu0 %v1238
        %v1315 = vpop.f32.mrb[0].mxu0
        %v1316 = vadd.f32 0.0, %v1315
        %v1317 = vpop.f32.mrb[0].mxu0
        %1318 = vdwg.mxu0
        %1321 = vrot.lane.b32.xlu0 %v1221, 96
        %v1322 = vpop.permute.xlu0 %1321
        %1323 = vrot.lane.b32.xlu0 %v1226, 96
        %v1324 = vpop.permute.xlu0 %1323
        %v1325 = vsel %vm1235, %v1221, 0
        %v1327 = vsel %vm1235, %v1226, 0
        %v1329 = vsel %vm1235, %v1322, 0
        %v1331 = vsel %vm1235, %v1324, 0
        %1333 = vmatprep.subr.mxu0 0.0
        %1334 = vmatpush1.xpose.msra.mxu0 %v1329
        %1335 = vmatprep.subr.mxu0 0.0
        %1336 = vmatpush1.xpose.msra.mxu0 %v1331
        %1337 = vmatprep.subr.mxu0 0.0
        %1338 = vmatpush1.xpose.msra.mxu0 0.0
        %1339 = vmatprep.subr.mxu0 0.0
        %1340 = vmatpush1.xpose.msra.mxu0 0.0
        %1341 = vmatprep.subr.mxu0 0.0
        %1342 = vmatpush1.xpose.msra.mxu0 0.0
        %1343 = vmatprep.subr.mxu0 0.0
        %1344 = vmatpush1.xpose.msra.mxu0 0.0
        %1345 = vmatprep.subr.mxu0 0.0
        %1346 = vmatpush1.xpose.msra.mxu0 0.0
        %1347 = vmatprep.subr.mxu0 0.0
        %1348 = vmatpush1.xpose.msra.mxu0 0.0
        %1349 = vmatprep.subr.mxu0 0.0
        %1350 = vmatpush1.xpose.msra.mxu0 0.0
        %1351 = vmatprep.subr.mxu0 0.0
        %1352 = vmatpush1.xpose.msra.mxu0 0.0
        %1353 = vmatprep.subr.mxu0 0.0
        %1354 = vmatpush1.xpose.msra.mxu0 0.0
        %1355 = vmatprep.subr.mxu0 0.0
        %1356 = vmatpush1.xpose.msra.mxu0 0.0
        %1357 = vmatprep.subr.mxu0 0.0
        %1358 = vmatpush1.xpose.msra.mxu0 0.0
        %1359 = vmatprep.subr.mxu0 0.0
        %1360 = vmatpush1.xpose.msra.mxu0 0.0
        %1361 = vmatprep.subr.mxu0 0.0
        %1362 = vmatpush1.xpose.msra.mxu0 0.0
        %1363 = vmatprep.subr.mxu0 0.0
        %1364 = vmatpush1.xpose.msra.mxu0 0.0
        %1365 = vmatprep.subr.mxu0 0.0
        %1366 = vmatpush1.xpose.msra.mxu0 0.0
        %1367 = vmatprep.subr.mxu0 0.0
        %1368 = vmatpush1.xpose.msra.mxu0 0.0
        %1369 = vmatprep.subr.mxu0 0.0
        %1370 = vmatpush1.xpose.msra.mxu0 0.0
        %1371 = vmatprep.subr.mxu0 0.0
        %1372 = vmatpush1.xpose.msra.mxu0 0.0
        %1373 = vmatprep.subr.mxu0 0.0
        %1374 = vmatpush1.xpose.msra.mxu0 0.0
        %1375 = vmatprep.subr.mxu0 0.0
        %1376 = vmatpush1.xpose.msra.mxu0 0.0
        %1377 = vmatprep.subr.mxu0 0.0
        %1378 = vmatpush1.xpose.msra.mxu0 0.0
        %1379 = vmatprep.subr.mxu0 0.0
        %1380 = vmatpush1.xpose.msra.mxu0 0.0
        %1381 = vmatprep.subr.mxu0 0.0
        %1382 = vmatpush1.xpose.msra.mxu0 0.0
        %1383 = vmatprep.subr.mxu0 0.0
        %1384 = vmatpush1.xpose.msra.mxu0 0.0
        %1385 = vmatprep.subr.mxu0 0.0
        %1386 = vmatpush1.xpose.msra.mxu0 0.0
        %1387 = vmatprep.subr.mxu0 0.0
        %1388 = vmatpush1.xpose.msra.mxu0 0.0
        %1389 = vmatprep.subr.mxu0 0.0
        %1390 = vmatpush1.xpose.msra.mxu0 0.0
        %1391 = vmatprep.subr.mxu0 0.0
        %1392 = vmatpush1.xpose.msra.mxu0 0.0
        %1393 = vmatprep.subr.mxu0 0.0
        %1394 = vmatpush1.xpose.msra.mxu0 0.0
        %1395 = vmatprep.subr.mxu0 0.0
        %1396 = vmatpush1.xpose.msra.mxu0 0.0
        %1397 = vmatprep.mubr.f32.mxu0 0.0
        %1398 = vmatmul.mubr.f32.gmra.mrb[0].mxu0 %v1325
        %v1399 = vpop.f32.mrb[0].mxu0
        %v1400 = vadd.f32 0.0, %v1399
        %v1401 = vpop.f32.mrb[0].mxu0
        %1402 = vmatprep.mubr.f32.mxu0 0.0
        %1403 = vmatmul.mubr.f32.gmra.mrb[0].mxu0 %v1327
        %v1404 = vpop.f32.mrb[0].mxu0
        %v1405 = vadd.f32 0.0, %v1404
        %v1406 = vpop.f32.mrb[0].mxu0
        %1407 = vdwg.mxu0
        %v1408 = vsel %vm997, %v1311, -inf
        %1409 = vmax.xlane.f32.xlu0 %v1408
        %v1410 = vpop.xlane.xlu0 %1409
        %v1411 = vsel %vm997, %v1316, -inf
        %1412 = vmax.xlane.f32.xlu0 %v1411
        %v1413 = vpop.xlane.xlu0 %1412
        %v1414 = vsel %vm997, %v1400, -inf
        %1415 = vmax.xlane.f32.xlu0 %v1414
        %v1416 = vpop.xlane.xlu0 %1415
        %v1417 = vsel %vm997, %v1405, -inf
        %1418 = vmax.xlane.f32.xlu0 %v1417
        %v1419 = vpop.xlane.xlu0 %1418
        %v1420 = vsub.f32 %v1311, %v1410
        %v1421 = vsub.f32 %v1316, %v1413
        %v1422 = vsub.f32 %v1400, %v1416
        %v1423 = vsub.f32 %v1405, %v1419
        %v1424 = vmul.f32 %v1420, 1.442695
        %v1425 = vpow.pop %v1424
        %v1426 = vmul.f32 %v1421, 1.442695
        %v1427 = vpow.pop %v1426
        %v1428 = vmul.f32 %v1422, 1.442695
        %v1429 = vpow.pop %v1428
        %v1430 = vmul.f32 %v1423, 1.442695
        %v1431 = vpow.pop %v1430
        %v1432 = vsel %vm997, %v1425, 0.0
        %1433 = vadd.xlane.f32.xlu0 %v1432
        %v1434 = vpop.xlane.xlu0 %1433
        %v1435 = vsel %vm997, %v1427, 0.0
        %1436 = vadd.xlane.f32.xlu0 %v1435
        %v1437 = vpop.xlane.xlu0 %1436
        %v1438 = vsel %vm997, %v1429, 0.0
        %1439 = vadd.xlane.f32.xlu0 %v1438
        %v1440 = vpop.xlane.xlu0 %1439
        %v1441 = vsel %vm997, %v1431, 0.0
        %1442 = vadd.xlane.f32.xlu0 %v1441
        %v1443 = vpop.xlane.xlu0 %1442
        %v1444 = vrcp.pop %v1434
        %v1445 = vrcp.pop %v1437
        %v1446 = vrcp.pop %v1440
        %v1447 = vrcp.pop %v1443
        %v1448 = vmul.f32 %v1425, %v1444
        %v1449 = vmul.f32 %v1427, %v1445
        %v1450 = vmul.f32 %v1429, %v1446
        %v1451 = vmul.f32 %v1431, %v1447
        %1452 = vrot.lane.b32.xlu0 %v1211, 64
        %v1453 = vpop.permute.xlu0 %1452
        %1454 = vrot.lane.b32.xlu0 %v1216, 64
        %v1455 = vpop.permute.xlu0 %1454
        %v1459 = vsel %vm997, %v1448, 0
        %v1462 = vsel %vm997, %v1449, 0
        %1464 = vmatprep.subr.mxu0 0.0
        %1465 = vmatpush1.msra.mxu0 %v1453
        %1466 = vmatprep.subr.mxu0 0.0
        %1467 = vmatpush1.msra.mxu0 %v1455
        %1468 = vmatprep.subr.mxu0 0.0
        %1469 = vmatpush1.msra.mxu0 0.0
        %1470 = vmatprep.subr.mxu0 0.0
        %1471 = vmatpush1.msra.mxu0 0.0
        %1472 = vmatprep.subr.mxu0 0.0
        %1473 = vmatpush1.msra.mxu0 0.0
        %1474 = vmatprep.subr.mxu0 0.0
        %1475 = vmatpush1.msra.mxu0 0.0
        %1476 = vmatprep.subr.mxu0 0.0
        %1477 = vmatpush1.msra.mxu0 0.0
        %1478 = vmatprep.subr.mxu0 0.0
        %1479 = vmatpush1.msra.mxu0 0.0
        %1480 = vmatprep.subr.mxu0 0.0
        %1481 = vmatpush1.msra.mxu0 0.0
        %1482 = vmatprep.subr.mxu0 0.0
        %1483 = vmatpush1.msra.mxu0 0.0
        %1484 = vmatprep.subr.mxu0 0.0
        %1485 = vmatpush1.msra.mxu0 0.0
        %1486 = vmatprep.subr.mxu0 0.0
        %1487 = vmatpush1.msra.mxu0 0.0
        %1488 = vmatprep.subr.mxu0 0.0
        %1489 = vmatpush1.msra.mxu0 0.0
        %1490 = vmatprep.subr.mxu0 0.0
        %1491 = vmatpush1.msra.mxu0 0.0
        %1492 = vmatprep.subr.mxu0 0.0
        %1493 = vmatpush1.msra.mxu0 0.0
        %1494 = vmatprep.subr.mxu0 0.0
        %1495 = vmatpush1.msra.mxu0 0.0
        %1496 = vmatprep.subr.mxu0 0.0
        %1497 = vmatpush1.msra.mxu0 0.0
        %1498 = vmatprep.subr.mxu0 0.0
        %1499 = vmatpush1.msra.mxu0 0.0
        %1500 = vmatprep.subr.mxu0 0.0
        %1501 = vmatpush1.msra.mxu0 0.0
        %1502 = vmatprep.subr.mxu0 0.0
        %1503 = vmatpush1.msra.mxu0 0.0
        %1504 = vmatprep.subr.mxu0 0.0
        %1505 = vmatpush1.msra.mxu0 0.0
        %1506 = vmatprep.subr.mxu0 0.0
        %1507 = vmatpush1.msra.mxu0 0.0
        %1508 = vmatprep.subr.mxu0 0.0
        %1509 = vmatpush1.msra.mxu0 0.0
        %1510 = vmatprep.subr.mxu0 0.0
        %1511 = vmatpush1.msra.mxu0 0.0
        %1512 = vmatprep.subr.mxu0 0.0
        %1513 = vmatpush1.msra.mxu0 0.0
        %1514 = vmatprep.subr.mxu0 0.0
        %1515 = vmatpush1.msra.mxu0 0.0
        %1516 = vmatprep.subr.mxu0 0.0
        %1517 = vmatpush1.msra.mxu0 0.0
        %1518 = vmatprep.subr.mxu0 0.0
        %1519 = vmatpush1.msra.mxu0 0.0
        %1520 = vmatprep.subr.mxu0 0.0
        %1521 = vmatpush1.msra.mxu0 0.0
        %1522 = vmatprep.subr.mxu0 0.0
        %1523 = vmatpush1.msra.mxu0 0.0
        %1524 = vmatprep.subr.mxu0 0.0
        %1525 = vmatpush1.msra.mxu0 0.0
        %1526 = vmatprep.subr.mxu0 0.0
        %1527 = vmatpush1.msra.mxu0 0.0
        %1528 = vmatprep.mubr.f32.mxu0 0.0
        %1529 = vmatmul.mubr.f32.gmra.mrb[0].mxu0 %v1459
        %v1530 = vpop.f32.mrb[0].mxu0
        %v1531 = vadd.f32 0.0, %v1530
        %v1532 = vpop.f32.mrb[0].mxu0
        %1533 = vmatprep.mubr.f32.mxu0 0.0
        %1534 = vmatmul.mubr.f32.gmra.mrb[0].mxu0 %v1462
        %v1535 = vpop.f32.mrb[0].mxu0
        %v1536 = vadd.f32 0.0, %v1535
        %v1537 = vpop.f32.mrb[0].mxu0
        %1538 = vdwg.mxu0
        %1539 = vrot.lane.b32.xlu0 %v1221, 64
        %v1540 = vpop.permute.xlu0 %1539
        %1541 = vrot.lane.b32.xlu0 %v1226, 64
        %v1542 = vpop.permute.xlu0 %1541
        %v1546 = vsel %vm997, %v1450, 0
        %v1549 = vsel %vm997, %v1451, 0
        %1551 = vmatprep.subr.mxu0 0.0
        %1552 = vmatpush1.msra.mxu0 %v1540
        %1553 = vmatprep.subr.mxu0 0.0
        %1554 = vmatpush1.msra.mxu0 %v1542
        %1555 = vmatprep.subr.mxu0 0.0
        %1556 = vmatpush1.msra.mxu0 0.0
        %1557 = vmatprep.subr.mxu0 0.0
        %1558 = vmatpush1.msra.mxu0 0.0
        %1559 = vmatprep.subr.mxu0 0.0
        %1560 = vmatpush1.msra.mxu0 0.0
        %1561 = vmatprep.subr.mxu0 0.0
        %1562 = vmatpush1.msra.mxu0 0.0
        %1563 = vmatprep.subr.mxu0 0.0
        %1564 = vmatpush1.msra.mxu0 0.0
        %1565 = vmatprep.subr.mxu0 0.0
        %1566 = vmatpush1.msra.mxu0 0.0
        %1567 = vmatprep.subr.mxu0 0.0
        %1568 = vmatpush1.msra.mxu0 0.0
        %1569 = vmatprep.subr.mxu0 0.0
        %1570 = vmatpush1.msra.mxu0 0.0
        %1571 = vmatprep.subr.mxu0 0.0
        %1572 = vmatpush1.msra.mxu0 0.0
        %1573 = vmatprep.subr.mxu0 0.0
        %1574 = vmatpush1.msra.mxu0 0.0
        %1575 = vmatprep.subr.mxu0 0.0
        %1576 = vmatpush1.msra.mxu0 0.0
        %1577 = vmatprep.subr.mxu0 0.0
        %1578 = vmatpush1.msra.mxu0 0.0
        %1579 = vmatprep.subr.mxu0 0.0
        %1580 = vmatpush1.msra.mxu0 0.0
        %1581 = vmatprep.subr.mxu0 0.0
        %1582 = vmatpush1.msra.mxu0 0.0
        %1583 = vmatprep.subr.mxu0 0.0
        %1584 = vmatpush1.msra.mxu0 0.0
        %1585 = vmatprep.subr.mxu0 0.0
        %1586 = vmatpush1.msra.mxu0 0.0
        %1587 = vmatprep.subr.mxu0 0.0
        %1588 = vmatpush1.msra.mxu0 0.0
        %1589 = vmatprep.subr.mxu0 0.0
        %1590 = vmatpush1.msra.mxu0 0.0
        %1591 = vmatprep.subr.mxu0 0.0
        %1592 = vmatpush1.msra.mxu0 0.0
        %1593 = vmatprep.subr.mxu0 0.0
        %1594 = vmatpush1.msra.mxu0 0.0
        %1595 = vmatprep.subr.mxu0 0.0
        %1596 = vmatpush1.msra.mxu0 0.0
        %1597 = vmatprep.subr.mxu0 0.0
        %1598 = vmatpush1.msra.mxu0 0.0
        %1599 = vmatprep.subr.mxu0 0.0
        %1600 = vmatpush1.msra.mxu0 0.0
        %1601 = vmatprep.subr.mxu0 0.0
        %1602 = vmatpush1.msra.mxu0 0.0
        %1603 = vmatprep.subr.mxu0 0.0
        %1604 = vmatpush1.msra.mxu0 0.0
        %1605 = vmatprep.subr.mxu0 0.0
        %1606 = vmatpush1.msra.mxu0 0.0
        %1607 = vmatprep.subr.mxu0 0.0
        %1608 = vmatpush1.msra.mxu0 0.0
        %1609 = vmatprep.subr.mxu0 0.0
        %1610 = vmatpush1.msra.mxu0 0.0
        %1611 = vmatprep.subr.mxu0 0.0
        %1612 = vmatpush1.msra.mxu0 0.0
        %1613 = vmatprep.subr.mxu0 0.0
        %1614 = vmatpush1.msra.mxu0 0.0
        %1615 = vmatprep.mubr.f32.mxu0 0.0
        %1616 = vmatmul.mubr.f32.gmra.mrb[0].mxu0 %v1546
        %v1617 = vpop.f32.mrb[0].mxu0
        %v1618 = vadd.f32 0.0, %v1617
        %v1619 = vpop.f32.mrb[0].mxu0
        %1620 = vmatprep.mubr.f32.mxu0 0.0
        %1621 = vmatmul.mubr.f32.gmra.mrb[0].mxu0 %v1549
        %v1622 = vpop.f32.mrb[0].mxu0
        %v1623 = vadd.f32 0.0, %v1622
        %v1624 = vpop.f32.mrb[0].mxu0
        %1625 = vdwg.mxu0
        %1626 = vrot.lane.b32.xlu0 %v1211, 120
        %v1627 = vpop.permute.xlu0 %1626
        %1628 = vrot.lane.b32.xlu0 %v1216, 120
        %v1629 = vpop.permute.xlu0 %1628
        %1630 = vrot.lane.b32.xlu0 %v1211, 88
        %v1631 = vpop.permute.xlu0 %1630
        %1632 = vrot.lane.b32.xlu0 %v1216, 88
        %v1633 = vpop.permute.xlu0 %1632
        %v1634 = vsel %vm1235, %v1627, 0
        %v1636 = vsel %vm1235, %v1629, 0
        %v1638 = vsel %vm1235, %v1631, 0
        %v1640 = vsel %vm1235, %v1633, 0
        %1642 = vmatprep.subr.mxu0 0.0
        %1643 = vmatpush1.xpose.msra.mxu0 %v1638
        %1644 = vmatprep.subr.mxu0 0.0
        %1645 = vmatpush1.xpose.msra.mxu0 %v1640
        %1646 = vmatprep.subr.mxu0 0.0
        %1647 = vmatpush1.xpose.msra.mxu0 0.0
        %1648 = vmatprep.subr.mxu0 0.0
        %1649 = vmatpush1.xpose.msra.mxu0 0.0
        %1650 = vmatprep.subr.mxu0 0.0
        %1651 = vmatpush1.xpose.msra.mxu0 0.0
        %1652 = vmatprep.subr.mxu0 0.0
        %1653 = vmatpush1.xpose.msra.mxu0 0.0
        %1654 = vmatprep.subr.mxu0 0.0
        %1655 = vmatpush1.xpose.msra.mxu0 0.0
        %1656 = vmatprep.subr.mxu0 0.0
        %1657 = vmatpush1.xpose.msra.mxu0 0.0
        %1658 = vmatprep.subr.mxu0 0.0
        %1659 = vmatpush1.xpose.msra.mxu0 0.0
        %1660 = vmatprep.subr.mxu0 0.0
        %1661 = vmatpush1.xpose.msra.mxu0 0.0
        %1662 = vmatprep.subr.mxu0 0.0
        %1663 = vmatpush1.xpose.msra.mxu0 0.0
        %1664 = vmatprep.subr.mxu0 0.0
        %1665 = vmatpush1.xpose.msra.mxu0 0.0
        %1666 = vmatprep.subr.mxu0 0.0
        %1667 = vmatpush1.xpose.msra.mxu0 0.0
        %1668 = vmatprep.subr.mxu0 0.0
        %1669 = vmatpush1.xpose.msra.mxu0 0.0
        %1670 = vmatprep.subr.mxu0 0.0
        %1671 = vmatpush1.xpose.msra.mxu0 0.0
        %1672 = vmatprep.subr.mxu0 0.0
        %1673 = vmatpush1.xpose.msra.mxu0 0.0
        %1674 = vmatprep.subr.mxu0 0.0
        %1675 = vmatpush1.xpose.msra.mxu0 0.0
        %1676 = vmatprep.subr.mxu0 0.0
        %1677 = vmatpush1.xpose.msra.mxu0 0.0
        %1678 = vmatprep.subr.mxu0 0.0
        %1679 = vmatpush1.xpose.msra.mxu0 0.0
        %1680 = vmatprep.subr.mxu0 0.0
        %1681 = vmatpush1.xpose.msra.mxu0 0.0
        %1682 = vmatprep.subr.mxu0 0.0
        %1683 = vmatpush1.xpose.msra.mxu0 0.0
        %1684 = vmatprep.subr.mxu0 0.0
        %1685 = vmatpush1.xpose.msra.mxu0 0.0
        %1686 = vmatprep.subr.mxu0 0.0
        %1687 = vmatpush1.xpose.msra.mxu0 0.0
        %1688 = vmatprep.subr.mxu0 0.0
        %1689 = vmatpush1.xpose.msra.mxu0 0.0
        %1690 = vmatprep.subr.mxu0 0.0
        %1691 = vmatpush1.xpose.msra.mxu0 0.0
        %1692 = vmatprep.subr.mxu0 0.0
        %1693 = vmatpush1.xpose.msra.mxu0 0.0
        %1694 = vmatprep.subr.mxu0 0.0
        %1695 = vmatpush1.xpose.msra.mxu0 0.0
        %1696 = vmatprep.subr.mxu0 0.0
        %1697 = vmatpush1.xpose.msra.mxu0 0.0
        %1698 = vmatprep.subr.mxu0 0.0
        %1699 = vmatpush1.xpose.msra.mxu0 0.0
        %1700 = vmatprep.subr.mxu0 0.0
        %1701 = vmatpush1.xpose.msra.mxu0 0.0
        %1702 = vmatprep.subr.mxu0 0.0
        %1703 = vmatpush1.xpose.msra.mxu0 0.0
        %1704 = vmatprep.subr.mxu0 0.0
        %1705 = vmatpush1.xpose.msra.mxu0 0.0
        %1706 = vmatprep.mubr.f32.mxu0 0.0
        %1707 = vmatmul.mubr.f32.gmra.mrb[0].mxu0 %v1634
        %v1708 = vpop.f32.mrb[0].mxu0
        %v1709 = vadd.f32 0.0, %v1708
        %v1710 = vpop.f32.mrb[0].mxu0
        %1711 = vmatprep.mubr.f32.mxu0 0.0
        %1712 = vmatmul.mubr.f32.gmra.mrb[0].mxu0 %v1636
        %v1713 = vpop.f32.mrb[0].mxu0
        %v1714 = vadd.f32 0.0, %v1713
        %v1715 = vpop.f32.mrb[0].mxu0
        %1716 = vdwg.mxu0
        %1717 = vrot.lane.b32.xlu0 %v1221, 120
        %v1718 = vpop.permute.xlu0 %1717
        %1719 = vrot.lane.b32.xlu0 %v1226, 120
        %v1720 = vpop.permute.xlu0 %1719
        %1721 = vrot.lane.b32.xlu0 %v1221, 88
        %v1722 = vpop.permute.xlu0 %1721
        %1723 = vrot.lane.b32.xlu0 %v1226, 88
        %v1724 = vpop.permute.xlu0 %1723
        %v1725 = vsel %vm1235, %v1718, 0
        %v1727 = vsel %vm1235, %v1720, 0
        %v1729 = vsel %vm1235, %v1722, 0
        %v1731 = vsel %vm1235, %v1724, 0
        %1733 = vmatprep.subr.mxu0 0.0
        %1734 = vmatpush1.xpose.msra.mxu0 %v1729
        %1735 = vmatprep.subr.mxu0 0.0
        %1736 = vmatpush1.xpose.msra.mxu0 %v1731
        %1737 = vmatprep.subr.mxu0 0.0
        %1738 = vmatpush1.xpose.msra.mxu0 0.0
        %1739 = vmatprep.subr.mxu0 0.0
        %1740 = vmatpush1.xpose.msra.mxu0 0.0
        %1741 = vmatprep.subr.mxu0 0.0
        %1742 = vmatpush1.xpose.msra.mxu0 0.0
        %1743 = vmatprep.subr.mxu0 0.0
        %1744 = vmatpush1.xpose.msra.mxu0 0.0
        %1745 = vmatprep.subr.mxu0 0.0
        %1746 = vmatpush1.xpose.msra.mxu0 0.0
        %1747 = vmatprep.subr.mxu0 0.0
        %1748 = vmatpush1.xpose.msra.mxu0 0.0
        %1749 = vmatprep.subr.mxu0 0.0
        %1750 = vmatpush1.xpose.msra.mxu0 0.0
        %1751 = vmatprep.subr.mxu0 0.0
        %1752 = vmatpush1.xpose.msra.mxu0 0.0
        %1753 = vmatprep.subr.mxu0 0.0
        %1754 = vmatpush1.xpose.msra.mxu0 0.0
        %1755 = vmatprep.subr.mxu0 0.0
        %1756 = vmatpush1.xpose.msra.mxu0 0.0
        %1757 = vmatprep.subr.mxu0 0.0
        %1758 = vmatpush1.xpose.msra.mxu0 0.0
        %1759 = vmatprep.subr.mxu0 0.0
        %1760 = vmatpush1.xpose.msra.mxu0 0.0
        %1761 = vmatprep.subr.mxu0 0.0
        %1762 = vmatpush1.xpose.msra.mxu0 0.0
        %1763 = vmatprep.subr.mxu0 0.0
        %1764 = vmatpush1.xpose.msra.mxu0 0.0
        %1765 = vmatprep.subr.mxu0 0.0
        %1766 = vmatpush1.xpose.msra.mxu0 0.0
        %1767 = vmatprep.subr.mxu0 0.0
        %1768 = vmatpush1.xpose.msra.mxu0 0.0
        %1769 = vmatprep.subr.mxu0 0.0
        %1770 = vmatpush1.xpose.msra.mxu0 0.0
        %1771 = vmatprep.subr.mxu0 0.0
        %1772 = vmatpush1.xpose.msra.mxu0 0.0
        %1773 = vmatprep.subr.mxu0 0.0
        %1774 = vmatpush1.xpose.msra.mxu0 0.0
        %1775 = vmatprep.subr.mxu0 0.0
        %1776 = vmatpush1.xpose.msra.mxu0 0.0
        %1777 = vmatprep.subr.mxu0 0.0
        %1778 = vmatpush1.xpose.msra.mxu0 0.0
        %1779 = vmatprep.subr.mxu0 0.0
        %1780 = vmatpush1.xpose.msra.mxu0 0.0
        %1781 = vmatprep.subr.mxu0 0.0
        %1782 = vmatpush1.xpose.msra.mxu0 0.0
        %1783 = vmatprep.subr.mxu0 0.0
        %1784 = vmatpush1.xpose.msra.mxu0 0.0
        %1785 = vmatprep.subr.mxu0 0.0
        %1786 = vmatpush1.xpose.msra.mxu0 0.0
        %1787 = vmatprep.subr.mxu0 0.0
        %1788 = vmatpush1.xpose.msra.mxu0 0.0
        %1789 = vmatprep.subr.mxu0 0.0
        %1790 = vmatpush1.xpose.msra.mxu0 0.0
        %1791 = vmatprep.subr.mxu0 0.0
        %1792 = vmatpush1.xpose.msra.mxu0 0.0
        %1793 = vmatprep.subr.mxu0 0.0
        %1794 = vmatpush1.xpose.msra.mxu0 0.0
        %1795 = vmatprep.subr.mxu0 0.0
        %1796 = vmatpush1.xpose.msra.mxu0 0.0
        %1797 = vmatprep.mubr.f32.mxu0 0.0
        %1798 = vmatmul.mubr.f32.gmra.mrb[0].mxu0 %v1725
        %v1799 = vpop.f32.mrb[0].mxu0
        %v1800 = vadd.f32 0.0, %v1799
        %v1801 = vpop.f32.mrb[0].mxu0
        %1802 = vmatprep.mubr.f32.mxu0 0.0
        %1803 = vmatmul.mubr.f32.gmra.mrb[0].mxu0 %v1727
        %v1804 = vpop.f32.mrb[0].mxu0
        %v1805 = vadd.f32 0.0, %v1804
        %v1806 = vpop.f32.mrb[0].mxu0
        %1807 = vdwg.mxu0
        %v1808 = vsel %vm997, %v1709, -inf
        %1809 = vmax.xlane.f32.xlu0 %v1808
        %v1810 = vpop.xlane.xlu0 %1809
        %v1811 = vsel %vm997, %v1714, -inf
        %1812 = vmax.xlane.f32.xlu0 %v1811
        %v1813 = vpop.xlane.xlu0 %1812
        %v1814 = vsel %vm997, %v1800, -inf
        %1815 = vmax.xlane.f32.xlu0 %v1814
        %v1816 = vpop.xlane.xlu0 %1815
        %v1817 = vsel %vm997, %v1805, -inf
        %1818 = vmax.xlane.f32.xlu0 %v1817
        %v1819 = vpop.xlane.xlu0 %1818
        %v1820 = vsub.f32 %v1709, %v1810
        %v1821 = vsub.f32 %v1714, %v1813
        %v1822 = vsub.f32 %v1800, %v1816
        %v1823 = vsub.f32 %v1805, %v1819
        %v1824 = vmul.f32 %v1820, 1.442695
        %v1825 = vpow.pop %v1824
        %v1826 = vmul.f32 %v1821, 1.442695
        %v1827 = vpow.pop %v1826
        %v1828 = vmul.f32 %v1822, 1.442695
        %v1829 = vpow.pop %v1828
        %v1830 = vmul.f32 %v1823, 1.442695
        %v1831 = vpow.pop %v1830
        %v1832 = vsel %vm997, %v1825, 0.0
        %1833 = vadd.xlane.f32.xlu0 %v1832
        %v1834 = vpop.xlane.xlu0 %1833
        %v1835 = vsel %vm997, %v1827, 0.0
        %1836 = vadd.xlane.f32.xlu0 %v1835
        %v1837 = vpop.xlane.xlu0 %1836
        %v1838 = vsel %vm997, %v1829, 0.0
        %1839 = vadd.xlane.f32.xlu0 %v1838
        %v1840 = vpop.xlane.xlu0 %1839
        %v1841 = vsel %vm997, %v1831, 0.0
        %1842 = vadd.xlane.f32.xlu0 %v1841
        %v1843 = vpop.xlane.xlu0 %1842
        %v1844 = vrcp.pop %v1834
        %v1845 = vrcp.pop %v1837
        %v1846 = vrcp.pop %v1840
        %v1847 = vrcp.pop %v1843
        %v1848 = vmul.f32 %v1825, %v1844
        %v1849 = vmul.f32 %v1827, %v1845
        %v1850 = vmul.f32 %v1829, %v1846
        %v1851 = vmul.f32 %v1831, %v1847
        %1852 = vrot.lane.b32.xlu0 %v1211, 56
        %v1853 = vpop.permute.xlu0 %1852
        %1854 = vrot.lane.b32.xlu0 %v1216, 56
        %v1855 = vpop.permute.xlu0 %1854
        %v1859 = vsel %vm997, %v1848, 0
        %v1862 = vsel %vm997, %v1849, 0
        %1864 = vmatprep.subr.mxu0 0.0
        %1865 = vmatpush1.msra.mxu0 %v1853
        %1866 = vmatprep.subr.mxu0 0.0
        %1867 = vmatpush1.msra.mxu0 %v1855
        %1868 = vmatprep.subr.mxu0 0.0
        %1869 = vmatpush1.msra.mxu0 0.0
        %1870 = vmatprep.subr.mxu0 0.0
        %1871 = vmatpush1.msra.mxu0 0.0
        %1872 = vmatprep.subr.mxu0 0.0
        %1873 = vmatpush1.msra.mxu0 0.0
        %1874 = vmatprep.subr.mxu0 0.0
        %1875 = vmatpush1.msra.mxu0 0.0
        %1876 = vmatprep.subr.mxu0 0.0
        %1877 = vmatpush1.msra.mxu0 0.0
        %1878 = vmatprep.subr.mxu0 0.0
        %1879 = vmatpush1.msra.mxu0 0.0
        %1880 = vmatprep.subr.mxu0 0.0
        %1881 = vmatpush1.msra.mxu0 0.0
        %1882 = vmatprep.subr.mxu0 0.0
        %1883 = vmatpush1.msra.mxu0 0.0
        %1884 = vmatprep.subr.mxu0 0.0
        %1885 = vmatpush1.msra.mxu0 0.0
        %1886 = vmatprep.subr.mxu0 0.0
        %1887 = vmatpush1.msra.mxu0 0.0
        %1888 = vmatprep.subr.mxu0 0.0
        %1889 = vmatpush1.msra.mxu0 0.0
        %1890 = vmatprep.subr.mxu0 0.0
        %1891 = vmatpush1.msra.mxu0 0.0
        %1892 = vmatprep.subr.mxu0 0.0
        %1893 = vmatpush1.msra.mxu0 0.0
        %1894 = vmatprep.subr.mxu0 0.0
        %1895 = vmatpush1.msra.mxu0 0.0
        %1896 = vmatprep.subr.mxu0 0.0
        %1897 = vmatpush1.msra.mxu0 0.0
        %1898 = vmatprep.subr.mxu0 0.0
        %1899 = vmatpush1.msra.mxu0 0.0
        %1900 = vmatprep.subr.mxu0 0.0
        %1901 = vmatpush1.msra.mxu0 0.0
        %1902 = vmatprep.subr.mxu0 0.0
        %1903 = vmatpush1.msra.mxu0 0.0
        %1904 = vmatprep.subr.mxu0 0.0
        %1905 = vmatpush1.msra.mxu0 0.0
        %1906 = vmatprep.subr.mxu0 0.0
        %1907 = vmatpush1.msra.mxu0 0.0
        %1908 = vmatprep.subr.mxu0 0.0
        %1909 = vmatpush1.msra.mxu0 0.0
        %1910 = vmatprep.subr.mxu0 0.0
        %1911 = vmatpush1.msra.mxu0 0.0
        %1912 = vmatprep.subr.mxu0 0.0
        %1913 = vmatpush1.msra.mxu0 0.0
        %1914 = vmatprep.subr.mxu0 0.0
        %1915 = vmatpush1.msra.mxu0 0.0
        %1916 = vmatprep.subr.mxu0 0.0
        %1917 = vmatpush1.msra.mxu0 0.0
        %1918 = vmatprep.subr.mxu0 0.0
        %1919 = vmatpush1.msra.mxu0 0.0
        %1920 = vmatprep.subr.mxu0 0.0
        %1921 = vmatpush1.msra.mxu0 0.0
        %1922 = vmatprep.subr.mxu0 0.0
        %1923 = vmatpush1.msra.mxu0 0.0
        %1924 = vmatprep.subr.mxu0 0.0
        %1925 = vmatpush1.msra.mxu0 0.0
        %1926 = vmatprep.subr.mxu0 0.0
        %1927 = vmatpush1.msra.mxu0 0.0
        %1928 = vmatprep.mubr.f32.mxu0 0.0
        %1929 = vmatmul.mubr.f32.gmra.mrb[0].mxu0 %v1859
        %v1930 = vpop.f32.mrb[0].mxu0
        %v1931 = vadd.f32 0.0, %v1930
        %v1932 = vpop.f32.mrb[0].mxu0
        %1933 = vmatprep.mubr.f32.mxu0 0.0
        %1934 = vmatmul.mubr.f32.gmra.mrb[0].mxu0 %v1862
        %v1935 = vpop.f32.mrb[0].mxu0
        %v1936 = vadd.f32 0.0, %v1935
        %v1937 = vpop.f32.mrb[0].mxu0
        %1938 = vdwg.mxu0
        %1939 = vrot.lane.b32.xlu0 %v1221, 56
        %v1940 = vpop.permute.xlu0 %1939
        %1941 = vrot.lane.b32.xlu0 %v1226, 56
        %v1942 = vpop.permute.xlu0 %1941
        %v1946 = vsel %vm997, %v1850, 0
        %v1949 = vsel %vm997, %v1851, 0
        %1951 = vmatprep.subr.mxu0 0.0
        %1952 = vmatpush1.msra.mxu0 %v1940
        %1953 = vmatprep.subr.mxu0 0.0
        %1954 = vmatpush1.msra.mxu0 %v1942
        %1955 = vmatprep.subr.mxu0 0.0
        %1956 = vmatpush1.msra.mxu0 0.0
        %1957 = vmatprep.subr.mxu0 0.0
        %1958 = vmatpush1.msra.mxu0 0.0
        %1959 = vmatprep.subr.mxu0 0.0
        %1960 = vmatpush1.msra.mxu0 0.0
        %1961 = vmatprep.subr.mxu0 0.0
        %1962 = vmatpush1.msra.mxu0 0.0
        %1963 = vmatprep.subr.mxu0 0.0
        %1964 = vmatpush1.msra.mxu0 0.0
        %1965 = vmatprep.subr.mxu0 0.0
        %1966 = vmatpush1.msra.mxu0 0.0
        %1967 = vmatprep.subr.mxu0 0.0
        %1968 = vmatpush1.msra.mxu0 0.0
        %1969 = vmatprep.subr.mxu0 0.0
        %1970 = vmatpush1.msra.mxu0 0.0
        %1971 = vmatprep.subr.mxu0 0.0
        %1972 = vmatpush1.msra.mxu0 0.0
        %1973 = vmatprep.subr.mxu0 0.0
        %1974 = vmatpush1.msra.mxu0 0.0
        %1975 = vmatprep.subr.mxu0 0.0
        %1976 = vmatpush1.msra.mxu0 0.0
        %1977 = vmatprep.subr.mxu0 0.0
        %1978 = vmatpush1.msra.mxu0 0.0
        %1979 = vmatprep.subr.mxu0 0.0
        %1980 = vmatpush1.msra.mxu0 0.0
        %1981 = vmatprep.subr.mxu0 0.0
        %1982 = vmatpush1.msra.mxu0 0.0
        %1983 = vmatprep.subr.mxu0 0.0
        %1984 = vmatpush1.msra.mxu0 0.0
        %1985 = vmatprep.subr.mxu0 0.0
        %1986 = vmatpush1.msra.mxu0 0.0
        %1987 = vmatprep.subr.mxu0 0.0
        %1988 = vmatpush1.msra.mxu0 0.0
        %1989 = vmatprep.subr.mxu0 0.0
        %1990 = vmatpush1.msra.mxu0 0.0
        %1991 = vmatprep.subr.mxu0 0.0
        %1992 = vmatpush1.msra.mxu0 0.0
        %1993 = vmatprep.subr.mxu0 0.0
        %1994 = vmatpush1.msra.mxu0 0.0
        %1995 = vmatprep.subr.mxu0 0.0
        %1996 = vmatpush1.msra.mxu0 0.0
        %1997 = vmatprep.subr.mxu0 0.0
        %1998 = vmatpush1.msra.mxu0 0.0
        %1999 = vmatprep.subr.mxu0 0.0
        %2000 = vmatpush1.msra.mxu0 0.0
        %2001 = vmatprep.subr.mxu0 0.0
        %2002 = vmatpush1.msra.mxu0 0.0
        %2003 = vmatprep.subr.mxu0 0.0
        %2004 = vmatpush1.msra.mxu0 0.0
        %2005 = vmatprep.subr.mxu0 0.0
        %2006 = vmatpush1.msra.mxu0 0.0
        %2007 = vmatprep.subr.mxu0 0.0
        %2008 = vmatpush1.msra.mxu0 0.0
        %2009 = vmatprep.subr.mxu0 0.0
        %2010 = vmatpush1.msra.mxu0 0.0
        %2011 = vmatprep.subr.mxu0 0.0
        %2012 = vmatpush1.msra.mxu0 0.0
        %2013 = vmatprep.subr.mxu0 0.0
        %2014 = vmatpush1.msra.mxu0 0.0
        %2015 = vmatprep.mubr.f32.mxu0 0.0
        %2016 = vmatmul.mubr.f32.gmra.mrb[0].mxu0 %v1946
        %v2017 = vpop.f32.mrb[0].mxu0
        %v2018 = vadd.f32 0.0, %v2017
        %v2019 = vpop.f32.mrb[0].mxu0
        %2020 = vmatprep.mubr.f32.mxu0 0.0
        %2021 = vmatmul.mubr.f32.gmra.mrb[0].mxu0 %v1949
        %v2022 = vpop.f32.mrb[0].mxu0
        %v2023 = vadd.f32 0.0, %v2022
        %v2024 = vpop.f32.mrb[0].mxu0
        %2025 = vdwg.mxu0
        %2026 = vrot.lane.b32.xlu0 %v1211, 112
        %v2027 = vpop.permute.xlu0 %2026
        %2028 = vrot.lane.b32.xlu0 %v1216, 112
        %v2029 = vpop.permute.xlu0 %2028
        %2030 = vrot.lane.b32.xlu0 %v1211, 80
        %v2031 = vpop.permute.xlu0 %2030
        %2032 = vrot.lane.b32.xlu0 %v1216, 80
        %v2033 = vpop.permute.xlu0 %2032
        %v2034 = vsel %vm1235, %v2027, 0
        %v2036 = vsel %vm1235, %v2029, 0
        %v2038 = vsel %vm1235, %v2031, 0
        %v2040 = vsel %vm1235, %v2033, 0
        %2042 = vmatprep.subr.mxu0 0.0
        %2043 = vmatpush1.xpose.msra.mxu0 %v2038
        %2044 = vmatprep.subr.mxu0 0.0
        %2045 = vmatpush1.xpose.msra.mxu0 %v2040
        %2046 = vmatprep.subr.mxu0 0.0
        %2047 = vmatpush1.xpose.msra.mxu0 0.0
        %2048 = vmatprep.subr.mxu0 0.0
        %2049 = vmatpush1.xpose.msra.mxu0 0.0
        %2050 = vmatprep.subr.mxu0 0.0
        %2051 = vmatpush1.xpose.msra.mxu0 0.0
        %2052 = vmatprep.subr.mxu0 0.0
        %2053 = vmatpush1.xpose.msra.mxu0 0.0
        %2054 = vmatprep.subr.mxu0 0.0
        %2055 = vmatpush1.xpose.msra.mxu0 0.0
        %2056 = vmatprep.subr.mxu0 0.0
        %2057 = vmatpush1.xpose.msra.mxu0 0.0
        %2058 = vmatprep.subr.mxu0 0.0
        %2059 = vmatpush1.xpose.msra.mxu0 0.0
        %2060 = vmatprep.subr.mxu0 0.0
        %2061 = vmatpush1.xpose.msra.mxu0 0.0
        %2062 = vmatprep.subr.mxu0 0.0
        %2063 = vmatpush1.xpose.msra.mxu0 0.0
        %2064 = vmatprep.subr.mxu0 0.0
        %2065 = vmatpush1.xpose.msra.mxu0 0.0
        %2066 = vmatprep.subr.mxu0 0.0
        %2067 = vmatpush1.xpose.msra.mxu0 0.0
        %2068 = vmatprep.subr.mxu0 0.0
        %2069 = vmatpush1.xpose.msra.mxu0 0.0
        %2070 = vmatprep.subr.mxu0 0.0
        %2071 = vmatpush1.xpose.msra.mxu0 0.0
        %2072 = vmatprep.subr.mxu0 0.0
        %2073 = vmatpush1.xpose.msra.mxu0 0.0
        %2074 = vmatprep.subr.mxu0 0.0
        %2075 = vmatpush1.xpose.msra.mxu0 0.0
        %2076 = vmatprep.subr.mxu0 0.0
        %2077 = vmatpush1.xpose.msra.mxu0 0.0
        %2078 = vmatprep.subr.mxu0 0.0
        %2079 = vmatpush1.xpose.msra.mxu0 0.0
        %2080 = vmatprep.subr.mxu0 0.0
        %2081 = vmatpush1.xpose.msra.mxu0 0.0
        %2082 = vmatprep.subr.mxu0 0.0
        %2083 = vmatpush1.xpose.msra.mxu0 0.0
        %2084 = vmatprep.subr.mxu0 0.0
        %2085 = vmatpush1.xpose.msra.mxu0 0.0
        %2086 = vmatprep.subr.mxu0 0.0
        %2087 = vmatpush1.xpose.msra.mxu0 0.0
        %2088 = vmatprep.subr.mxu0 0.0
        %2089 = vmatpush1.xpose.msra.mxu0 0.0
        %2090 = vmatprep.subr.mxu0 0.0
        %2091 = vmatpush1.xpose.msra.mxu0 0.0
        %2092 = vmatprep.subr.mxu0 0.0
        %2093 = vmatpush1.xpose.msra.mxu0 0.0
        %2094 = vmatprep.subr.mxu0 0.0
        %2095 = vmatpush1.xpose.msra.mxu0 0.0
        %2096 = vmatprep.subr.mxu0 0.0
        %2097 = vmatpush1.xpose.msra.mxu0 0.0
        %2098 = vmatprep.subr.mxu0 0.0
        %2099 = vmatpush1.xpose.msra.mxu0 0.0
        %2100 = vmatprep.subr.mxu0 0.0
        %2101 = vmatpush1.xpose.msra.mxu0 0.0
        %2102 = vmatprep.subr.mxu0 0.0
        %2103 = vmatpush1.xpose.msra.mxu0 0.0
        %2104 = vmatprep.subr.mxu0 0.0
        %2105 = vmatpush1.xpose.msra.mxu0 0.0
        %2106 = vmatprep.mubr.f32.mxu0 0.0
        %2107 = vmatmul.mubr.f32.gmra.mrb[0].mxu0 %v2034
        %v2108 = vpop.f32.mrb[0].mxu0
        %v2109 = vadd.f32 0.0, %v2108
        %v2110 = vpop.f32.mrb[0].mxu0
        %2111 = vmatprep.mubr.f32.mxu0 0.0
        %2112 = vmatmul.mubr.f32.gmra.mrb[0].mxu0 %v2036
        %v2113 = vpop.f32.mrb[0].mxu0
        %v2114 = vadd.f32 0.0, %v2113
        %v2115 = vpop.f32.mrb[0].mxu0
        %2116 = vdwg.mxu0
        %2117 = vrot.lane.b32.xlu0 %v1221, 112
        %v2118 = vpop.permute.xlu0 %2117
        %2119 = vrot.lane.b32.xlu0 %v1226, 112
        %v2120 = vpop.permute.xlu0 %2119
        %2121 = vrot.lane.b32.xlu0 %v1221, 80
        %v2122 = vpop.permute.xlu0 %2121
        %2123 = vrot.lane.b32.xlu0 %v1226, 80
        %v2124 = vpop.permute.xlu0 %2123
        %v2125 = vsel %vm1235, %v2118, 0
        %v2127 = vsel %vm1235, %v2120, 0
        %v2129 = vsel %vm1235, %v2122, 0
        %v2131 = vsel %vm1235, %v2124, 0
        %2133 = vmatprep.subr.mxu0 0.0
        %2134 = vmatpush1.xpose.msra.mxu0 %v2129
        %2135 = vmatprep.subr.mxu0 0.0
        %2136 = vmatpush1.xpose.msra.mxu0 %v2131
        %2137 = vmatprep.subr.mxu0 0.0
        %2138 = vmatpush1.xpose.msra.mxu0 0.0
        %2139 = vmatprep.subr.mxu0 0.0
        %2140 = vmatpush1.xpose.msra.mxu0 0.0
        %2141 = vmatprep.subr.mxu0 0.0
        %2142 = vmatpush1.xpose.msra.mxu0 0.0
        %2143 = vmatprep.subr.mxu0 0.0
        %2144 = vmatpush1.xpose.msra.mxu0 0.0
        %2145 = vmatprep.subr.mxu0 0.0
        %2146 = vmatpush1.xpose.msra.mxu0 0.0
        %2147 = vmatprep.subr.mxu0 0.0
        %2148 = vmatpush1.xpose.msra.mxu0 0.0
        %2149 = vmatprep.subr.mxu0 0.0
        %2150 = vmatpush1.xpose.msra.mxu0 0.0
        %2151 = vmatprep.subr.mxu0 0.0
        %2152 = vmatpush1.xpose.msra.mxu0 0.0
        %2153 = vmatprep.subr.mxu0 0.0
        %2154 = vmatpush1.xpose.msra.mxu0 0.0
        %2155 = vmatprep.subr.mxu0 0.0
        %2156 = vmatpush1.xpose.msra.mxu0 0.0
        %2157 = vmatprep.subr.mxu0 0.0
        %2158 = vmatpush1.xpose.msra.mxu0 0.0
        %2159 = vmatprep.subr.mxu0 0.0
        %2160 = vmatpush1.xpose.msra.mxu0 0.0
        %2161 = vmatprep.subr.mxu0 0.0
        %2162 = vmatpush1.xpose.msra.mxu0 0.0
        %2163 = vmatprep.subr.mxu0 0.0
        %2164 = vmatpush1.xpose.msra.mxu0 0.0
        %2165 = vmatprep.subr.mxu0 0.0
        %2166 = vmatpush1.xpose.msra.mxu0 0.0
        %2167 = vmatprep.subr.mxu0 0.0
        %2168 = vmatpush1.xpose.msra.mxu0 0.0
        %2169 = vmatprep.subr.mxu0 0.0
        %2170 = vmatpush1.xpose.msra.mxu0 0.0
        %2171 = vmatprep.subr.mxu0 0.0
        %2172 = vmatpush1.xpose.msra.mxu0 0.0
        %2173 = vmatprep.subr.mxu0 0.0
        %2174 = vmatpush1.xpose.msra.mxu0 0.0
        %2175 = vmatprep.subr.mxu0 0.0
        %2176 = vmatpush1.xpose.msra.mxu0 0.0
        %2177 = vmatprep.subr.mxu0 0.0
        %2178 = vmatpush1.xpose.msra.mxu0 0.0
        %2179 = vmatprep.subr.mxu0 0.0
        %2180 = vmatpush1.xpose.msra.mxu0 0.0
        %2181 = vmatprep.subr.mxu0 0.0
        %2182 = vmatpush1.xpose.msra.mxu0 0.0
        %2183 = vmatprep.subr.mxu0 0.0
        %2184 = vmatpush1.xpose.msra.mxu0 0.0
        %2185 = vmatprep.subr.mxu0 0.0
        %2186 = vmatpush1.xpose.msra.mxu0 0.0
        %2187 = vmatprep.subr.mxu0 0.0
        %2188 = vmatpush1.xpose.msra.mxu0 0.0
        %2189 = vmatprep.subr.mxu0 0.0
        %2190 = vmatpush1.xpose.msra.mxu0 0.0
        %2191 = vmatprep.subr.mxu0 0.0
        %2192 = vmatpush1.xpose.msra.mxu0 0.0
        %2193 = vmatprep.subr.mxu0 0.0
        %2194 = vmatpush1.xpose.msra.mxu0 0.0
        %2195 = vmatprep.subr.mxu0 0.0
        %2196 = vmatpush1.xpose.msra.mxu0 0.0
        %2197 = vmatprep.mubr.f32.mxu0 0.0
        %2198 = vmatmul.mubr.f32.gmra.mrb[0].mxu0 %v2125
        %v2199 = vpop.f32.mrb[0].mxu0
        %v2200 = vadd.f32 0.0, %v2199
        %v2201 = vpop.f32.mrb[0].mxu0
        %2202 = vmatprep.mubr.f32.mxu0 0.0
        %2203 = vmatmul.mubr.f32.gmra.mrb[0].mxu0 %v2127
        %v2204 = vpop.f32.mrb[0].mxu0
        %v2205 = vadd.f32 0.0, %v2204
        %v2206 = vpop.f32.mrb[0].mxu0
        %2207 = vdwg.mxu0
        %v2208 = vsel %vm997, %v2109, -inf
        %2209 = vmax.xlane.f32.xlu0 %v2208
        %v2210 = vpop.xlane.xlu0 %2209
        %v2211 = vsel %vm997, %v2114, -inf
        %2212 = vmax.xlane.f32.xlu0 %v2211
        %v2213 = vpop.xlane.xlu0 %2212
        %v2214 = vsel %vm997, %v2200, -inf
        %2215 = vmax.xlane.f32.xlu0 %v2214
        %v2216 = vpop.xlane.xlu0 %2215
        %v2217 = vsel %vm997, %v2205, -inf
        %2218 = vmax.xlane.f32.xlu0 %v2217
        %v2219 = vpop.xlane.xlu0 %2218
        %v2220 = vsub.f32 %v2109, %v2210
        %v2221 = vsub.f32 %v2114, %v2213
        %v2222 = vsub.f32 %v2200, %v2216
        %v2223 = vsub.f32 %v2205, %v2219
        %v2224 = vmul.f32 %v2220, 1.442695
        %v2225 = vpow.pop %v2224
        %v2226 = vmul.f32 %v2221, 1.442695
        %v2227 = vpow.pop %v2226
        %v2228 = vmul.f32 %v2222, 1.442695
        %v2229 = vpow.pop %v2228
        %v2230 = vmul.f32 %v2223, 1.442695
        %v2231 = vpow.pop %v2230
        %v2232 = vsel %vm997, %v2225, 0.0
        %2233 = vadd.xlane.f32.xlu0 %v2232
        %v2234 = vpop.xlane.xlu0 %2233
        %v2235 = vsel %vm997, %v2227, 0.0
        %2236 = vadd.xlane.f32.xlu0 %v2235
        %v2237 = vpop.xlane.xlu0 %2236
        %v2238 = vsel %vm997, %v2229, 0.0
        %2239 = vadd.xlane.f32.xlu0 %v2238
        %v2240 = vpop.xlane.xlu0 %2239
        %v2241 = vsel %vm997, %v2231, 0.0
        %2242 = vadd.xlane.f32.xlu0 %v2241
        %v2243 = vpop.xlane.xlu0 %2242
        %v2244 = vrcp.pop %v2234
        %v2245 = vrcp.pop %v2237
        %v2246 = vrcp.pop %v2240
        %v2247 = vrcp.pop %v2243
        %v2248 = vmul.f32 %v2225, %v2244
        %v2249 = vmul.f32 %v2227, %v2245
        %v2250 = vmul.f32 %v2229, %v2246
        %v2251 = vmul.f32 %v2231, %v2247
        %2252 = vrot.lane.b32.xlu0 %v1211, 48
        %v2253 = vpop.permute.xlu0 %2252
        %2254 = vrot.lane.b32.xlu0 %v1216, 48
        %v2255 = vpop.permute.xlu0 %2254
        %v2259 = vsel %vm997, %v2248, 0
        %v2262 = vsel %vm997, %v2249, 0
        %2264 = vmatprep.subr.mxu0 0.0
        %2265 = vmatpush1.msra.mxu0 %v2253
        %2266 = vmatprep.subr.mxu0 0.0
        %2267 = vmatpush1.msra.mxu0 %v2255
        %2268 = vmatprep.subr.mxu0 0.0
        %2269 = vmatpush1.msra.mxu0 0.0
        %2270 = vmatprep.subr.mxu0 0.0
        %2271 = vmatpush1.msra.mxu0 0.0
        %2272 = vmatprep.subr.mxu0 0.0
        %2273 = vmatpush1.msra.mxu0 0.0
        %2274 = vmatprep.subr.mxu0 0.0
        %2275 = vmatpush1.msra.mxu0 0.0
        %2276 = vmatprep.subr.mxu0 0.0
        %2277 = vmatpush1.msra.mxu0 0.0
        %2278 = vmatprep.subr.mxu0 0.0
        %2279 = vmatpush1.msra.mxu0 0.0
        %2280 = vmatprep.subr.mxu0 0.0
        %2281 = vmatpush1.msra.mxu0 0.0
        %2282 = vmatprep.subr.mxu0 0.0
        %2283 = vmatpush1.msra.mxu0 0.0
        %2284 = vmatprep.subr.mxu0 0.0
        %2285 = vmatpush1.msra.mxu0 0.0
        %2286 = vmatprep.subr.mxu0 0.0
        %2287 = vmatpush1.msra.mxu0 0.0
        %2288 = vmatprep.subr.mxu0 0.0
        %2289 = vmatpush1.msra.mxu0 0.0
        %2290 = vmatprep.subr.mxu0 0.0
        %2291 = vmatpush1.msra.mxu0 0.0
        %2292 = vmatprep.subr.mxu0 0.0
        %2293 = vmatpush1.msra.mxu0 0.0
        %2294 = vmatprep.subr.mxu0 0.0
        %2295 = vmatpush1.msra.mxu0 0.0
        %2296 = vmatprep.subr.mxu0 0.0
        %2297 = vmatpush1.msra.mxu0 0.0
        %2298 = vmatprep.subr.mxu0 0.0
        %2299 = vmatpush1.msra.mxu0 0.0
        %2300 = vmatprep.subr.mxu0 0.0
        %2301 = vmatpush1.msra.mxu0 0.0
        %2302 = vmatprep.subr.mxu0 0.0
        %2303 = vmatpush1.msra.mxu0 0.0
        %2304 = vmatprep.subr.mxu0 0.0
        %2305 = vmatpush1.msra.mxu0 0.0
        %2306 = vmatprep.subr.mxu0 0.0
        %2307 = vmatpush1.msra.mxu0 0.0
        %2308 = vmatprep.subr.mxu0 0.0
        %2309 = vmatpush1.msra.mxu0 0.0
        %2310 = vmatprep.subr.mxu0 0.0
        %2311 = vmatpush1.msra.mxu0 0.0
        %2312 = vmatprep.subr.mxu0 0.0
        %2313 = vmatpush1.msra.mxu0 0.0
        %2314 = vmatprep.subr.mxu0 0.0
        %2315 = vmatpush1.msra.mxu0 0.0
        %2316 = vmatprep.subr.mxu0 0.0
        %2317 = vmatpush1.msra.mxu0 0.0
        %2318 = vmatprep.subr.mxu0 0.0
        %2319 = vmatpush1.msra.mxu0 0.0
        %2320 = vmatprep.subr.mxu0 0.0
        %2321 = vmatpush1.msra.mxu0 0.0
        %2322 = vmatprep.subr.mxu0 0.0
        %2323 = vmatpush1.msra.mxu0 0.0
        %2324 = vmatprep.subr.mxu0 0.0
        %2325 = vmatpush1.msra.mxu0 0.0
        %2326 = vmatprep.subr.mxu0 0.0
        %2327 = vmatpush1.msra.mxu0 0.0
        %2328 = vmatprep.mubr.f32.mxu0 0.0
        %2329 = vmatmul.mubr.f32.gmra.mrb[0].mxu0 %v2259
        %v2330 = vpop.f32.mrb[0].mxu0
        %v2331 = vadd.f32 0.0, %v2330
        %v2332 = vpop.f32.mrb[0].mxu0
        %2333 = vmatprep.mubr.f32.mxu0 0.0
        %2334 = vmatmul.mubr.f32.gmra.mrb[0].mxu0 %v2262
        %v2335 = vpop.f32.mrb[0].mxu0
        %v2336 = vadd.f32 0.0, %v2335
        %v2337 = vpop.f32.mrb[0].mxu0
        %2338 = vdwg.mxu0
        %2339 = vrot.lane.b32.xlu0 %v1221, 48
        %v2340 = vpop.permute.xlu0 %2339
        %2341 = vrot.lane.b32.xlu0 %v1226, 48
        %v2342 = vpop.permute.xlu0 %2341
        %v2346 = vsel %vm997, %v2250, 0
        %v2349 = vsel %vm997, %v2251, 0
        %2351 = vmatprep.subr.mxu0 0.0
        %2352 = vmatpush1.msra.mxu0 %v2340
        %2353 = vmatprep.subr.mxu0 0.0
        %2354 = vmatpush1.msra.mxu0 %v2342
        %2355 = vmatprep.subr.mxu0 0.0
        %2356 = vmatpush1.msra.mxu0 0.0
        %2357 = vmatprep.subr.mxu0 0.0
        %2358 = vmatpush1.msra.mxu0 0.0
        %2359 = vmatprep.subr.mxu0 0.0
        %2360 = vmatpush1.msra.mxu0 0.0
        %2361 = vmatprep.subr.mxu0 0.0
        %2362 = vmatpush1.msra.mxu0 0.0
        %2363 = vmatprep.subr.mxu0 0.0
        %2364 = vmatpush1.msra.mxu0 0.0
        %2365 = vmatprep.subr.mxu0 0.0
        %2366 = vmatpush1.msra.mxu0 0.0
        %2367 = vmatprep.subr.mxu0 0.0
        %2368 = vmatpush1.msra.mxu0 0.0
        %2369 = vmatprep.subr.mxu0 0.0
        %2370 = vmatpush1.msra.mxu0 0.0
        %2371 = vmatprep.subr.mxu0 0.0
        %2372 = vmatpush1.msra.mxu0 0.0
        %2373 = vmatprep.subr.mxu0 0.0
        %2374 = vmatpush1.msra.mxu0 0.0
        %2375 = vmatprep.subr.mxu0 0.0
        %2376 = vmatpush1.msra.mxu0 0.0
        %2377 = vmatprep.subr.mxu0 0.0
        %2378 = vmatpush1.msra.mxu0 0.0
        %2379 = vmatprep.subr.mxu0 0.0
        %2380 = vmatpush1.msra.mxu0 0.0
        %2381 = vmatprep.subr.mxu0 0.0
        %2382 = vmatpush1.msra.mxu0 0.0
        %2383 = vmatprep.subr.mxu0 0.0
        %2384 = vmatpush1.msra.mxu0 0.0
        %2385 = vmatprep.subr.mxu0 0.0
        %2386 = vmatpush1.msra.mxu0 0.0
        %2387 = vmatprep.subr.mxu0 0.0
        %2388 = vmatpush1.msra.mxu0 0.0
        %2389 = vmatprep.subr.mxu0 0.0
        %2390 = vmatpush1.msra.mxu0 0.0
        %2391 = vmatprep.subr.mxu0 0.0
        %2392 = vmatpush1.msra.mxu0 0.0
        %2393 = vmatprep.subr.mxu0 0.0
        %2394 = vmatpush1.msra.mxu0 0.0
        %2395 = vmatprep.subr.mxu0 0.0
        %2396 = vmatpush1.msra.mxu0 0.0
        %2397 = vmatprep.subr.mxu0 0.0
        %2398 = vmatpush1.msra.mxu0 0.0
        %2399 = vmatprep.subr.mxu0 0.0
        %2400 = vmatpush1.msra.mxu0 0.0
        %2401 = vmatprep.subr.mxu0 0.0
        %2402 = vmatpush1.msra.mxu0 0.0
        %2403 = vmatprep.subr.mxu0 0.0
        %2404 = vmatpush1.msra.mxu0 0.0
        %2405 = vmatprep.subr.mxu0 0.0
        %2406 = vmatpush1.msra.mxu0 0.0
        %2407 = vmatprep.subr.mxu0 0.0
        %2408 = vmatpush1.msra.mxu0 0.0
        %2409 = vmatprep.subr.mxu0 0.0
        %2410 = vmatpush1.msra.mxu0 0.0
        %2411 = vmatprep.subr.mxu0 0.0
        %2412 = vmatpush1.msra.mxu0 0.0
        %2413 = vmatprep.subr.mxu0 0.0
        %2414 = vmatpush1.msra.mxu0 0.0
        %2415 = vmatprep.mubr.f32.mxu0 0.0
        %2416 = vmatmul.mubr.f32.gmra.mrb[0].mxu0 %v2346
        %v2417 = vpop.f32.mrb[0].mxu0
        %v2418 = vadd.f32 0.0, %v2417
        %v2419 = vpop.f32.mrb[0].mxu0
        %2420 = vmatprep.mubr.f32.mxu0 0.0
        %2421 = vmatmul.mubr.f32.gmra.mrb[0].mxu0 %v2349
        %v2422 = vpop.f32.mrb[0].mxu0
        %v2423 = vadd.f32 0.0, %v2422
        %v2424 = vpop.f32.mrb[0].mxu0
        %2425 = vdwg.mxu0
        %2426 = vrot.lane.b32.xlu0 %v1211, 104
        %v2427 = vpop.permute.xlu0 %2426
        %2428 = vrot.lane.b32.xlu0 %v1216, 104
        %v2429 = vpop.permute.xlu0 %2428
        %2430 = vrot.lane.b32.xlu0 %v1211, 72
        %v2431 = vpop.permute.xlu0 %2430
        %2432 = vrot.lane.b32.xlu0 %v1216, 72
        %v2433 = vpop.permute.xlu0 %2432
        %v2434 = vsel %vm1235, %v2427, 0
        %v2436 = vsel %vm1235, %v2429, 0
        %v2438 = vsel %vm1235, %v2431, 0
        %v2440 = vsel %vm1235, %v2433, 0
        %2442 = vmatprep.subr.mxu0 0.0
        %2443 = vmatpush1.xpose.msra.mxu0 %v2438
        %2444 = vmatprep.subr.mxu0 0.0
        %2445 = vmatpush1.xpose.msra.mxu0 %v2440
        %2446 = vmatprep.subr.mxu0 0.0
        %2447 = vmatpush1.xpose.msra.mxu0 0.0
        %2448 = vmatprep.subr.mxu0 0.0
        %2449 = vmatpush1.xpose.msra.mxu0 0.0
        %2450 = vmatprep.subr.mxu0 0.0
        %2451 = vmatpush1.xpose.msra.mxu0 0.0
        %2452 = vmatprep.subr.mxu0 0.0
        %2453 = vmatpush1.xpose.msra.mxu0 0.0
        %2454 = vmatprep.subr.mxu0 0.0
        %2455 = vmatpush1.xpose.msra.mxu0 0.0
        %2456 = vmatprep.subr.mxu0 0.0
        %2457 = vmatpush1.xpose.msra.mxu0 0.0
        %2458 = vmatprep.subr.mxu0 0.0
        %2459 = vmatpush1.xpose.msra.mxu0 0.0
        %2460 = vmatprep.subr.mxu0 0.0
        %2461 = vmatpush1.xpose.msra.mxu0 0.0
        %2462 = vmatprep.subr.mxu0 0.0
        %2463 = vmatpush1.xpose.msra.mxu0 0.0
        %2464 = vmatprep.subr.mxu0 0.0
        %2465 = vmatpush1.xpose.msra.mxu0 0.0
        %2466 = vmatprep.subr.mxu0 0.0
        %2467 = vmatpush1.xpose.msra.mxu0 0.0
        %2468 = vmatprep.subr.mxu0 0.0
        %2469 = vmatpush1.xpose.msra.mxu0 0.0
        %2470 = vmatprep.subr.mxu0 0.0
        %2471 = vmatpush1.xpose.msra.mxu0 0.0
        %2472 = vmatprep.subr.mxu0 0.0
        %2473 = vmatpush1.xpose.msra.mxu0 0.0
        %2474 = vmatprep.subr.mxu0 0.0
        %2475 = vmatpush1.xpose.msra.mxu0 0.0
        %2476 = vmatprep.subr.mxu0 0.0
        %2477 = vmatpush1.xpose.msra.mxu0 0.0
        %2478 = vmatprep.subr.mxu0 0.0
        %2479 = vmatpush1.xpose.msra.mxu0 0.0
        %2480 = vmatprep.subr.mxu0 0.0
        %2481 = vmatpush1.xpose.msra.mxu0 0.0
        %2482 = vmatprep.subr.mxu0 0.0
        %2483 = vmatpush1.xpose.msra.mxu0 0.0
        %2484 = vmatprep.subr.mxu0 0.0
        %2485 = vmatpush1.xpose.msra.mxu0 0.0
        %2486 = vmatprep.subr.mxu0 0.0
        %2487 = vmatpush1.xpose.msra.mxu0 0.0
        %2488 = vmatprep.subr.mxu0 0.0
        %2489 = vmatpush1.xpose.msra.mxu0 0.0
        %2490 = vmatprep.subr.mxu0 0.0
        %2491 = vmatpush1.xpose.msra.mxu0 0.0
        %2492 = vmatprep.subr.mxu0 0.0
        %2493 = vmatpush1.xpose.msra.mxu0 0.0
        %2494 = vmatprep.subr.mxu0 0.0
        %2495 = vmatpush1.xpose.msra.mxu0 0.0
        %2496 = vmatprep.subr.mxu0 0.0
        %2497 = vmatpush1.xpose.msra.mxu0 0.0
        %2498 = vmatprep.subr.mxu0 0.0
        %2499 = vmatpush1.xpose.msra.mxu0 0.0
        %2500 = vmatprep.subr.mxu0 0.0
        %2501 = vmatpush1.xpose.msra.mxu0 0.0
        %2502 = vmatprep.subr.mxu0 0.0
        %2503 = vmatpush1.xpose.msra.mxu0 0.0
        %2504 = vmatprep.subr.mxu0 0.0
        %2505 = vmatpush1.xpose.msra.mxu0 0.0
        %2506 = vmatprep.mubr.f32.mxu0 0.0
        %2507 = vmatmul.mubr.f32.gmra.mrb[0].mxu0 %v2434
        %v2508 = vpop.f32.mrb[0].mxu0
        %v2509 = vadd.f32 0.0, %v2508
        %v2510 = vpop.f32.mrb[0].mxu0
        %2511 = vmatprep.mubr.f32.mxu0 0.0
        %2512 = vmatmul.mubr.f32.gmra.mrb[0].mxu0 %v2436
        %v2513 = vpop.f32.mrb[0].mxu0
        %v2514 = vadd.f32 0.0, %v2513
        %v2515 = vpop.f32.mrb[0].mxu0
        %2516 = vdwg.mxu0
        %2517 = vrot.lane.b32.xlu0 %v1221, 104
        %v2518 = vpop.permute.xlu0 %2517
        %2519 = vrot.lane.b32.xlu0 %v1226, 104
        %v2520 = vpop.permute.xlu0 %2519
        %2521 = vrot.lane.b32.xlu0 %v1221, 72
        %v2522 = vpop.permute.xlu0 %2521
        %2523 = vrot.lane.b32.xlu0 %v1226, 72
        %v2524 = vpop.permute.xlu0 %2523
        %v2525 = vsel %vm1235, %v2518, 0
        %v2527 = vsel %vm1235, %v2520, 0
        %v2529 = vsel %vm1235, %v2522, 0
        %v2531 = vsel %vm1235, %v2524, 0
        %2533 = vmatprep.subr.mxu0 0.0
        %2534 = vmatpush1.xpose.msra.mxu0 %v2529
        %2535 = vmatprep.subr.mxu0 0.0
        %2536 = vmatpush1.xpose.msra.mxu0 %v2531
        %2537 = vmatprep.subr.mxu0 0.0
        %2538 = vmatpush1.xpose.msra.mxu0 0.0
        %2539 = vmatprep.subr.mxu0 0.0
        %2540 = vmatpush1.xpose.msra.mxu0 0.0
        %2541 = vmatprep.subr.mxu0 0.0
        %2542 = vmatpush1.xpose.msra.mxu0 0.0
        %2543 = vmatprep.subr.mxu0 0.0
        %2544 = vmatpush1.xpose.msra.mxu0 0.0
        %2545 = vmatprep.subr.mxu0 0.0
        %2546 = vmatpush1.xpose.msra.mxu0 0.0
        %2547 = vmatprep.subr.mxu0 0.0
        %2548 = vmatpush1.xpose.msra.mxu0 0.0
        %2549 = vmatprep.subr.mxu0 0.0
        %2550 = vmatpush1.xpose.msra.mxu0 0.0
        %2551 = vmatprep.subr.mxu0 0.0
        %2552 = vmatpush1.xpose.msra.mxu0 0.0
        %2553 = vmatprep.subr.mxu0 0.0
        %2554 = vmatpush1.xpose.msra.mxu0 0.0
        %2555 = vmatprep.subr.mxu0 0.0
        %2556 = vmatpush1.xpose.msra.mxu0 0.0
        %2557 = vmatprep.subr.mxu0 0.0
        %2558 = vmatpush1.xpose.msra.mxu0 0.0
        %2559 = vmatprep.subr.mxu0 0.0
        %2560 = vmatpush1.xpose.msra.mxu0 0.0
        %2561 = vmatprep.subr.mxu0 0.0
        %2562 = vmatpush1.xpose.msra.mxu0 0.0
        %2563 = vmatprep.subr.mxu0 0.0
        %2564 = vmatpush1.xpose.msra.mxu0 0.0
        %2565 = vmatprep.subr.mxu0 0.0
        %2566 = vmatpush1.xpose.msra.mxu0 0.0
        %2567 = vmatprep.subr.mxu0 0.0
        %2568 = vmatpush1.xpose.msra.mxu0 0.0
        %2569 = vmatprep.subr.mxu0 0.0
        %2570 = vmatpush1.xpose.msra.mxu0 0.0
        %2571 = vmatprep.subr.mxu0 0.0
        %2572 = vmatpush1.xpose.msra.mxu0 0.0
        %2573 = vmatprep.subr.mxu0 0.0
        %2574 = vmatpush1.xpose.msra.mxu0 0.0
        %2575 = vmatprep.subr.mxu0 0.0
        %2576 = vmatpush1.xpose.msra.mxu0 0.0
        %2577 = vmatprep.subr.mxu0 0.0
        %2578 = vmatpush1.xpose.msra.mxu0 0.0
        %2579 = vmatprep.subr.mxu0 0.0
        %2580 = vmatpush1.xpose.msra.mxu0 0.0
        %2581 = vmatprep.subr.mxu0 0.0
        %2582 = vmatpush1.xpose.msra.mxu0 0.0
        %2583 = vmatprep.subr.mxu0 0.0
        %2584 = vmatpush1.xpose.msra.mxu0 0.0
        %2585 = vmatprep.subr.mxu0 0.0
        %2586 = vmatpush1.xpose.msra.mxu0 0.0
        %2587 = vmatprep.subr.mxu0 0.0
        %2588 = vmatpush1.xpose.msra.mxu0 0.0
        %2589 = vmatprep.subr.mxu0 0.0
        %2590 = vmatpush1.xpose.msra.mxu0 0.0
        %2591 = vmatprep.subr.mxu0 0.0
        %2592 = vmatpush1.xpose.msra.mxu0 0.0
        %2593 = vmatprep.subr.mxu0 0.0
        %2594 = vmatpush1.xpose.msra.mxu0 0.0
        %2595 = vmatprep.subr.mxu0 0.0
        %2596 = vmatpush1.xpose.msra.mxu0 0.0
        %2597 = vmatprep.mubr.f32.mxu0 0.0
        %2598 = vmatmul.mubr.f32.gmra.mrb[0].mxu0 %v2525
        %v2599 = vpop.f32.mrb[0].mxu0
        %v2600 = vadd.f32 0.0, %v2599
        %v2601 = vpop.f32.mrb[0].mxu0
        %2602 = vmatprep.mubr.f32.mxu0 0.0
        %2603 = vmatmul.mubr.f32.gmra.mrb[0].mxu0 %v2527
        %v2604 = vpop.f32.mrb[0].mxu0
        %v2605 = vadd.f32 0.0, %v2604
        %v2606 = vpop.f32.mrb[0].mxu0
        %2607 = vdwg.mxu0
        %v2608 = vsel %vm997, %v2509, -inf
        %2609 = vmax.xlane.f32.xlu0 %v2608
        %v2610 = vpop.xlane.xlu0 %2609
        %v2611 = vsel %vm997, %v2514, -inf
        %2612 = vmax.xlane.f32.xlu0 %v2611
        %v2613 = vpop.xlane.xlu0 %2612
        %v2614 = vsel %vm997, %v2600, -inf
        %2615 = vmax.xlane.f32.xlu0 %v2614
        %v2616 = vpop.xlane.xlu0 %2615
        %v2617 = vsel %vm997, %v2605, -inf
        %2618 = vmax.xlane.f32.xlu0 %v2617
        %v2619 = vpop.xlane.xlu0 %2618
        %v2620 = vsub.f32 %v2509, %v2610
        %v2621 = vsub.f32 %v2514, %v2613
        %v2622 = vsub.f32 %v2600, %v2616
        %v2623 = vsub.f32 %v2605, %v2619
        %v2624 = vmul.f32 %v2620, 1.442695
        %v2625 = vpow.pop %v2624
        %v2626 = vmul.f32 %v2621, 1.442695
        %v2627 = vpow.pop %v2626
        %v2628 = vmul.f32 %v2622, 1.442695
        %v2629 = vpow.pop %v2628
        %v2630 = vmul.f32 %v2623, 1.442695
        %v2631 = vpow.pop %v2630
        %v2632 = vsel %vm997, %v2625, 0.0
        %2633 = vadd.xlane.f32.xlu0 %v2632
        %v2634 = vpop.xlane.xlu0 %2633
        %v2635 = vsel %vm997, %v2627, 0.0
        %2636 = vadd.xlane.f32.xlu0 %v2635
        %v2637 = vpop.xlane.xlu0 %2636
        %v2638 = vsel %vm997, %v2629, 0.0
        %2639 = vadd.xlane.f32.xlu0 %v2638
        %v2640 = vpop.xlane.xlu0 %2639
        %v2641 = vsel %vm997, %v2631, 0.0
        %2642 = vadd.xlane.f32.xlu0 %v2641
        %v2643 = vpop.xlane.xlu0 %2642
        %v2644 = vrcp.pop %v2634
        %v2645 = vrcp.pop %v2637
        %v2646 = vrcp.pop %v2640
        %v2647 = vrcp.pop %v2643
        %v2648 = vmul.f32 %v2625, %v2644
        %v2649 = vmul.f32 %v2627, %v2645
        %v2650 = vmul.f32 %v2629, %v2646
        %v2651 = vmul.f32 %v2631, %v2647
        %2652 = vrot.lane.b32.xlu0 %v1211, 40
        %v2653 = vpop.permute.xlu0 %2652
        %2654 = vrot.lane.b32.xlu0 %v1216, 40
        %v2655 = vpop.permute.xlu0 %2654
        %v2659 = vsel %vm997, %v2648, 0
        %v2662 = vsel %vm997, %v2649, 0
        %2664 = vmatprep.subr.mxu0 0.0
        %2665 = vmatpush1.msra.mxu0 %v2653
        %2666 = vmatprep.subr.mxu0 0.0
        %2667 = vmatpush1.msra.mxu0 %v2655
        %2668 = vmatprep.subr.mxu0 0.0
        %2669 = vmatpush1.msra.mxu0 0.0
        %2670 = vmatprep.subr.mxu0 0.0
        %2671 = vmatpush1.msra.mxu0 0.0
        %2672 = vmatprep.subr.mxu0 0.0
        %2673 = vmatpush1.msra.mxu0 0.0
        %2674 = vmatprep.subr.mxu0 0.0
        %2675 = vmatpush1.msra.mxu0 0.0
        %2676 = vmatprep.subr.mxu0 0.0
        %2677 = vmatpush1.msra.mxu0 0.0
        %2678 = vmatprep.subr.mxu0 0.0
        %2679 = vmatpush1.msra.mxu0 0.0
        %2680 = vmatprep.subr.mxu0 0.0
        %2681 = vmatpush1.msra.mxu0 0.0
        %2682 = vmatprep.subr.mxu0 0.0
        %2683 = vmatpush1.msra.mxu0 0.0
        %2684 = vmatprep.subr.mxu0 0.0
        %2685 = vmatpush1.msra.mxu0 0.0
        %2686 = vmatprep.subr.mxu0 0.0
        %2687 = vmatpush1.msra.mxu0 0.0
        %2688 = vmatprep.subr.mxu0 0.0
        %2689 = vmatpush1.msra.mxu0 0.0
        %2690 = vmatprep.subr.mxu0 0.0
        %2691 = vmatpush1.msra.mxu0 0.0
        %2692 = vmatprep.subr.mxu0 0.0
        %2693 = vmatpush1.msra.mxu0 0.0
        %2694 = vmatprep.subr.mxu0 0.0
        %2695 = vmatpush1.msra.mxu0 0.0
        %2696 = vmatprep.subr.mxu0 0.0
        %2697 = vmatpush1.msra.mxu0 0.0
        %2698 = vmatprep.subr.mxu0 0.0
        %2699 = vmatpush1.msra.mxu0 0.0
        %2700 = vmatprep.subr.mxu0 0.0
        %2701 = vmatpush1.msra.mxu0 0.0
        %2702 = vmatprep.subr.mxu0 0.0
        %2703 = vmatpush1.msra.mxu0 0.0
        %2704 = vmatprep.subr.mxu0 0.0
        %2705 = vmatpush1.msra.mxu0 0.0
        %2706 = vmatprep.subr.mxu0 0.0
        %2707 = vmatpush1.msra.mxu0 0.0
        %2708 = vmatprep.subr.mxu0 0.0
        %2709 = vmatpush1.msra.mxu0 0.0
        %2710 = vmatprep.subr.mxu0 0.0
        %2711 = vmatpush1.msra.mxu0 0.0
        %2712 = vmatprep.subr.mxu0 0.0
        %2713 = vmatpush1.msra.mxu0 0.0
        %2714 = vmatprep.subr.mxu0 0.0
        %2715 = vmatpush1.msra.mxu0 0.0
        %2716 = vmatprep.subr.mxu0 0.0
        %2717 = vmatpush1.msra.mxu0 0.0
        %2718 = vmatprep.subr.mxu0 0.0
        %2719 = vmatpush1.msra.mxu0 0.0
        %2720 = vmatprep.subr.mxu0 0.0
        %2721 = vmatpush1.msra.mxu0 0.0
        %2722 = vmatprep.subr.mxu0 0.0
        %2723 = vmatpush1.msra.mxu0 0.0
        %2724 = vmatprep.subr.mxu0 0.0
        %2725 = vmatpush1.msra.mxu0 0.0
        %2726 = vmatprep.subr.mxu0 0.0
        %2727 = vmatpush1.msra.mxu0 0.0
        %2728 = vmatprep.mubr.f32.mxu0 0.0
        %2729 = vmatmul.mubr.f32.gmra.mrb[0].mxu0 %v2659
        %v2730 = vpop.f32.mrb[0].mxu0
        %v2731 = vadd.f32 0.0, %v2730
        %v2732 = vpop.f32.mrb[0].mxu0
        %2733 = vmatprep.mubr.f32.mxu0 0.0
        %2734 = vmatmul.mubr.f32.gmra.mrb[0].mxu0 %v2662
        %v2735 = vpop.f32.mrb[0].mxu0
        %v2736 = vadd.f32 0.0, %v2735
        %v2737 = vpop.f32.mrb[0].mxu0
        %2738 = vdwg.mxu0
        %2739 = vrot.lane.b32.xlu0 %v1221, 40
        %v2740 = vpop.permute.xlu0 %2739
        %2741 = vrot.lane.b32.xlu0 %v1226, 40
        %v2742 = vpop.permute.xlu0 %2741
        %v2746 = vsel %vm997, %v2650, 0
        %v2749 = vsel %vm997, %v2651, 0
        %2751 = vmatprep.subr.mxu0 0.0
        %2752 = vmatpush1.msra.mxu0 %v2740
        %2753 = vmatprep.subr.mxu0 0.0
        %2754 = vmatpush1.msra.mxu0 %v2742
        %2755 = vmatprep.subr.mxu0 0.0
        %2756 = vmatpush1.msra.mxu0 0.0
        %2757 = vmatprep.subr.mxu0 0.0
        %2758 = vmatpush1.msra.mxu0 0.0
        %2759 = vmatprep.subr.mxu0 0.0
        %2760 = vmatpush1.msra.mxu0 0.0
        %2761 = vmatprep.subr.mxu0 0.0
        %2762 = vmatpush1.msra.mxu0 0.0
        %2763 = vmatprep.subr.mxu0 0.0
        %2764 = vmatpush1.msra.mxu0 0.0
        %2765 = vmatprep.subr.mxu0 0.0
        %2766 = vmatpush1.msra.mxu0 0.0
        %2767 = vmatprep.subr.mxu0 0.0
        %2768 = vmatpush1.msra.mxu0 0.0
        %2769 = vmatprep.subr.mxu0 0.0
        %2770 = vmatpush1.msra.mxu0 0.0
        %2771 = vmatprep.subr.mxu0 0.0
        %2772 = vmatpush1.msra.mxu0 0.0
        %2773 = vmatprep.subr.mxu0 0.0
        %2774 = vmatpush1.msra.mxu0 0.0
        %2775 = vmatprep.subr.mxu0 0.0
        %2776 = vmatpush1.msra.mxu0 0.0
        %2777 = vmatprep.subr.mxu0 0.0
        %2778 = vmatpush1.msra.mxu0 0.0
        %2779 = vmatprep.subr.mxu0 0.0
        %2780 = vmatpush1.msra.mxu0 0.0
        %2781 = vmatprep.subr.mxu0 0.0
        %2782 = vmatpush1.msra.mxu0 0.0
        %2783 = vmatprep.subr.mxu0 0.0
        %2784 = vmatpush1.msra.mxu0 0.0
        %2785 = vmatprep.subr.mxu0 0.0
        %2786 = vmatpush1.msra.mxu0 0.0
        %2787 = vmatprep.subr.mxu0 0.0
        %2788 = vmatpush1.msra.mxu0 0.0
        %2789 = vmatprep.subr.mxu0 0.0
        %2790 = vmatpush1.msra.mxu0 0.0
        %2791 = vmatprep.subr.mxu0 0.0
        %2792 = vmatpush1.msra.mxu0 0.0
        %2793 = vmatprep.subr.mxu0 0.0
        %2794 = vmatpush1.msra.mxu0 0.0
        %2795 = vmatprep.subr.mxu0 0.0
        %2796 = vmatpush1.msra.mxu0 0.0
        %2797 = vmatprep.subr.mxu0 0.0
        %2798 = vmatpush1.msra.mxu0 0.0
        %2799 = vmatprep.subr.mxu0 0.0
        %2800 = vmatpush1.msra.mxu0 0.0
        %2801 = vmatprep.subr.mxu0 0.0
        %2802 = vmatpush1.msra.mxu0 0.0
        %2803 = vmatprep.subr.mxu0 0.0
        %2804 = vmatpush1.msra.mxu0 0.0
        %2805 = vmatprep.subr.mxu0 0.0
        %2806 = vmatpush1.msra.mxu0 0.0
        %2807 = vmatprep.subr.mxu0 0.0
        %2808 = vmatpush1.msra.mxu0 0.0
        %2809 = vmatprep.subr.mxu0 0.0
        %2810 = vmatpush1.msra.mxu0 0.0
        %2811 = vmatprep.subr.mxu0 0.0
        %2812 = vmatpush1.msra.mxu0 0.0
        %2813 = vmatprep.subr.mxu0 0.0
        %2814 = vmatpush1.msra.mxu0 0.0
        %2815 = vmatprep.mubr.f32.mxu0 0.0
        %2816 = vmatmul.mubr.f32.gmra.mrb[0].mxu0 %v2746
        %v2817 = vpop.f32.mrb[0].mxu0
        %v2818 = vadd.f32 0.0, %v2817
        %v2819 = vpop.f32.mrb[0].mxu0
        %2820 = vmatprep.mubr.f32.mxu0 0.0
        %2821 = vmatmul.mubr.f32.gmra.mrb[0].mxu0 %v2749
        %v2822 = vpop.f32.mrb[0].mxu0
        %v2823 = vadd.f32 0.0, %v2822
        %v2824 = vpop.f32.mrb[0].mxu0
        %2825 = vdwg.mxu0
        %2830 = vrot.lane.b32.xlu0 %v1931, 8
        %v2831 = vpop.permute.xlu0 %2830
        %2832 = vrot.lane.b32.xlu0 %v1936, 8
        %v2833 = vpop.permute.xlu0 %2832
        %2834 = vrot.lane.b32.xlu0 %v2018, 8
        %v2835 = vpop.permute.xlu0 %2834
        %2836 = vrot.lane.b32.xlu0 %v2023, 8
        %v2837 = vpop.permute.xlu0 %2836
        %2846 = vrot.lane.b32.xlu0 %v2331, 16
        %v2847 = vpop.permute.xlu0 %2846
        %2848 = vrot.lane.b32.xlu0 %v2336, 16
        %v2849 = vpop.permute.xlu0 %2848
        %2850 = vrot.lane.b32.xlu0 %v2418, 16
        %v2851 = vpop.permute.xlu0 %2850
        %2852 = vrot.lane.b32.xlu0 %v2423, 16
        %v2853 = vpop.permute.xlu0 %2852
        %2862 = vrot.lane.b32.xlu0 %v2731, 24
        %v2863 = vpop.permute.xlu0 %2862
        %2864 = vrot.lane.b32.xlu0 %v2736, 24
        %v2865 = vpop.permute.xlu0 %2864
        %2866 = vrot.lane.b32.xlu0 %v2818, 24
        %v2867 = vpop.permute.xlu0 %2866
        %2868 = vrot.lane.b32.xlu0 %v2823, 24
        %v2869 = vpop.permute.xlu0 %2868
        %v2874 = vsel %vm1235, %v1531, %v2831
        %v2875 = vsel %vm1235, %v1536, %v2833
        %v2876 = vsel %vm1235, %v1618, %v2835
        %v2877 = vsel %vm1235, %v1623, %v2837
        %v2878 = vsel %vm997, %v2874, %v2847
        %v2879 = vsel %vm997, %v2875, %v2849
        %v2880 = vsel %vm997, %v2876, %v2851
        %v2881 = vsel %vm997, %v2877, %v2853
        %vm2882 = vcmask 195584
        %v2883 = vsel %vm2882, %v2878, %v2863
        %v2884 = vsel %vm2882, %v2879, %v2865
        %v2885 = vsel %vm2882, %v2880, %v2867
        %v2886 = vsel %vm2882, %v2881, %v2869
        %v2888 = vlaneseq
        %v2889 = vshrl.u32 %v2888, 7
        %v2890 = vsub.s32 0, %v2889
        %v2891 = vrot.slane %v1104, %v2890
        %v2894 = vsel %vm1131, %v2883, 0
        %v2897 = vsel %vm1131, %v2884, 0
        %v2900 = vsel %vm1131, %v2885, 0
        %v2903 = vsel %vm1131, %v2886, 0
        %2905 = vmatprep.subr.mxu0 0.0
        %2906 = vmatpush1.msra.mxu0 %v1100
        %2907 = vmatprep.subr.mxu0 0.0
        %2908 = vmatpush1.msra.mxu0 %v1101
        %2909 = vmatprep.subr.mxu0 0.0
        %2910 = vmatpush1.msra.mxu0 %v1102
        %2911 = vmatprep.subr.mxu0 0.0
        %2912 = vmatpush1.msra.mxu0 %v1103
        %2913 = vmatprep.subr.mxu0 0.0
        %2914 = vmatpush1.msra.mxu0 0.0
        %2915 = vmatprep.subr.mxu0 0.0
        %2916 = vmatpush1.msra.mxu0 0.0
        %2917 = vmatprep.subr.mxu0 0.0
        %2918 = vmatpush1.msra.mxu0 0.0
        %2919 = vmatprep.subr.mxu0 0.0
        %2920 = vmatpush1.msra.mxu0 0.0
        %2921 = vmatprep.subr.mxu0 0.0
        %2922 = vmatpush1.msra.mxu0 0.0
        %2923 = vmatprep.subr.mxu0 0.0
        %2924 = vmatpush1.msra.mxu0 0.0
        %2925 = vmatprep.subr.mxu0 0.0
        %2926 = vmatpush1.msra.mxu0 0.0
        %2927 = vmatprep.subr.mxu0 0.0
        %2928 = vmatpush1.msra.mxu0 0.0
        %2929 = vmatprep.subr.mxu0 0.0
        %2930 = vmatpush1.msra.mxu0 0.0
        %2931 = vmatprep.subr.mxu0 0.0
        %2932 = vmatpush1.msra.mxu0 0.0
        %2933 = vmatprep.subr.mxu0 0.0
        %2934 = vmatpush1.msra.mxu0 0.0
        %2935 = vmatprep.subr.mxu0 0.0
        %2936 = vmatpush1.msra.mxu0 0.0
        %2937 = vmatprep.subr.mxu0 0.0
        %2938 = vmatpush1.msra.mxu0 0.0
        %2939 = vmatprep.subr.mxu0 0.0
        %2940 = vmatpush1.msra.mxu0 0.0
        %2941 = vmatprep.subr.mxu0 0.0
        %2942 = vmatpush1.msra.mxu0 0.0
        %2943 = vmatprep.subr.mxu0 0.0
        %2944 = vmatpush1.msra.mxu0 0.0
        %2945 = vmatprep.subr.mxu0 0.0
        %2946 = vmatpush1.msra.mxu0 0.0
        %2947 = vmatprep.subr.mxu0 0.0
        %2948 = vmatpush1.msra.mxu0 0.0
        %2949 = vmatprep.subr.mxu0 0.0
        %2950 = vmatpush1.msra.mxu0 0.0
        %2951 = vmatprep.subr.mxu0 0.0
        %2952 = vmatpush1.msra.mxu0 0.0
        %2953 = vmatprep.subr.mxu0 0.0
        %2954 = vmatpush1.msra.mxu0 0.0
        %2955 = vmatprep.subr.mxu0 0.0
        %2956 = vmatpush1.msra.mxu0 0.0
        %2957 = vmatprep.subr.mxu0 0.0
        %2958 = vmatpush1.msra.mxu0 0.0
        %2959 = vmatprep.subr.mxu0 0.0
        %2960 = vmatpush1.msra.mxu0 0.0
        %2961 = vmatprep.subr.mxu0 0.0
        %2962 = vmatpush1.msra.mxu0 0.0
        %2963 = vmatprep.subr.mxu0 0.0
        %2964 = vmatpush1.msra.mxu0 0.0
        %2965 = vmatprep.subr.mxu0 0.0
        %2966 = vmatpush1.msra.mxu0 0.0
        %2967 = vmatprep.subr.mxu0 0.0
        %2968 = vmatpush1.msra.mxu0 0.0
        %2969 = vmatprep.mubr.f32.mxu0 0.0
        %2970 = vmatmul.mubr.f32.gmra.mrb[0].mxu0 %v2894
        %v2971 = vpop.f32.mrb[0].mxu0
        %v2972 = vadd.f32 %v2891, %v2971
        %v2973 = vpop.f32.mrb[0].mxu0
        %2974 = vmatprep.mubr.f32.mxu0 0.0
        %2975 = vmatmul.mubr.f32.gmra.mrb[0].mxu0 %v2897
        %v2976 = vpop.f32.mrb[0].mxu0
        %v2977 = vadd.f32 %v2891, %v2976
        %v2978 = vpop.f32.mrb[0].mxu0
        %2979 = vmatprep.mubr.f32.mxu0 0.0
        %2980 = vmatmul.mubr.f32.gmra.mrb[0].mxu0 %v2900
        %v2981 = vpop.f32.mrb[0].mxu0
        %v2982 = vadd.f32 %v2891, %v2981
        %v2983 = vpop.f32.mrb[0].mxu0
        %2984 = vmatprep.mubr.f32.mxu0 0.0
        %2985 = vmatmul.mubr.f32.gmra.mrb[0].mxu0 %v2903
        %v2986 = vpop.f32.mrb[0].mxu0
        %v2987 = vadd.f32 %v2891, %v2986
        %v2988 = vpop.f32.mrb[0].mxu0
        %2989 = vdwg.mxu0
        %v2990 = vadd.f32 %v1121, %v2972
        %v2991 = vadd.f32 %v1122, %v2977
        %v2992 = vadd.f32 %v1123, %v2982
        %v2993 = vadd.f32 %v1124, %v2987
        %2994 = vst.msk [vmem:[#allocation2] sm:$0xff] %vm1131, %v2990
        %2995 = vst.msk [vmem:[#allocation2 + $0x8] sm:$0xff] %vm1131, %v2991
        %2996 = vst.msk [vmem:[#allocation2 + $0x10] sm:$0xff] %vm1131, %v2992
        %2997 = vst.msk [vmem:[#allocation2 + $0x18] sm:$0xff] %vm1131, %v2993
        %s2998 = scalar_lea.vmem [#allocation2], 1
        %v2999 = vld [vmem:[%s2998] ss:$2 sm:$0xff]
        %s3000 = scalar_lea.vmem [#allocation2], 17
        %v3001 = vld [vmem:[%s3000] ss:$2 sm:$0xff]
        %v3002 = vsel %vm1131, %v2999, 0.0
        %3003 = vadd.xlane.f32.xlu0 %v3002
        %v3004 = vpop.xlane.xlu0 %3003
        %v3005 = vsel %vm1131, %v3001, 0.0
        %3006 = vadd.xlane.f32.xlu0 %v3005
        %v3007 = vpop.xlane.xlu0 %3006
        %v3008 = vrcp.pop 32.0
        %v3009 = vmul.f32 %v3004, %v3008
        %v3010 = vmul.f32 %v3007, %v3008
        %v3011 = vsub.f32 %v2999, %v3009
        %v3012 = vsub.f32 %v3001, %v3010
        %v3013 = vmul.f32 %v3011, %v3011
        %v3014 = vmul.f32 %v3012, %v3012
        %v3015 = vsel %vm1131, %v3013, 0.0
        %3016 = vadd.xlane.f32.xlu0 %v3015
        %v3017 = vpop.xlane.xlu0 %3016
        %v3018 = vsel %vm1131, %v3014, 0.0
        %3019 = vadd.xlane.f32.xlu0 %v3018
        %v3020 = vpop.xlane.xlu0 %3019
        %v3021 = vmul.f32 %v3017, %v3008
        %v3022 = vmul.f32 %v3020, %v3008
        %v3023 = vadd.f32 %v3021, 1e-05
        %v3024 = vadd.f32 %v3022, 1e-05
        %v3025 = vrsqrt.pop %v3023
        %v3026 = vrsqrt.pop %v3024
        %v3027 = vmul.f32 %v3011, %v3025
        %v3028 = vmul.f32 %v3012, %v3026
        %v3030 = vlaneseq
        %v3031 = vshrl.u32 %v3030, 7
        %v3032 = vsub.s32 0, %v3031
        %v3033 = vrot.slane %v1105, %v3032
        %v3035 = vmul.f32 %v3027, %v3033
        %v3036 = vmul.f32 %v3028, %v3033
        %v3038 = vlaneseq
        %v3039 = vshrl.u32 %v3038, 7
        %v3040 = vsub.s32 0, %v3039
        %v3041 = vrot.slane %v1106, %v3040
        %v3043 = vadd.f32 %v3035, %v3041
        %v3044 = vadd.f32 %v3036, %v3041
        %v3046 = vsel %vm1131, %v3043, 0
        %v3049 = vsel %vm1131, %v3044, 0
        %3051 = vmatprep.subr.mxu0 0.0
        %3052 = vmatpush1.msra.mxu0 %v1107
        %3053 = vmatprep.subr.mxu0 0.0
        %3054 = vmatpush1.msra.mxu0 %v1108
        %3055 = vmatprep.subr.mxu0 0.0
        %3056 = vmatpush1.msra.mxu0 %v1109
        %3057 = vmatprep.subr.mxu0 0.0
        %3058 = vmatpush1.msra.mxu0 %v1110
        %3059 = vmatprep.subr.mxu0 0.0
        %3060 = vmatpush1.msra.mxu0 0.0
        %3061 = vmatprep.subr.mxu0 0.0
        %3062 = vmatpush1.msra.mxu0 0.0
        %3063 = vmatprep.subr.mxu0 0.0
        %3064 = vmatpush1.msra.mxu0 0.0
        %3065 = vmatprep.subr.mxu0 0.0
        %3066 = vmatpush1.msra.mxu0 0.0
        %3067 = vmatprep.subr.mxu0 0.0
        %3068 = vmatpush1.msra.mxu0 0.0
        %3069 = vmatprep.subr.mxu0 0.0
        %3070 = vmatpush1.msra.mxu0 0.0
        %3071 = vmatprep.subr.mxu0 0.0
        %3072 = vmatpush1.msra.mxu0 0.0
        %3073 = vmatprep.subr.mxu0 0.0
        %3074 = vmatpush1.msra.mxu0 0.0
        %3075 = vmatprep.subr.mxu0 0.0
        %3076 = vmatpush1.msra.mxu0 0.0
        %3077 = vmatprep.subr.mxu0 0.0
        %3078 = vmatpush1.msra.mxu0 0.0
        %3079 = vmatprep.subr.mxu0 0.0
        %3080 = vmatpush1.msra.mxu0 0.0
        %3081 = vmatprep.subr.mxu0 0.0
        %3082 = vmatpush1.msra.mxu0 0.0
        %3083 = vmatprep.subr.mxu0 0.0
        %3084 = vmatpush1.msra.mxu0 0.0
        %3085 = vmatprep.subr.mxu0 0.0
        %3086 = vmatpush1.msra.mxu0 0.0
        %3087 = vmatprep.subr.mxu0 0.0
        %3088 = vmatpush1.msra.mxu0 0.0
        %3089 = vmatprep.subr.mxu0 0.0
        %3090 = vmatpush1.msra.mxu0 0.0
        %3091 = vmatprep.subr.mxu0 0.0
        %3092 = vmatpush1.msra.mxu0 0.0
        %3093 = vmatprep.subr.mxu0 0.0
        %3094 = vmatpush1.msra.mxu0 0.0
        %3095 = vmatprep.subr.mxu0 0.0
        %3096 = vmatpush1.msra.mxu0 0.0
        %3097 = vmatprep.subr.mxu0 0.0
        %3098 = vmatpush1.msra.mxu0 0.0
        %3099 = vmatprep.subr.mxu0 0.0
        %3100 = vmatpush1.msra.mxu0 0.0
        %3101 = vmatprep.subr.mxu0 0.0
        %3102 = vmatpush1.msra.mxu0 0.0
        %3103 = vmatprep.subr.mxu0 0.0
        %3104 = vmatpush1.msra.mxu0 0.0
        %3105 = vmatprep.subr.mxu0 0.0
        %3106 = vmatpush1.msra.mxu0 0.0
        %3107 = vmatprep.subr.mxu0 0.0
        %3108 = vmatpush1.msra.mxu0 0.0
        %3109 = vmatprep.subr.mxu0 0.0
        %3110 = vmatpush1.msra.mxu0 0.0
        %3111 = vmatprep.subr.mxu0 0.0
        %3112 = vmatpush1.msra.mxu0 0.0
        %3113 = vmatprep.subr.mxu0 0.0
        %3114 = vmatpush1.msra.mxu0 0.0
        %3115 = vmatprep.mubr.f32.mxu0 0.0
        %3116 = vmatmul.mubr.f32.gmra.mrb[0].mxu0 %v3046
        %v3117 = vpop.f32.mrb[0].mxu0
        %v3118 = vadd.f32 0.0, %v3117
        %v3119 = vpop.f32.mrb[0].mxu0
        %3120 = vmatprep.mubr.f32.mxu0 0.0
        %3121 = vmatmul.mubr.f32.gmra.mrb[0].mxu0 %v3049
        %v3122 = vpop.f32.mrb[0].mxu0
        %v3123 = vadd.f32 0.0, %v3122
        %v3124 = vpop.f32.mrb[0].mxu0
        %3125 = vdwg.mxu0
        %v3126 = vmax.f32 %v3118, 0.0
        %v3127 = vmax.f32 %v3123, 0.0
        %vm3128 = vcmask 523264
        %v3130 = vsel %vm3128, %v3126, 0
        %v3133 = vsel %vm3128, %v3127, 0
        %3135 = vmatprep.subr.mxu0 0.0
        %3136 = vmatpush1.msra.mxu0 %v1111
        %3137 = vmatprep.subr.mxu0 0.0
        %3138 = vmatpush1.msra.mxu0 %v1112
        %3139 = vmatprep.subr.mxu0 0.0
        %3140 = vmatpush1.msra.mxu0 %v1113
        %3141 = vmatprep.subr.mxu0 0.0
        %3142 = vmatpush1.msra.mxu0 %v1114
        %3143 = vmatprep.subr.mxu0 0.0
        %3144 = vmatpush1.msra.mxu0 %v1115
        %3145 = vmatprep.subr.mxu0 0.0
        %3146 = vmatpush1.msra.mxu0 %v1116
        %3147 = vmatprep.subr.mxu0 0.0
        %3148 = vmatpush1.msra.mxu0 %v1117
        %3149 = vmatprep.subr.mxu0 0.0
        %3150 = vmatpush1.msra.mxu0 %v1118
        %3151 = vmatprep.subr.mxu0 0.0
        %3152 = vmatpush1.msra.mxu0 0.0
        %3153 = vmatprep.subr.mxu0 0.0
        %3154 = vmatpush1.msra.mxu0 0.0
        %3155 = vmatprep.subr.mxu0 0.0
        %3156 = vmatpush1.msra.mxu0 0.0
        %3157 = vmatprep.subr.mxu0 0.0
        %3158 = vmatpush1.msra.mxu0 0.0
        %3159 = vmatprep.subr.mxu0 0.0
        %3160 = vmatpush1.msra.mxu0 0.0
        %3161 = vmatprep.subr.mxu0 0.0
        %3162 = vmatpush1.msra.mxu0 0.0
        %3163 = vmatprep.subr.mxu0 0.0
        %3164 = vmatpush1.msra.mxu0 0.0
        %3165 = vmatprep.subr.mxu0 0.0
        %3166 = vmatpush1.msra.mxu0 0.0
        %3167 = vmatprep.subr.mxu0 0.0
        %3168 = vmatpush1.msra.mxu0 0.0
        %3169 = vmatprep.subr.mxu0 0.0
        %3170 = vmatpush1.msra.mxu0 0.0
        %3171 = vmatprep.subr.mxu0 0.0
        %3172 = vmatpush1.msra.mxu0 0.0
        %3173 = vmatprep.subr.mxu0 0.0
        %3174 = vmatpush1.msra.mxu0 0.0
        %3175 = vmatprep.subr.mxu0 0.0
        %3176 = vmatpush1.msra.mxu0 0.0
        %3177 = vmatprep.subr.mxu0 0.0
        %3178 = vmatpush1.msra.mxu0 0.0
        %3179 = vmatprep.subr.mxu0 0.0
        %3180 = vmatpush1.msra.mxu0 0.0
        %3181 = vmatprep.subr.mxu0 0.0
        %3182 = vmatpush1.msra.mxu0 0.0
        %3183 = vmatprep.subr.mxu0 0.0
        %3184 = vmatpush1.msra.mxu0 0.0
        %3185 = vmatprep.subr.mxu0 0.0
        %3186 = vmatpush1.msra.mxu0 0.0
        %3187 = vmatprep.subr.mxu0 0.0
        %3188 = vmatpush1.msra.mxu0 0.0
        %3189 = vmatprep.subr.mxu0 0.0
        %3190 = vmatpush1.msra.mxu0 0.0
        %3191 = vmatprep.subr.mxu0 0.0
        %3192 = vmatpush1.msra.mxu0 0.0
        %3193 = vmatprep.subr.mxu0 0.0
        %3194 = vmatpush1.msra.mxu0 0.0
        %3195 = vmatprep.subr.mxu0 0.0
        %3196 = vmatpush1.msra.mxu0 0.0
        %3197 = vmatprep.subr.mxu0 0.0
        %3198 = vmatpush1.msra.mxu0 0.0
        %3199 = vmatprep.mubr.f32.mxu0 0.0
        %3200 = vmatmul.mubr.f32.gmra.mrb[0].mxu0 %v3130
        %v3201 = vpop.f32.mrb[0].mxu0
        %v3202 = vadd.f32 0.0, %v3201
        %v3203 = vpop.f32.mrb[0].mxu0
        %3204 = vmatprep.mubr.f32.mxu0 0.0
        %3205 = vmatmul.mubr.f32.gmra.mrb[0].mxu0 %v3133
        %v3206 = vpop.f32.mrb[0].mxu0
        %v3207 = vadd.f32 0.0, %v3206
        %v3208 = vpop.f32.mrb[0].mxu0
        %3209 = vdwg.mxu0
        %v3210 = vadd.f32 %v3043, %v3202
        %v3211 = vadd.f32 %v3044, %v3207
        %v3212 = vsel %vm1131, %v3210, 0.0
        %3213 = vadd.xlane.f32.xlu0 %v3212
        %v3214 = vpop.xlane.xlu0 %3213
        %v3215 = vsel %vm1131, %v3211, 0.0
        %3216 = vadd.xlane.f32.xlu0 %v3215
        %v3217 = vpop.xlane.xlu0 %3216
        %v3218 = vmul.f32 %v3214, %v3008
        %v3219 = vmul.f32 %v3217, %v3008
        %v3220 = vsub.f32 %v3210, %v3218
        %v3221 = vsub.f32 %v3211, %v3219
        %v3222 = vmul.f32 %v3220, %v3220
        %v3223 = vmul.f32 %v3221, %v3221
        %v3224 = vsel %vm1131, %v3222, 0.0
        %3225 = vadd.xlane.f32.xlu0 %v3224
        %v3226 = vpop.xlane.xlu0 %3225
        %v3227 = vsel %vm1131, %v3223, 0.0
        %3228 = vadd.xlane.f32.xlu0 %v3227
        %v3229 = vpop.xlane.xlu0 %3228
        %v3230 = vmul.f32 %v3226, %v3008
        %v3231 = vmul.f32 %v3229, %v3008
        %v3232 = vadd.f32 %v3230, 1e-05
        %v3233 = vadd.f32 %v3231, 1e-05
        %v3234 = vrsqrt.pop %v3232
        %v3235 = vrsqrt.pop %v3233
        %v3236 = vmul.f32 %v3220, %v3234
        %v3237 = vmul.f32 %v3221, %v3235
        %v3239 = vlaneseq
        %v3240 = vshrl.u32 %v3239, 7
        %v3241 = vsub.s32 0, %v3240
        %v3242 = vrot.slane %v1119, %v3241
        %v3244 = vmul.f32 %v3236, %v3242
        %v3245 = vmul.f32 %v3237, %v3242
        %v3247 = vlaneseq
        %v3248 = vshrl.u32 %v3247, 7
        %v3249 = vsub.s32 0, %v3248
        %v3250 = vrot.slane %v1120, %v3249
        %v3252 = vadd.f32 %v3244, %v3250
        %v3253 = vadd.f32 %v3245, %v3250
        %v3254 = vld [vmem:[#allocation18] sm:$0xff]
        %v3255 = vld [vmem:[#allocation18 + $0x8] sm:$0xff]
        %v3256 = vld [vmem:[#allocation18 + $0x10] sm:$0xff]
        %v3257 = vld [vmem:[#allocation18 + $0x18] sm:$0xff]
        %v3258 = vld [vmem:[#allocation20] sm:$0x1]
        %v3259 = vld [vmem:[#allocation21] sm:$0xff]
        %v3260 = vld [vmem:[#allocation21 + $0x8] sm:$0xff]
        %v3261 = vld [vmem:[#allocation21 + $0x10] sm:$0xff]
        %v3262 = vld [vmem:[#allocation21 + $0x18] sm:$0xff]
        %v3263 = vld [vmem:[#allocation23] sm:$0x1]
        %v3264 = vld [vmem:[%s18] sm:$0x1]
        %v3265 = vld [vmem:[%s19] sm:$0x1]
        %v3266 = vld [vmem:[%s20] sm:$0xff]
        %v3267 = vld [vmem:[%s20 + $0x8] sm:$0xff]
        %v3268 = vld [vmem:[%s20 + $0x10] sm:$0xff]
        %v3269 = vld [vmem:[%s20 + $0x18] sm:$0xff]
        %v3270 = vld [vmem:[%s21] sm:$0xff]
        %v3271 = vld [vmem:[%s21 + $0x8] sm:$0xff]
        %v3272 = vld [vmem:[%s21 + $0x10] sm:$0xff]
        %v3273 = vld [vmem:[%s21 + $0x18] sm:$0xff]
        %v3274 = vld [vmem:[%s21 + $0x20] sm:$0xff]
        %v3275 = vld [vmem:[%s21 + $0x28] sm:$0xff]
        %v3276 = vld [vmem:[%s21 + $0x30] sm:$0xff]
        %v3277 = vld [vmem:[%s21 + $0x38] sm:$0xff]
        %v3278 = vld [vmem:[%s22] sm:$0x1]
        %v3279 = vld [vmem:[%s23] sm:$0x1]
        %v3280 = vadd.f32 %v3252, %v982
        %v3281 = vadd.f32 %v3253, %v982
        %v3283 = vlaneseq
        %v3284 = vshrl.u32 %v3283, 7
        %v3285 = vsub.s32 0, %v3284
        %v3286 = vrot.slane %v3258, %v3285
        %v3289 = vsel %vm1131, %v3280, 0
        %v3292 = vsel %vm1131, %v3281, 0
        %3294 = vmatprep.subr.mxu0 0.0
        %3295 = vmatpush1.msra.mxu0 %v3254
        %3296 = vmatprep.subr.mxu0 0.0
        %3297 = vmatpush1.msra.mxu0 %v3255
        %3298 = vmatprep.subr.mxu0 0.0
        %3299 = vmatpush1.msra.mxu0 %v3256
        %3300 = vmatprep.subr.mxu0 0.0
        %3301 = vmatpush1.msra.mxu0 %v3257
        %3302 = vmatprep.subr.mxu0 0.0
        %3303 = vmatpush1.msra.mxu0 0.0
        %3304 = vmatprep.subr.mxu0 0.0
        %3305 = vmatpush1.msra.mxu0 0.0
        %3306 = vmatprep.subr.mxu0 0.0
        %3307 = vmatpush1.msra.mxu0 0.0
        %3308 = vmatprep.subr.mxu0 0.0
        %3309 = vmatpush1.msra.mxu0 0.0
        %3310 = vmatprep.subr.mxu0 0.0
        %3311 = vmatpush1.msra.mxu0 0.0
        %3312 = vmatprep.subr.mxu0 0.0
        %3313 = vmatpush1.msra.mxu0 0.0
        %3314 = vmatprep.subr.mxu0 0.0
        %3315 = vmatpush1.msra.mxu0 0.0
        %3316 = vmatprep.subr.mxu0 0.0
        %3317 = vmatpush1.msra.mxu0 0.0
        %3318 = vmatprep.subr.mxu0 0.0
        %3319 = vmatpush1.msra.mxu0 0.0
        %3320 = vmatprep.subr.mxu0 0.0
        %3321 = vmatpush1.msra.mxu0 0.0
        %3322 = vmatprep.subr.mxu0 0.0
        %3323 = vmatpush1.msra.mxu0 0.0
        %3324 = vmatprep.subr.mxu0 0.0
        %3325 = vmatpush1.msra.mxu0 0.0
        %3326 = vmatprep.subr.mxu0 0.0
        %3327 = vmatpush1.msra.mxu0 0.0
        %3328 = vmatprep.subr.mxu0 0.0
        %3329 = vmatpush1.msra.mxu0 0.0
        %3330 = vmatprep.subr.mxu0 0.0
        %3331 = vmatpush1.msra.mxu0 0.0
        %3332 = vmatprep.subr.mxu0 0.0
        %3333 = vmatpush1.msra.mxu0 0.0
        %3334 = vmatprep.subr.mxu0 0.0
        %3335 = vmatpush1.msra.mxu0 0.0
        %3336 = vmatprep.subr.mxu0 0.0
        %3337 = vmatpush1.msra.mxu0 0.0
        %3338 = vmatprep.subr.mxu0 0.0
        %3339 = vmatpush1.msra.mxu0 0.0
        %3340 = vmatprep.subr.mxu0 0.0
        %3341 = vmatpush1.msra.mxu0 0.0
        %3342 = vmatprep.subr.mxu0 0.0
        %3343 = vmatpush1.msra.mxu0 0.0
        %3344 = vmatprep.subr.mxu0 0.0
        %3345 = vmatpush1.msra.mxu0 0.0
        %3346 = vmatprep.subr.mxu0 0.0
        %3347 = vmatpush1.msra.mxu0 0.0
        %3348 = vmatprep.subr.mxu0 0.0
        %3349 = vmatpush1.msra.mxu0 0.0
        %3350 = vmatprep.subr.mxu0 0.0
        %3351 = vmatpush1.msra.mxu0 0.0
        %3352 = vmatprep.subr.mxu0 0.0
        %3353 = vmatpush1.msra.mxu0 0.0
        %3354 = vmatprep.subr.mxu0 0.0
        %3355 = vmatpush1.msra.mxu0 0.0
        %3356 = vmatprep.subr.mxu0 0.0
        %3357 = vmatpush1.msra.mxu0 0.0
        %3358 = vmatprep.mubr.f32.mxu0 0.0
        %3359 = vmatmul.mubr.f32.gmra.mrb[0].mxu0 %v3289
        %v3360 = vpop.f32.mrb[0].mxu0
        %v3361 = vadd.f32 %v3286, %v3360
        %v3362 = vpop.f32.mrb[0].mxu0
        %3363 = vmatprep.mubr.f32.mxu0 0.0
        %3364 = vmatmul.mubr.f32.gmra.mrb[0].mxu0 %v3292
        %v3365 = vpop.f32.mrb[0].mxu0
        %v3366 = vadd.f32 %v3286, %v3365
        %v3367 = vpop.f32.mrb[0].mxu0
        %3368 = vdwg.mxu0
        %3370 = vrot.lane.b32.xlu0 %v3361, 96
        %v3371 = vpop.permute.xlu0 %3370
        %v3372 = vsel %vm1235, %v3361, 0
        %v3374 = vsel %vm1235, %v3371, 0
        %3376 = vmatprep.subr.mxu0 0.0
        %3377 = vmatpush1.xpose.msra.mxu0 %v3374
        %3378 = vmatprep.subr.mxu0 0.0
        %3379 = vmatpush1.xpose.msra.mxu0 0.0
        %3380 = vmatprep.subr.mxu0 0.0
        %3381 = vmatpush1.xpose.msra.mxu0 0.0
        %3382 = vmatprep.subr.mxu0 0.0
        %3383 = vmatpush1.xpose.msra.mxu0 0.0
        %3384 = vmatprep.subr.mxu0 0.0
        %3385 = vmatpush1.xpose.msra.mxu0 0.0
        %3386 = vmatprep.subr.mxu0 0.0
        %3387 = vmatpush1.xpose.msra.mxu0 0.0
        %3388 = vmatprep.subr.mxu0 0.0
        %3389 = vmatpush1.xpose.msra.mxu0 0.0
        %3390 = vmatprep.subr.mxu0 0.0
        %3391 = vmatpush1.xpose.msra.mxu0 0.0
        %3392 = vmatprep.subr.mxu0 0.0
        %3393 = vmatpush1.xpose.msra.mxu0 0.0
        %3394 = vmatprep.subr.mxu0 0.0
        %3395 = vmatpush1.xpose.msra.mxu0 0.0
        %3396 = vmatprep.subr.mxu0 0.0
        %3397 = vmatpush1.xpose.msra.mxu0 0.0
        %3398 = vmatprep.subr.mxu0 0.0
        %3399 = vmatpush1.xpose.msra.mxu0 0.0
        %3400 = vmatprep.subr.mxu0 0.0
        %3401 = vmatpush1.xpose.msra.mxu0 0.0
        %3402 = vmatprep.subr.mxu0 0.0
        %3403 = vmatpush1.xpose.msra.mxu0 0.0
        %3404 = vmatprep.subr.mxu0 0.0
        %3405 = vmatpush1.xpose.msra.mxu0 0.0
        %3406 = vmatprep.subr.mxu0 0.0
        %3407 = vmatpush1.xpose.msra.mxu0 0.0
        %3408 = vmatprep.subr.mxu0 0.0
        %3409 = vmatpush1.xpose.msra.mxu0 0.0
        %3410 = vmatprep.subr.mxu0 0.0
        %3411 = vmatpush1.xpose.msra.mxu0 0.0
        %3412 = vmatprep.subr.mxu0 0.0
        %3413 = vmatpush1.xpose.msra.mxu0 0.0
        %3414 = vmatprep.subr.mxu0 0.0
        %3415 = vmatpush1.xpose.msra.mxu0 0.0
        %3416 = vmatprep.subr.mxu0 0.0
        %3417 = vmatpush1.xpose.msra.mxu0 0.0
        %3418 = vmatprep.subr.mxu0 0.0
        %3419 = vmatpush1.xpose.msra.mxu0 0.0
        %3420 = vmatprep.subr.mxu0 0.0
        %3421 = vmatpush1.xpose.msra.mxu0 0.0
        %3422 = vmatprep.subr.mxu0 0.0
        %3423 = vmatpush1.xpose.msra.mxu0 0.0
        %3424 = vmatprep.subr.mxu0 0.0
        %3425 = vmatpush1.xpose.msra.mxu0 0.0
        %3426 = vmatprep.subr.mxu0 0.0
        %3427 = vmatpush1.xpose.msra.mxu0 0.0
        %3428 = vmatprep.subr.mxu0 0.0
        %3429 = vmatpush1.xpose.msra.mxu0 0.0
        %3430 = vmatprep.subr.mxu0 0.0
        %3431 = vmatpush1.xpose.msra.mxu0 0.0
        %3432 = vmatprep.subr.mxu0 0.0
        %3433 = vmatpush1.xpose.msra.mxu0 0.0
        %3434 = vmatprep.subr.mxu0 0.0
        %3435 = vmatpush1.xpose.msra.mxu0 0.0
        %3436 = vmatprep.subr.mxu0 0.0
        %3437 = vmatpush1.xpose.msra.mxu0 0.0
        %3438 = vmatprep.subr.mxu0 0.0
        %3439 = vmatpush1.xpose.msra.mxu0 0.0
        %3440 = vmatprep.mubr.f32.mxu0 0.0
        %3441 = vmatmul.mubr.f32.gmra.mrb[0].mxu0 %v3372
        %v3442 = vpop.f32.mrb[0].mxu0
        %v3443 = vadd.f32 0.0, %v3442
        %v3444 = vpop.f32.mrb[0].mxu0
        %3445 = vdwg.mxu0
        %3447 = vrot.lane.b32.xlu0 %v3366, 96
        %v3448 = vpop.permute.xlu0 %3447
        %v3449 = vsel %vm1235, %v3366, 0
        %v3451 = vsel %vm1235, %v3448, 0
        %3453 = vmatprep.subr.mxu0 0.0
        %3454 = vmatpush1.xpose.msra.mxu0 %v3451
        %3455 = vmatprep.subr.mxu0 0.0
        %3456 = vmatpush1.xpose.msra.mxu0 0.0
        %3457 = vmatprep.subr.mxu0 0.0
        %3458 = vmatpush1.xpose.msra.mxu0 0.0
        %3459 = vmatprep.subr.mxu0 0.0
        %3460 = vmatpush1.xpose.msra.mxu0 0.0
        %3461 = vmatprep.subr.mxu0 0.0
        %3462 = vmatpush1.xpose.msra.mxu0 0.0
        %3463 = vmatprep.subr.mxu0 0.0
        %3464 = vmatpush1.xpose.msra.mxu0 0.0
        %3465 = vmatprep.subr.mxu0 0.0
        %3466 = vmatpush1.xpose.msra.mxu0 0.0
        %3467 = vmatprep.subr.mxu0 0.0
        %3468 = vmatpush1.xpose.msra.mxu0 0.0
        %3469 = vmatprep.subr.mxu0 0.0
        %3470 = vmatpush1.xpose.msra.mxu0 0.0
        %3471 = vmatprep.subr.mxu0 0.0
        %3472 = vmatpush1.xpose.msra.mxu0 0.0
        %3473 = vmatprep.subr.mxu0 0.0
        %3474 = vmatpush1.xpose.msra.mxu0 0.0
        %3475 = vmatprep.subr.mxu0 0.0
        %3476 = vmatpush1.xpose.msra.mxu0 0.0
        %3477 = vmatprep.subr.mxu0 0.0
        %3478 = vmatpush1.xpose.msra.mxu0 0.0
        %3479 = vmatprep.subr.mxu0 0.0
        %3480 = vmatpush1.xpose.msra.mxu0 0.0
        %3481 = vmatprep.subr.mxu0 0.0
        %3482 = vmatpush1.xpose.msra.mxu0 0.0
        %3483 = vmatprep.subr.mxu0 0.0
        %3484 = vmatpush1.xpose.msra.mxu0 0.0
        %3485 = vmatprep.subr.mxu0 0.0
        %3486 = vmatpush1.xpose.msra.mxu0 0.0
        %3487 = vmatprep.subr.mxu0 0.0
        %3488 = vmatpush1.xpose.msra.mxu0 0.0
        %3489 = vmatprep.subr.mxu0 0.0
        %3490 = vmatpush1.xpose.msra.mxu0 0.0
        %3491 = vmatprep.subr.mxu0 0.0
        %3492 = vmatpush1.xpose.msra.mxu0 0.0
        %3493 = vmatprep.subr.mxu0 0.0
        %3494 = vmatpush1.xpose.msra.mxu0 0.0
        %3495 = vmatprep.subr.mxu0 0.0
        %3496 = vmatpush1.xpose.msra.mxu0 0.0
        %3497 = vmatprep.subr.mxu0 0.0
        %3498 = vmatpush1.xpose.msra.mxu0 0.0
        %3499 = vmatprep.subr.mxu0 0.0
        %3500 = vmatpush1.xpose.msra.mxu0 0.0
        %3501 = vmatprep.subr.mxu0 0.0
        %3502 = vmatpush1.xpose.msra.mxu0 0.0
        %3503 = vmatprep.subr.mxu0 0.0
        %3504 = vmatpush1.xpose.msra.mxu0 0.0
        %3505 = vmatprep.subr.mxu0 0.0
        %3506 = vmatpush1.xpose.msra.mxu0 0.0
        %3507 = vmatprep.subr.mxu0 0.0
        %3508 = vmatpush1.xpose.msra.mxu0 0.0
        %3509 = vmatprep.subr.mxu0 0.0
        %3510 = vmatpush1.xpose.msra.mxu0 0.0
        %3511 = vmatprep.subr.mxu0 0.0
        %3512 = vmatpush1.xpose.msra.mxu0 0.0
        %3513 = vmatprep.subr.mxu0 0.0
        %3514 = vmatpush1.xpose.msra.mxu0 0.0
        %3515 = vmatprep.subr.mxu0 0.0
        %3516 = vmatpush1.xpose.msra.mxu0 0.0
        %3517 = vmatprep.mubr.f32.mxu0 0.0
        %3518 = vmatmul.mubr.f32.gmra.mrb[0].mxu0 %v3449
        %v3519 = vpop.f32.mrb[0].mxu0
        %v3520 = vadd.f32 0.0, %v3519
        %v3521 = vpop.f32.mrb[0].mxu0
        %3522 = vdwg.mxu0
        %v3523 = vsel %vm1235, %v3443, -inf
        %3524 = vmax.xlane.f32.xlu0 %v3523
        %v3525 = vpop.xlane.xlu0 %3524
        %v3526 = vsel %vm1235, %v3520, -inf
        %3527 = vmax.xlane.f32.xlu0 %v3526
        %v3528 = vpop.xlane.xlu0 %3527
        %v3529 = vsub.f32 %v3443, %v3525
        %v3530 = vsub.f32 %v3520, %v3528
        %v3531 = vmul.f32 %v3529, 1.442695
        %v3532 = vpow.pop %v3531
        %v3533 = vmul.f32 %v3530, 1.442695
        %v3534 = vpow.pop %v3533
        %v3535 = vsel %vm1235, %v3532, 0.0
        %3536 = vadd.xlane.f32.xlu0 %v3535
        %v3537 = vpop.xlane.xlu0 %3536
        %v3538 = vsel %vm1235, %v3534, 0.0
        %3539 = vadd.xlane.f32.xlu0 %v3538
        %v3540 = vpop.xlane.xlu0 %3539
        %v3541 = vrcp.pop %v3537
        %v3542 = vrcp.pop %v3540
        %v3543 = vmul.f32 %v3532, %v3541
        %v3544 = vmul.f32 %v3534, %v3542
        %3545 = vrot.lane.b32.xlu0 %v3361, 64
        %v3546 = vpop.permute.xlu0 %3545
        %v3549 = vsel %vm1235, %v3543, 0
        %3551 = vmatprep.subr.mxu0 0.0
        %3552 = vmatpush1.msra.mxu0 %v3546
        %3553 = vmatprep.subr.mxu0 0.0
        %3554 = vmatpush1.msra.mxu0 0.0
        %3555 = vmatprep.subr.mxu0 0.0
        %3556 = vmatpush1.msra.mxu0 0.0
        %3557 = vmatprep.subr.mxu0 0.0
        %3558 = vmatpush1.msra.mxu0 0.0
        %3559 = vmatprep.subr.mxu0 0.0
        %3560 = vmatpush1.msra.mxu0 0.0
        %3561 = vmatprep.subr.mxu0 0.0
        %3562 = vmatpush1.msra.mxu0 0.0
        %3563 = vmatprep.subr.mxu0 0.0
        %3564 = vmatpush1.msra.mxu0 0.0
        %3565 = vmatprep.subr.mxu0 0.0
        %3566 = vmatpush1.msra.mxu0 0.0
        %3567 = vmatprep.subr.mxu0 0.0
        %3568 = vmatpush1.msra.mxu0 0.0
        %3569 = vmatprep.subr.mxu0 0.0
        %3570 = vmatpush1.msra.mxu0 0.0
        %3571 = vmatprep.subr.mxu0 0.0
        %3572 = vmatpush1.msra.mxu0 0.0
        %3573 = vmatprep.subr.mxu0 0.0
        %3574 = vmatpush1.msra.mxu0 0.0
        %3575 = vmatprep.subr.mxu0 0.0
        %3576 = vmatpush1.msra.mxu0 0.0
        %3577 = vmatprep.subr.mxu0 0.0
        %3578 = vmatpush1.msra.mxu0 0.0
        %3579 = vmatprep.subr.mxu0 0.0
        %3580 = vmatpush1.msra.mxu0 0.0
        %3581 = vmatprep.subr.mxu0 0.0
        %3582 = vmatpush1.msra.mxu0 0.0
        %3583 = vmatprep.subr.mxu0 0.0
        %3584 = vmatpush1.msra.mxu0 0.0
        %3585 = vmatprep.subr.mxu0 0.0
        %3586 = vmatpush1.msra.mxu0 0.0
        %3587 = vmatprep.subr.mxu0 0.0
        %3588 = vmatpush1.msra.mxu0 0.0
        %3589 = vmatprep.subr.mxu0 0.0
        %3590 = vmatpush1.msra.mxu0 0.0
        %3591 = vmatprep.subr.mxu0 0.0
        %3592 = vmatpush1.msra.mxu0 0.0
        %3593 = vmatprep.subr.mxu0 0.0
        %3594 = vmatpush1.msra.mxu0 0.0
        %3595 = vmatprep.subr.mxu0 0.0
        %3596 = vmatpush1.msra.mxu0 0.0
        %3597 = vmatprep.subr.mxu0 0.0
        %3598 = vmatpush1.msra.mxu0 0.0
        %3599 = vmatprep.subr.mxu0 0.0
        %3600 = vmatpush1.msra.mxu0 0.0
        %3601 = vmatprep.subr.mxu0 0.0
        %3602 = vmatpush1.msra.mxu0 0.0
        %3603 = vmatprep.subr.mxu0 0.0
        %3604 = vmatpush1.msra.mxu0 0.0
        %3605 = vmatprep.subr.mxu0 0.0
        %3606 = vmatpush1.msra.mxu0 0.0
        %3607 = vmatprep.subr.mxu0 0.0
        %3608 = vmatpush1.msra.mxu0 0.0
        %3609 = vmatprep.subr.mxu0 0.0
        %3610 = vmatpush1.msra.mxu0 0.0
        %3611 = vmatprep.subr.mxu0 0.0
        %3612 = vmatpush1.msra.mxu0 0.0
        %3613 = vmatprep.subr.mxu0 0.0
        %3614 = vmatpush1.msra.mxu0 0.0
        %3615 = vmatprep.mubr.f32.mxu0 0.0
        %3616 = vmatmul.mubr.f32.gmra.mrb[0].mxu0 %v3549
        %v3617 = vpop.f32.mrb[0].mxu0
        %v3618 = vadd.f32 0.0, %v3617
        %v3619 = vpop.f32.mrb[0].mxu0
        %3620 = vdwg.mxu0
        %3621 = vrot.lane.b32.xlu0 %v3366, 64
        %v3622 = vpop.permute.xlu0 %3621
        %v3625 = vsel %vm1235, %v3544, 0
        %3627 = vmatprep.subr.mxu0 0.0
        %3628 = vmatpush1.msra.mxu0 %v3622
        %3629 = vmatprep.subr.mxu0 0.0
        %3630 = vmatpush1.msra.mxu0 0.0
        %3631 = vmatprep.subr.mxu0 0.0
        %3632 = vmatpush1.msra.mxu0 0.0
        %3633 = vmatprep.subr.mxu0 0.0
        %3634 = vmatpush1.msra.mxu0 0.0
        %3635 = vmatprep.subr.mxu0 0.0
        %3636 = vmatpush1.msra.mxu0 0.0
        %3637 = vmatprep.subr.mxu0 0.0
        %3638 = vmatpush1.msra.mxu0 0.0
        %3639 = vmatprep.subr.mxu0 0.0
        %3640 = vmatpush1.msra.mxu0 0.0
        %3641 = vmatprep.subr.mxu0 0.0
        %3642 = vmatpush1.msra.mxu0 0.0
        %3643 = vmatprep.subr.mxu0 0.0
        %3644 = vmatpush1.msra.mxu0 0.0
        %3645 = vmatprep.subr.mxu0 0.0
        %3646 = vmatpush1.msra.mxu0 0.0
        %3647 = vmatprep.subr.mxu0 0.0
        %3648 = vmatpush1.msra.mxu0 0.0
        %3649 = vmatprep.subr.mxu0 0.0
        %3650 = vmatpush1.msra.mxu0 0.0
        %3651 = vmatprep.subr.mxu0 0.0
        %3652 = vmatpush1.msra.mxu0 0.0
        %3653 = vmatprep.subr.mxu0 0.0
        %3654 = vmatpush1.msra.mxu0 0.0
        %3655 = vmatprep.subr.mxu0 0.0
        %3656 = vmatpush1.msra.mxu0 0.0
        %3657 = vmatprep.subr.mxu0 0.0
        %3658 = vmatpush1.msra.mxu0 0.0
        %3659 = vmatprep.subr.mxu0 0.0
        %3660 = vmatpush1.msra.mxu0 0.0
        %3661 = vmatprep.subr.mxu0 0.0
        %3662 = vmatpush1.msra.mxu0 0.0
        %3663 = vmatprep.subr.mxu0 0.0
        %3664 = vmatpush1.msra.mxu0 0.0
        %3665 = vmatprep.subr.mxu0 0.0
        %3666 = vmatpush1.msra.mxu0 0.0
        %3667 = vmatprep.subr.mxu0 0.0
        %3668 = vmatpush1.msra.mxu0 0.0
        %3669 = vmatprep.subr.mxu0 0.0
        %3670 = vmatpush1.msra.mxu0 0.0
        %3671 = vmatprep.subr.mxu0 0.0
        %3672 = vmatpush1.msra.mxu0 0.0
        %3673 = vmatprep.subr.mxu0 0.0
        %3674 = vmatpush1.msra.mxu0 0.0
        %3675 = vmatprep.subr.mxu0 0.0
        %3676 = vmatpush1.msra.mxu0 0.0
        %3677 = vmatprep.subr.mxu0 0.0
        %3678 = vmatpush1.msra.mxu0 0.0
        %3679 = vmatprep.subr.mxu0 0.0
        %3680 = vmatpush1.msra.mxu0 0.0
        %3681 = vmatprep.subr.mxu0 0.0
        %3682 = vmatpush1.msra.mxu0 0.0
        %3683 = vmatprep.subr.mxu0 0.0
        %3684 = vmatpush1.msra.mxu0 0.0
        %3685 = vmatprep.subr.mxu0 0.0
        %3686 = vmatpush1.msra.mxu0 0.0
        %3687 = vmatprep.subr.mxu0 0.0
        %3688 = vmatpush1.msra.mxu0 0.0
        %3689 = vmatprep.subr.mxu0 0.0
        %3690 = vmatpush1.msra.mxu0 0.0
        %3691 = vmatprep.mubr.f32.mxu0 0.0
        %3692 = vmatmul.mubr.f32.gmra.mrb[0].mxu0 %v3625
        %v3693 = vpop.f32.mrb[0].mxu0
        %v3694 = vadd.f32 0.0, %v3693
        %v3695 = vpop.f32.mrb[0].mxu0
        %3696 = vdwg.mxu0
        %3697 = vrot.lane.b32.xlu0 %v3361, 120
        %v3698 = vpop.permute.xlu0 %3697
        %3699 = vrot.lane.b32.xlu0 %v3361, 88
        %v3700 = vpop.permute.xlu0 %3699
        %v3701 = vsel %vm1235, %v3698, 0
        %v3703 = vsel %vm1235, %v3700, 0
        %3705 = vmatprep.subr.mxu0 0.0
        %3706 = vmatpush1.xpose.msra.mxu0 %v3703
        %3707 = vmatprep.subr.mxu0 0.0
        %3708 = vmatpush1.xpose.msra.mxu0 0.0
        %3709 = vmatprep.subr.mxu0 0.0
        %3710 = vmatpush1.xpose.msra.mxu0 0.0
        %3711 = vmatprep.subr.mxu0 0.0
        %3712 = vmatpush1.xpose.msra.mxu0 0.0
        %3713 = vmatprep.subr.mxu0 0.0
        %3714 = vmatpush1.xpose.msra.mxu0 0.0
        %3715 = vmatprep.subr.mxu0 0.0
        %3716 = vmatpush1.xpose.msra.mxu0 0.0
        %3717 = vmatprep.subr.mxu0 0.0
        %3718 = vmatpush1.xpose.msra.mxu0 0.0
        %3719 = vmatprep.subr.mxu0 0.0
        %3720 = vmatpush1.xpose.msra.mxu0 0.0
        %3721 = vmatprep.subr.mxu0 0.0
        %3722 = vmatpush1.xpose.msra.mxu0 0.0
        %3723 = vmatprep.subr.mxu0 0.0
        %3724 = vmatpush1.xpose.msra.mxu0 0.0
        %3725 = vmatprep.subr.mxu0 0.0
        %3726 = vmatpush1.xpose.msra.mxu0 0.0
        %3727 = vmatprep.subr.mxu0 0.0
        %3728 = vmatpush1.xpose.msra.mxu0 0.0
        %3729 = vmatprep.subr.mxu0 0.0
        %3730 = vmatpush1.xpose.msra.mxu0 0.0
        %3731 = vmatprep.subr.mxu0 0.0
        %3732 = vmatpush1.xpose.msra.mxu0 0.0
        %3733 = vmatprep.subr.mxu0 0.0
        %3734 = vmatpush1.xpose.msra.mxu0 0.0
        %3735 = vmatprep.subr.mxu0 0.0
        %3736 = vmatpush1.xpose.msra.mxu0 0.0
        %3737 = vmatprep.subr.mxu0 0.0
        %3738 = vmatpush1.xpose.msra.mxu0 0.0
        %3739 = vmatprep.subr.mxu0 0.0
        %3740 = vmatpush1.xpose.msra.mxu0 0.0
        %3741 = vmatprep.subr.mxu0 0.0
        %3742 = vmatpush1.xpose.msra.mxu0 0.0
        %3743 = vmatprep.subr.mxu0 0.0
        %3744 = vmatpush1.xpose.msra.mxu0 0.0
        %3745 = vmatprep.subr.mxu0 0.0
        %3746 = vmatpush1.xpose.msra.mxu0 0.0
        %3747 = vmatprep.subr.mxu0 0.0
        %3748 = vmatpush1.xpose.msra.mxu0 0.0
        %3749 = vmatprep.subr.mxu0 0.0
        %3750 = vmatpush1.xpose.msra.mxu0 0.0
        %3751 = vmatprep.subr.mxu0 0.0
        %3752 = vmatpush1.xpose.msra.mxu0 0.0
        %3753 = vmatprep.subr.mxu0 0.0
        %3754 = vmatpush1.xpose.msra.mxu0 0.0
        %3755 = vmatprep.subr.mxu0 0.0
        %3756 = vmatpush1.xpose.msra.mxu0 0.0
        %3757 = vmatprep.subr.mxu0 0.0
        %3758 = vmatpush1.xpose.msra.mxu0 0.0
        %3759 = vmatprep.subr.mxu0 0.0
        %3760 = vmatpush1.xpose.msra.mxu0 0.0
        %3761 = vmatprep.subr.mxu0 0.0
        %3762 = vmatpush1.xpose.msra.mxu0 0.0
        %3763 = vmatprep.subr.mxu0 0.0
        %3764 = vmatpush1.xpose.msra.mxu0 0.0
        %3765 = vmatprep.subr.mxu0 0.0
        %3766 = vmatpush1.xpose.msra.mxu0 0.0
        %3767 = vmatprep.subr.mxu0 0.0
        %3768 = vmatpush1.xpose.msra.mxu0 0.0
        %3769 = vmatprep.mubr.f32.mxu0 0.0
        %3770 = vmatmul.mubr.f32.gmra.mrb[0].mxu0 %v3701
        %v3771 = vpop.f32.mrb[0].mxu0
        %v3772 = vadd.f32 0.0, %v3771
        %v3773 = vpop.f32.mrb[0].mxu0
        %3774 = vdwg.mxu0
        %3775 = vrot.lane.b32.xlu0 %v3366, 120
        %v3776 = vpop.permute.xlu0 %3775
        %3777 = vrot.lane.b32.xlu0 %v3366, 88
        %v3778 = vpop.permute.xlu0 %3777
        %v3779 = vsel %vm1235, %v3776, 0
        %v3781 = vsel %vm1235, %v3778, 0
        %3783 = vmatprep.subr.mxu0 0.0
        %3784 = vmatpush1.xpose.msra.mxu0 %v3781
        %3785 = vmatprep.subr.mxu0 0.0
        %3786 = vmatpush1.xpose.msra.mxu0 0.0
        %3787 = vmatprep.subr.mxu0 0.0
        %3788 = vmatpush1.xpose.msra.mxu0 0.0
        %3789 = vmatprep.subr.mxu0 0.0
        %3790 = vmatpush1.xpose.msra.mxu0 0.0
        %3791 = vmatprep.subr.mxu0 0.0
        %3792 = vmatpush1.xpose.msra.mxu0 0.0
        %3793 = vmatprep.subr.mxu0 0.0
        %3794 = vmatpush1.xpose.msra.mxu0 0.0
        %3795 = vmatprep.subr.mxu0 0.0
        %3796 = vmatpush1.xpose.msra.mxu0 0.0
        %3797 = vmatprep.subr.mxu0 0.0
        %3798 = vmatpush1.xpose.msra.mxu0 0.0
        %3799 = vmatprep.subr.mxu0 0.0
        %3800 = vmatpush1.xpose.msra.mxu0 0.0
        %3801 = vmatprep.subr.mxu0 0.0
        %3802 = vmatpush1.xpose.msra.mxu0 0.0
        %3803 = vmatprep.subr.mxu0 0.0
        %3804 = vmatpush1.xpose.msra.mxu0 0.0
        %3805 = vmatprep.subr.mxu0 0.0
        %3806 = vmatpush1.xpose.msra.mxu0 0.0
        %3807 = vmatprep.subr.mxu0 0.0
        %3808 = vmatpush1.xpose.msra.mxu0 0.0
        %3809 = vmatprep.subr.mxu0 0.0
        %3810 = vmatpush1.xpose.msra.mxu0 0.0
        %3811 = vmatprep.subr.mxu0 0.0
        %3812 = vmatpush1.xpose.msra.mxu0 0.0
        %3813 = vmatprep.subr.mxu0 0.0
        %3814 = vmatpush1.xpose.msra.mxu0 0.0
        %3815 = vmatprep.subr.mxu0 0.0
        %3816 = vmatpush1.xpose.msra.mxu0 0.0
        %3817 = vmatprep.subr.mxu0 0.0
        %3818 = vmatpush1.xpose.msra.mxu0 0.0
        %3819 = vmatprep.subr.mxu0 0.0
        %3820 = vmatpush1.xpose.msra.mxu0 0.0
        %3821 = vmatprep.subr.mxu0 0.0
        %3822 = vmatpush1.xpose.msra.mxu0 0.0
        %3823 = vmatprep.subr.mxu0 0.0
        %3824 = vmatpush1.xpose.msra.mxu0 0.0
        %3825 = vmatprep.subr.mxu0 0.0
        %3826 = vmatpush1.xpose.msra.mxu0 0.0
        %3827 = vmatprep.subr.mxu0 0.0
        %3828 = vmatpush1.xpose.msra.mxu0 0.0
        %3829 = vmatprep.subr.mxu0 0.0
        %3830 = vmatpush1.xpose.msra.mxu0 0.0
        %3831 = vmatprep.subr.mxu0 0.0
        %3832 = vmatpush1.xpose.msra.mxu0 0.0
        %3833 = vmatprep.subr.mxu0 0.0
        %3834 = vmatpush1.xpose.msra.mxu0 0.0
        %3835 = vmatprep.subr.mxu0 0.0
        %3836 = vmatpush1.xpose.msra.mxu0 0.0
        %3837 = vmatprep.subr.mxu0 0.0
        %3838 = vmatpush1.xpose.msra.mxu0 0.0
        %3839 = vmatprep.subr.mxu0 0.0
        %3840 = vmatpush1.xpose.msra.mxu0 0.0
        %3841 = vmatprep.subr.mxu0 0.0
        %3842 = vmatpush1.xpose.msra.mxu0 0.0
        %3843 = vmatprep.subr.mxu0 0.0
        %3844 = vmatpush1.xpose.msra.mxu0 0.0
        %3845 = vmatprep.subr.mxu0 0.0
        %3846 = vmatpush1.xpose.msra.mxu0 0.0
        %3847 = vmatprep.mubr.f32.mxu0 0.0
        %3848 = vmatmul.mubr.f32.gmra.mrb[0].mxu0 %v3779
        %v3849 = vpop.f32.mrb[0].mxu0
        %v3850 = vadd.f32 0.0, %v3849
        %v3851 = vpop.f32.mrb[0].mxu0
        %3852 = vdwg.mxu0
        %v3853 = vsel %vm1235, %v3772, -inf
        %3854 = vmax.xlane.f32.xlu0 %v3853
        %v3855 = vpop.xlane.xlu0 %3854
        %v3856 = vsel %vm1235, %v3850, -inf
        %3857 = vmax.xlane.f32.xlu0 %v3856
        %v3858 = vpop.xlane.xlu0 %3857
        %v3859 = vsub.f32 %v3772, %v3855
        %v3860 = vsub.f32 %v3850, %v3858
        %v3861 = vmul.f32 %v3859, 1.442695
        %v3862 = vpow.pop %v3861
        %v3863 = vmul.f32 %v3860, 1.442695
        %v3864 = vpow.pop %v3863
        %v3865 = vsel %vm1235, %v3862, 0.0
        %3866 = vadd.xlane.f32.xlu0 %v3865
        %v3867 = vpop.xlane.xlu0 %3866
        %v3868 = vsel %vm1235, %v3864, 0.0
        %3869 = vadd.xlane.f32.xlu0 %v3868
        %v3870 = vpop.xlane.xlu0 %3869
        %v3871 = vrcp.pop %v3867
        %v3872 = vrcp.pop %v3870
        %v3873 = vmul.f32 %v3862, %v3871
        %v3874 = vmul.f32 %v3864, %v3872
        %3875 = vrot.lane.b32.xlu0 %v3361, 56
        %v3876 = vpop.permute.xlu0 %3875
        %v3879 = vsel %vm1235, %v3873, 0
        %3881 = vmatprep.subr.mxu0 0.0
        %3882 = vmatpush1.msra.mxu0 %v3876
        %3883 = vmatprep.subr.mxu0 0.0
        %3884 = vmatpush1.msra.mxu0 0.0
        %3885 = vmatprep.subr.mxu0 0.0
        %3886 = vmatpush1.msra.mxu0 0.0
        %3887 = vmatprep.subr.mxu0 0.0
        %3888 = vmatpush1.msra.mxu0 0.0
        %3889 = vmatprep.subr.mxu0 0.0
        %3890 = vmatpush1.msra.mxu0 0.0
        %3891 = vmatprep.subr.mxu0 0.0
        %3892 = vmatpush1.msra.mxu0 0.0
        %3893 = vmatprep.subr.mxu0 0.0
        %3894 = vmatpush1.msra.mxu0 0.0
        %3895 = vmatprep.subr.mxu0 0.0
        %3896 = vmatpush1.msra.mxu0 0.0
        %3897 = vmatprep.subr.mxu0 0.0
        %3898 = vmatpush1.msra.mxu0 0.0
        %3899 = vmatprep.subr.mxu0 0.0
        %3900 = vmatpush1.msra.mxu0 0.0
        %3901 = vmatprep.subr.mxu0 0.0
        %3902 = vmatpush1.msra.mxu0 0.0
        %3903 = vmatprep.subr.mxu0 0.0
        %3904 = vmatpush1.msra.mxu0 0.0
        %3905 = vmatprep.subr.mxu0 0.0
        %3906 = vmatpush1.msra.mxu0 0.0
        %3907 = vmatprep.subr.mxu0 0.0
        %3908 = vmatpush1.msra.mxu0 0.0
        %3909 = vmatprep.subr.mxu0 0.0
        %3910 = vmatpush1.msra.mxu0 0.0
        %3911 = vmatprep.subr.mxu0 0.0
        %3912 = vmatpush1.msra.mxu0 0.0
        %3913 = vmatprep.subr.mxu0 0.0
        %3914 = vmatpush1.msra.mxu0 0.0
        %3915 = vmatprep.subr.mxu0 0.0
        %3916 = vmatpush1.msra.mxu0 0.0
        %3917 = vmatprep.subr.mxu0 0.0
        %3918 = vmatpush1.msra.mxu0 0.0
        %3919 = vmatprep.subr.mxu0 0.0
        %3920 = vmatpush1.msra.mxu0 0.0
        %3921 = vmatprep.subr.mxu0 0.0
        %3922 = vmatpush1.msra.mxu0 0.0
        %3923 = vmatprep.subr.mxu0 0.0
        %3924 = vmatpush1.msra.mxu0 0.0
        %3925 = vmatprep.subr.mxu0 0.0
        %3926 = vmatpush1.msra.mxu0 0.0
        %3927 = vmatprep.subr.mxu0 0.0
        %3928 = vmatpush1.msra.mxu0 0.0
        %3929 = vmatprep.subr.mxu0 0.0
        %3930 = vmatpush1.msra.mxu0 0.0
        %3931 = vmatprep.subr.mxu0 0.0
        %3932 = vmatpush1.msra.mxu0 0.0
        %3933 = vmatprep.subr.mxu0 0.0
        %3934 = vmatpush1.msra.mxu0 0.0
        %3935 = vmatprep.subr.mxu0 0.0
        %3936 = vmatpush1.msra.mxu0 0.0
        %3937 = vmatprep.subr.mxu0 0.0
        %3938 = vmatpush1.msra.mxu0 0.0
        %3939 = vmatprep.subr.mxu0 0.0
        %3940 = vmatpush1.msra.mxu0 0.0
        %3941 = vmatprep.subr.mxu0 0.0
        %3942 = vmatpush1.msra.mxu0 0.0
        %3943 = vmatprep.subr.mxu0 0.0
        %3944 = vmatpush1.msra.mxu0 0.0
        %3945 = vmatprep.mubr.f32.mxu0 0.0
        %3946 = vmatmul.mubr.f32.gmra.mrb[0].mxu0 %v3879
        %v3947 = vpop.f32.mrb[0].mxu0
        %v3948 = vadd.f32 0.0, %v3947
        %v3949 = vpop.f32.mrb[0].mxu0
        %3950 = vdwg.mxu0
        %3951 = vrot.lane.b32.xlu0 %v3366, 56
        %v3952 = vpop.permute.xlu0 %3951
        %v3955 = vsel %vm1235, %v3874, 0
        %3957 = vmatprep.subr.mxu0 0.0
        %3958 = vmatpush1.msra.mxu0 %v3952
        %3959 = vmatprep.subr.mxu0 0.0
        %3960 = vmatpush1.msra.mxu0 0.0
        %3961 = vmatprep.subr.mxu0 0.0
        %3962 = vmatpush1.msra.mxu0 0.0
        %3963 = vmatprep.subr.mxu0 0.0
        %3964 = vmatpush1.msra.mxu0 0.0
        %3965 = vmatprep.subr.mxu0 0.0
        %3966 = vmatpush1.msra.mxu0 0.0
        %3967 = vmatprep.subr.mxu0 0.0
        %3968 = vmatpush1.msra.mxu0 0.0
        %3969 = vmatprep.subr.mxu0 0.0
        %3970 = vmatpush1.msra.mxu0 0.0
        %3971 = vmatprep.subr.mxu0 0.0
        %3972 = vmatpush1.msra.mxu0 0.0
        %3973 = vmatprep.subr.mxu0 0.0
        %3974 = vmatpush1.msra.mxu0 0.0
        %3975 = vmatprep.subr.mxu0 0.0
        %3976 = vmatpush1.msra.mxu0 0.0
        %3977 = vmatprep.subr.mxu0 0.0
        %3978 = vmatpush1.msra.mxu0 0.0
        %3979 = vmatprep.subr.mxu0 0.0
        %3980 = vmatpush1.msra.mxu0 0.0
        %3981 = vmatprep.subr.mxu0 0.0
        %3982 = vmatpush1.msra.mxu0 0.0
        %3983 = vmatprep.subr.mxu0 0.0
        %3984 = vmatpush1.msra.mxu0 0.0
        %3985 = vmatprep.subr.mxu0 0.0
        %3986 = vmatpush1.msra.mxu0 0.0
        %3987 = vmatprep.subr.mxu0 0.0
        %3988 = vmatpush1.msra.mxu0 0.0
        %3989 = vmatprep.subr.mxu0 0.0
        %3990 = vmatpush1.msra.mxu0 0.0
        %3991 = vmatprep.subr.mxu0 0.0
        %3992 = vmatpush1.msra.mxu0 0.0
        %3993 = vmatprep.subr.mxu0 0.0
        %3994 = vmatpush1.msra.mxu0 0.0
        %3995 = vmatprep.subr.mxu0 0.0
        %3996 = vmatpush1.msra.mxu0 0.0
        %3997 = vmatprep.subr.mxu0 0.0
        %3998 = vmatpush1.msra.mxu0 0.0
        %3999 = vmatprep.subr.mxu0 0.0
        %4000 = vmatpush1.msra.mxu0 0.0
        %4001 = vmatprep.subr.mxu0 0.0
        %4002 = vmatpush1.msra.mxu0 0.0
        %4003 = vmatprep.subr.mxu0 0.0
        %4004 = vmatpush1.msra.mxu0 0.0
        %4005 = vmatprep.subr.mxu0 0.0
        %4006 = vmatpush1.msra.mxu0 0.0
        %4007 = vmatprep.subr.mxu0 0.0
        %4008 = vmatpush1.msra.mxu0 0.0
        %4009 = vmatprep.subr.mxu0 0.0
        %4010 = vmatpush1.msra.mxu0 0.0
        %4011 = vmatprep.subr.mxu0 0.0
        %4012 = vmatpush1.msra.mxu0 0.0
        %4013 = vmatprep.subr.mxu0 0.0
        %4014 = vmatpush1.msra.mxu0 0.0
        %4015 = vmatprep.subr.mxu0 0.0
        %4016 = vmatpush1.msra.mxu0 0.0
        %4017 = vmatprep.subr.mxu0 0.0
        %4018 = vmatpush1.msra.mxu0 0.0
        %4019 = vmatprep.subr.mxu0 0.0
        %4020 = vmatpush1.msra.mxu0 0.0
        %4021 = vmatprep.mubr.f32.mxu0 0.0
        %4022 = vmatmul.mubr.f32.gmra.mrb[0].mxu0 %v3955
        %v4023 = vpop.f32.mrb[0].mxu0
        %v4024 = vadd.f32 0.0, %v4023
        %v4025 = vpop.f32.mrb[0].mxu0
        %4026 = vdwg.mxu0
        %4027 = vrot.lane.b32.xlu0 %v3361, 112
        %v4028 = vpop.permute.xlu0 %4027
        %4029 = vrot.lane.b32.xlu0 %v3361, 80
        %v4030 = vpop.permute.xlu0 %4029
        %v4031 = vsel %vm1235, %v4028, 0
        %v4033 = vsel %vm1235, %v4030, 0
        %4035 = vmatprep.subr.mxu0 0.0
        %4036 = vmatpush1.xpose.msra.mxu0 %v4033
        %4037 = vmatprep.subr.mxu0 0.0
        %4038 = vmatpush1.xpose.msra.mxu0 0.0
        %4039 = vmatprep.subr.mxu0 0.0
        %4040 = vmatpush1.xpose.msra.mxu0 0.0
        %4041 = vmatprep.subr.mxu0 0.0
        %4042 = vmatpush1.xpose.msra.mxu0 0.0
        %4043 = vmatprep.subr.mxu0 0.0
        %4044 = vmatpush1.xpose.msra.mxu0 0.0
        %4045 = vmatprep.subr.mxu0 0.0
        %4046 = vmatpush1.xpose.msra.mxu0 0.0
        %4047 = vmatprep.subr.mxu0 0.0
        %4048 = vmatpush1.xpose.msra.mxu0 0.0
        %4049 = vmatprep.subr.mxu0 0.0
        %4050 = vmatpush1.xpose.msra.mxu0 0.0
        %4051 = vmatprep.subr.mxu0 0.0
        %4052 = vmatpush1.xpose.msra.mxu0 0.0
        %4053 = vmatprep.subr.mxu0 0.0
        %4054 = vmatpush1.xpose.msra.mxu0 0.0
        %4055 = vmatprep.subr.mxu0 0.0
        %4056 = vmatpush1.xpose.msra.mxu0 0.0
        %4057 = vmatprep.subr.mxu0 0.0
        %4058 = vmatpush1.xpose.msra.mxu0 0.0
        %4059 = vmatprep.subr.mxu0 0.0
        %4060 = vmatpush1.xpose.msra.mxu0 0.0
        %4061 = vmatprep.subr.mxu0 0.0
        %4062 = vmatpush1.xpose.msra.mxu0 0.0
        %4063 = vmatprep.subr.mxu0 0.0
        %4064 = vmatpush1.xpose.msra.mxu0 0.0
        %4065 = vmatprep.subr.mxu0 0.0
        %4066 = vmatpush1.xpose.msra.mxu0 0.0
        %4067 = vmatprep.subr.mxu0 0.0
        %4068 = vmatpush1.xpose.msra.mxu0 0.0
        %4069 = vmatprep.subr.mxu0 0.0
        %4070 = vmatpush1.xpose.msra.mxu0 0.0
        %4071 = vmatprep.subr.mxu0 0.0
        %4072 = vmatpush1.xpose.msra.mxu0 0.0
        %4073 = vmatprep.subr.mxu0 0.0
        %4074 = vmatpush1.xpose.msra.mxu0 0.0
        %4075 = vmatprep.subr.mxu0 0.0
        %4076 = vmatpush1.xpose.msra.mxu0 0.0
        %4077 = vmatprep.subr.mxu0 0.0
        %4078 = vmatpush1.xpose.msra.mxu0 0.0
        %4079 = vmatprep.subr.mxu0 0.0
        %4080 = vmatpush1.xpose.msra.mxu0 0.0
        %4081 = vmatprep.subr.mxu0 0.0
        %4082 = vmatpush1.xpose.msra.mxu0 0.0
        %4083 = vmatprep.subr.mxu0 0.0
        %4084 = vmatpush1.xpose.msra.mxu0 0.0
        %4085 = vmatprep.subr.mxu0 0.0
        %4086 = vmatpush1.xpose.msra.mxu0 0.0
        %4087 = vmatprep.subr.mxu0 0.0
        %4088 = vmatpush1.xpose.msra.mxu0 0.0
        %4089 = vmatprep.subr.mxu0 0.0
        %4090 = vmatpush1.xpose.msra.mxu0 0.0
        %4091 = vmatprep.subr.mxu0 0.0
        %4092 = vmatpush1.xpose.msra.mxu0 0.0
        %4093 = vmatprep.subr.mxu0 0.0
        %4094 = vmatpush1.xpose.msra.mxu0 0.0
        %4095 = vmatprep.subr.mxu0 0.0
        %4096 = vmatpush1.xpose.msra.mxu0 0.0
        %4097 = vmatprep.subr.mxu0 0.0
        %4098 = vmatpush1.xpose.msra.mxu0 0.0
        %4099 = vmatprep.mubr.f32.mxu0 0.0
        %4100 = vmatmul.mubr.f32.gmra.mrb[0].mxu0 %v4031
        %v4101 = vpop.f32.mrb[0].mxu0
        %v4102 = vadd.f32 0.0, %v4101
        %v4103 = vpop.f32.mrb[0].mxu0
        %4104 = vdwg.mxu0
        %4105 = vrot.lane.b32.xlu0 %v3366, 112
        %v4106 = vpop.permute.xlu0 %4105
        %4107 = vrot.lane.b32.xlu0 %v3366, 80
        %v4108 = vpop.permute.xlu0 %4107
        %v4109 = vsel %vm1235, %v4106, 0
        %v4111 = vsel %vm1235, %v4108, 0
        %4113 = vmatprep.subr.mxu0 0.0
        %4114 = vmatpush1.xpose.msra.mxu0 %v4111
        %4115 = vmatprep.subr.mxu0 0.0
        %4116 = vmatpush1.xpose.msra.mxu0 0.0
        %4117 = vmatprep.subr.mxu0 0.0
        %4118 = vmatpush1.xpose.msra.mxu0 0.0
        %4119 = vmatprep.subr.mxu0 0.0
        %4120 = vmatpush1.xpose.msra.mxu0 0.0
        %4121 = vmatprep.subr.mxu0 0.0
        %4122 = vmatpush1.xpose.msra.mxu0 0.0
        %4123 = vmatprep.subr.mxu0 0.0
        %4124 = vmatpush1.xpose.msra.mxu0 0.0
        %4125 = vmatprep.subr.mxu0 0.0
        %4126 = vmatpush1.xpose.msra.mxu0 0.0
        %4127 = vmatprep.subr.mxu0 0.0
        %4128 = vmatpush1.xpose.msra.mxu0 0.0
        %4129 = vmatprep.subr.mxu0 0.0
        %4130 = vmatpush1.xpose.msra.mxu0 0.0
        %4131 = vmatprep.subr.mxu0 0.0
        %4132 = vmatpush1.xpose.msra.mxu0 0.0
        %4133 = vmatprep.subr.mxu0 0.0
        %4134 = vmatpush1.xpose.msra.mxu0 0.0
        %4135 = vmatprep.subr.mxu0 0.0
        %4136 = vmatpush1.xpose.msra.mxu0 0.0
        %4137 = vmatprep.subr.mxu0 0.0
        %4138 = vmatpush1.xpose.msra.mxu0 0.0
        %4139 = vmatprep.subr.mxu0 0.0
        %4140 = vmatpush1.xpose.msra.mxu0 0.0
        %4141 = vmatprep.subr.mxu0 0.0
        %4142 = vmatpush1.xpose.msra.mxu0 0.0
        %4143 = vmatprep.subr.mxu0 0.0
        %4144 = vmatpush1.xpose.msra.mxu0 0.0
        %4145 = vmatprep.subr.mxu0 0.0
        %4146 = vmatpush1.xpose.msra.mxu0 0.0
        %4147 = vmatprep.subr.mxu0 0.0
        %4148 = vmatpush1.xpose.msra.mxu0 0.0
        %4149 = vmatprep.subr.mxu0 0.0
        %4150 = vmatpush1.xpose.msra.mxu0 0.0
        %4151 = vmatprep.subr.mxu0 0.0
        %4152 = vmatpush1.xpose.msra.mxu0 0.0
        %4153 = vmatprep.subr.mxu0 0.0
        %4154 = vmatpush1.xpose.msra.mxu0 0.0
        %4155 = vmatprep.subr.mxu0 0.0
        %4156 = vmatpush1.xpose.msra.mxu0 0.0
        %4157 = vmatprep.subr.mxu0 0.0
        %4158 = vmatpush1.xpose.msra.mxu0 0.0
        %4159 = vmatprep.subr.mxu0 0.0
        %4160 = vmatpush1.xpose.msra.mxu0 0.0
        %4161 = vmatprep.subr.mxu0 0.0
        %4162 = vmatpush1.xpose.msra.mxu0 0.0
        %4163 = vmatprep.subr.mxu0 0.0
        %4164 = vmatpush1.xpose.msra.mxu0 0.0
        %4165 = vmatprep.subr.mxu0 0.0
        %4166 = vmatpush1.xpose.msra.mxu0 0.0
        %4167 = vmatprep.subr.mxu0 0.0
        %4168 = vmatpush1.xpose.msra.mxu0 0.0
        %4169 = vmatprep.subr.mxu0 0.0
        %4170 = vmatpush1.xpose.msra.mxu0 0.0
        %4171 = vmatprep.subr.mxu0 0.0
        %4172 = vmatpush1.xpose.msra.mxu0 0.0
        %4173 = vmatprep.subr.mxu0 0.0
        %4174 = vmatpush1.xpose.msra.mxu0 0.0
        %4175 = vmatprep.subr.mxu0 0.0
        %4176 = vmatpush1.xpose.msra.mxu0 0.0
        %4177 = vmatprep.mubr.f32.mxu0 0.0
        %4178 = vmatmul.mubr.f32.gmra.mrb[0].mxu0 %v4109
        %v4179 = vpop.f32.mrb[0].mxu0
        %v4180 = vadd.f32 0.0, %v4179
        %v4181 = vpop.f32.mrb[0].mxu0
        %4182 = vdwg.mxu0
        %v4183 = vsel %vm1235, %v4102, -inf
        %4184 = vmax.xlane.f32.xlu0 %v4183
        %v4185 = vpop.xlane.xlu0 %4184
        %v4186 = vsel %vm1235, %v4180, -inf
        %4187 = vmax.xlane.f32.xlu0 %v4186
        %v4188 = vpop.xlane.xlu0 %4187
        %v4189 = vsub.f32 %v4102, %v4185
        %v4190 = vsub.f32 %v4180, %v4188
        %v4191 = vmul.f32 %v4189, 1.442695
        %v4192 = vpow.pop %v4191
        %v4193 = vmul.f32 %v4190, 1.442695
        %v4194 = vpow.pop %v4193
        %v4195 = vsel %vm1235, %v4192, 0.0
        %4196 = vadd.xlane.f32.xlu0 %v4195
        %v4197 = vpop.xlane.xlu0 %4196
        %v4198 = vsel %vm1235, %v4194, 0.0
        %4199 = vadd.xlane.f32.xlu0 %v4198
        %v4200 = vpop.xlane.xlu0 %4199
        %v4201 = vrcp.pop %v4197
        %v4202 = vrcp.pop %v4200
        %v4203 = vmul.f32 %v4192, %v4201
        %v4204 = vmul.f32 %v4194, %v4202
        %4205 = vrot.lane.b32.xlu0 %v3361, 48
        %v4206 = vpop.permute.xlu0 %4205
        %v4209 = vsel %vm1235, %v4203, 0
        %4211 = vmatprep.subr.mxu0 0.0
        %4212 = vmatpush1.msra.mxu0 %v4206
        %4213 = vmatprep.subr.mxu0 0.0
        %4214 = vmatpush1.msra.mxu0 0.0
        %4215 = vmatprep.subr.mxu0 0.0
        %4216 = vmatpush1.msra.mxu0 0.0
        %4217 = vmatprep.subr.mxu0 0.0
        %4218 = vmatpush1.msra.mxu0 0.0
        %4219 = vmatprep.subr.mxu0 0.0
        %4220 = vmatpush1.msra.mxu0 0.0
        %4221 = vmatprep.subr.mxu0 0.0
        %4222 = vmatpush1.msra.mxu0 0.0
        %4223 = vmatprep.subr.mxu0 0.0
        %4224 = vmatpush1.msra.mxu0 0.0
        %4225 = vmatprep.subr.mxu0 0.0
        %4226 = vmatpush1.msra.mxu0 0.0
        %4227 = vmatprep.subr.mxu0 0.0
        %4228 = vmatpush1.msra.mxu0 0.0
        %4229 = vmatprep.subr.mxu0 0.0
        %4230 = vmatpush1.msra.mxu0 0.0
        %4231 = vmatprep.subr.mxu0 0.0
        %4232 = vmatpush1.msra.mxu0 0.0
        %4233 = vmatprep.subr.mxu0 0.0
        %4234 = vmatpush1.msra.mxu0 0.0
        %4235 = vmatprep.subr.mxu0 0.0
        %4236 = vmatpush1.msra.mxu0 0.0
        %4237 = vmatprep.subr.mxu0 0.0
        %4238 = vmatpush1.msra.mxu0 0.0
        %4239 = vmatprep.subr.mxu0 0.0
        %4240 = vmatpush1.msra.mxu0 0.0
        %4241 = vmatprep.subr.mxu0 0.0
        %4242 = vmatpush1.msra.mxu0 0.0
        %4243 = vmatprep.subr.mxu0 0.0
        %4244 = vmatpush1.msra.mxu0 0.0
        %4245 = vmatprep.subr.mxu0 0.0
        %4246 = vmatpush1.msra.mxu0 0.0
        %4247 = vmatprep.subr.mxu0 0.0
        %4248 = vmatpush1.msra.mxu0 0.0
        %4249 = vmatprep.subr.mxu0 0.0
        %4250 = vmatpush1.msra.mxu0 0.0
        %4251 = vmatprep.subr.mxu0 0.0
        %4252 = vmatpush1.msra.mxu0 0.0
        %4253 = vmatprep.subr.mxu0 0.0
        %4254 = vmatpush1.msra.mxu0 0.0
        %4255 = vmatprep.subr.mxu0 0.0
        %4256 = vmatpush1.msra.mxu0 0.0
        %4257 = vmatprep.subr.mxu0 0.0
        %4258 = vmatpush1.msra.mxu0 0.0
        %4259 = vmatprep.subr.mxu0 0.0
        %4260 = vmatpush1.msra.mxu0 0.0
        %4261 = vmatprep.subr.mxu0 0.0
        %4262 = vmatpush1.msra.mxu0 0.0
        %4263 = vmatprep.subr.mxu0 0.0
        %4264 = vmatpush1.msra.mxu0 0.0
        %4265 = vmatprep.subr.mxu0 0.0
        %4266 = vmatpush1.msra.mxu0 0.0
        %4267 = vmatprep.subr.mxu0 0.0
        %4268 = vmatpush1.msra.mxu0 0.0
        %4269 = vmatprep.subr.mxu0 0.0
        %4270 = vmatpush1.msra.mxu0 0.0
        %4271 = vmatprep.subr.mxu0 0.0
        %4272 = vmatpush1.msra.mxu0 0.0
        %4273 = vmatprep.subr.mxu0 0.0
        %4274 = vmatpush1.msra.mxu0 0.0
        %4275 = vmatprep.mubr.f32.mxu0 0.0
        %4276 = vmatmul.mubr.f32.gmra.mrb[0].mxu0 %v4209
        %v4277 = vpop.f32.mrb[0].mxu0
        %v4278 = vadd.f32 0.0, %v4277
        %v4279 = vpop.f32.mrb[0].mxu0
        %4280 = vdwg.mxu0
        %4281 = vrot.lane.b32.xlu0 %v3366, 48
        %v4282 = vpop.permute.xlu0 %4281
        %v4285 = vsel %vm1235, %v4204, 0
        %4287 = vmatprep.subr.mxu0 0.0
        %4288 = vmatpush1.msra.mxu0 %v4282
        %4289 = vmatprep.subr.mxu0 0.0
        %4290 = vmatpush1.msra.mxu0 0.0
        %4291 = vmatprep.subr.mxu0 0.0
        %4292 = vmatpush1.msra.mxu0 0.0
        %4293 = vmatprep.subr.mxu0 0.0
        %4294 = vmatpush1.msra.mxu0 0.0
        %4295 = vmatprep.subr.mxu0 0.0
        %4296 = vmatpush1.msra.mxu0 0.0
        %4297 = vmatprep.subr.mxu0 0.0
        %4298 = vmatpush1.msra.mxu0 0.0
        %4299 = vmatprep.subr.mxu0 0.0
        %4300 = vmatpush1.msra.mxu0 0.0
        %4301 = vmatprep.subr.mxu0 0.0
        %4302 = vmatpush1.msra.mxu0 0.0
        %4303 = vmatprep.subr.mxu0 0.0
        %4304 = vmatpush1.msra.mxu0 0.0
        %4305 = vmatprep.subr.mxu0 0.0
        %4306 = vmatpush1.msra.mxu0 0.0
        %4307 = vmatprep.subr.mxu0 0.0
        %4308 = vmatpush1.msra.mxu0 0.0
        %4309 = vmatprep.subr.mxu0 0.0
        %4310 = vmatpush1.msra.mxu0 0.0
        %4311 = vmatprep.subr.mxu0 0.0
        %4312 = vmatpush1.msra.mxu0 0.0
        %4313 = vmatprep.subr.mxu0 0.0
        %4314 = vmatpush1.msra.mxu0 0.0
        %4315 = vmatprep.subr.mxu0 0.0
        %4316 = vmatpush1.msra.mxu0 0.0
        %4317 = vmatprep.subr.mxu0 0.0
        %4318 = vmatpush1.msra.mxu0 0.0
        %4319 = vmatprep.subr.mxu0 0.0
        %4320 = vmatpush1.msra.mxu0 0.0
        %4321 = vmatprep.subr.mxu0 0.0
        %4322 = vmatpush1.msra.mxu0 0.0
        %4323 = vmatprep.subr.mxu0 0.0
        %4324 = vmatpush1.msra.mxu0 0.0
        %4325 = vmatprep.subr.mxu0 0.0
        %4326 = vmatpush1.msra.mxu0 0.0
        %4327 = vmatprep.subr.mxu0 0.0
        %4328 = vmatpush1.msra.mxu0 0.0
        %4329 = vmatprep.subr.mxu0 0.0
        %4330 = vmatpush1.msra.mxu0 0.0
        %4331 = vmatprep.subr.mxu0 0.0
        %4332 = vmatpush1.msra.mxu0 0.0
        %4333 = vmatprep.subr.mxu0 0.0
        %4334 = vmatpush1.msra.mxu0 0.0
        %4335 = vmatprep.subr.mxu0 0.0
        %4336 = vmatpush1.msra.mxu0 0.0
        %4337 = vmatprep.subr.mxu0 0.0
        %4338 = vmatpush1.msra.mxu0 0.0
        %4339 = vmatprep.subr.mxu0 0.0
        %4340 = vmatpush1.msra.mxu0 0.0
        %4341 = vmatprep.subr.mxu0 0.0
        %4342 = vmatpush1.msra.mxu0 0.0
        %4343 = vmatprep.subr.mxu0 0.0
        %4344 = vmatpush1.msra.mxu0 0.0
        %4345 = vmatprep.subr.mxu0 0.0
        %4346 = vmatpush1.msra.mxu0 0.0
        %4347 = vmatprep.subr.mxu0 0.0
        %4348 = vmatpush1.msra.mxu0 0.0
        %4349 = vmatprep.subr.mxu0 0.0
        %4350 = vmatpush1.msra.mxu0 0.0
        %4351 = vmatprep.mubr.f32.mxu0 0.0
        %4352 = vmatmul.mubr.f32.gmra.mrb[0].mxu0 %v4285
        %v4353 = vpop.f32.mrb[0].mxu0
        %v4354 = vadd.f32 0.0, %v4353
        %v4355 = vpop.f32.mrb[0].mxu0
        %4356 = vdwg.mxu0
        %4357 = vrot.lane.b32.xlu0 %v3361, 104
        %v4358 = vpop.permute.xlu0 %4357
        %4359 = vrot.lane.b32.xlu0 %v3361, 72
        %v4360 = vpop.permute.xlu0 %4359
        %v4361 = vsel %vm1235, %v4358, 0
        %v4363 = vsel %vm1235, %v4360, 0
        %4365 = vmatprep.subr.mxu0 0.0
        %4366 = vmatpush1.xpose.msra.mxu0 %v4363
        %4367 = vmatprep.subr.mxu0 0.0
        %4368 = vmatpush1.xpose.msra.mxu0 0.0
        %4369 = vmatprep.subr.mxu0 0.0
        %4370 = vmatpush1.xpose.msra.mxu0 0.0
        %4371 = vmatprep.subr.mxu0 0.0
        %4372 = vmatpush1.xpose.msra.mxu0 0.0
        %4373 = vmatprep.subr.mxu0 0.0
        %4374 = vmatpush1.xpose.msra.mxu0 0.0
        %4375 = vmatprep.subr.mxu0 0.0
        %4376 = vmatpush1.xpose.msra.mxu0 0.0
        %4377 = vmatprep.subr.mxu0 0.0
        %4378 = vmatpush1.xpose.msra.mxu0 0.0
        %4379 = vmatprep.subr.mxu0 0.0
        %4380 = vmatpush1.xpose.msra.mxu0 0.0
        %4381 = vmatprep.subr.mxu0 0.0
        %4382 = vmatpush1.xpose.msra.mxu0 0.0
        %4383 = vmatprep.subr.mxu0 0.0
        %4384 = vmatpush1.xpose.msra.mxu0 0.0
        %4385 = vmatprep.subr.mxu0 0.0
        %4386 = vmatpush1.xpose.msra.mxu0 0.0
        %4387 = vmatprep.subr.mxu0 0.0
        %4388 = vmatpush1.xpose.msra.mxu0 0.0
        %4389 = vmatprep.subr.mxu0 0.0
        %4390 = vmatpush1.xpose.msra.mxu0 0.0
        %4391 = vmatprep.subr.mxu0 0.0
        %4392 = vmatpush1.xpose.msra.mxu0 0.0
        %4393 = vmatprep.subr.mxu0 0.0
        %4394 = vmatpush1.xpose.msra.mxu0 0.0
        %4395 = vmatprep.subr.mxu0 0.0
        %4396 = vmatpush1.xpose.msra.mxu0 0.0
        %4397 = vmatprep.subr.mxu0 0.0
        %4398 = vmatpush1.xpose.msra.mxu0 0.0
        %4399 = vmatprep.subr.mxu0 0.0
        %4400 = vmatpush1.xpose.msra.mxu0 0.0
        %4401 = vmatprep.subr.mxu0 0.0
        %4402 = vmatpush1.xpose.msra.mxu0 0.0
        %4403 = vmatprep.subr.mxu0 0.0
        %4404 = vmatpush1.xpose.msra.mxu0 0.0
        %4405 = vmatprep.subr.mxu0 0.0
        %4406 = vmatpush1.xpose.msra.mxu0 0.0
        %4407 = vmatprep.subr.mxu0 0.0
        %4408 = vmatpush1.xpose.msra.mxu0 0.0
        %4409 = vmatprep.subr.mxu0 0.0
        %4410 = vmatpush1.xpose.msra.mxu0 0.0
        %4411 = vmatprep.subr.mxu0 0.0
        %4412 = vmatpush1.xpose.msra.mxu0 0.0
        %4413 = vmatprep.subr.mxu0 0.0
        %4414 = vmatpush1.xpose.msra.mxu0 0.0
        %4415 = vmatprep.subr.mxu0 0.0
        %4416 = vmatpush1.xpose.msra.mxu0 0.0
        %4417 = vmatprep.subr.mxu0 0.0
        %4418 = vmatpush1.xpose.msra.mxu0 0.0
        %4419 = vmatprep.subr.mxu0 0.0
        %4420 = vmatpush1.xpose.msra.mxu0 0.0
        %4421 = vmatprep.subr.mxu0 0.0
        %4422 = vmatpush1.xpose.msra.mxu0 0.0
        %4423 = vmatprep.subr.mxu0 0.0
        %4424 = vmatpush1.xpose.msra.mxu0 0.0
        %4425 = vmatprep.subr.mxu0 0.0
        %4426 = vmatpush1.xpose.msra.mxu0 0.0
        %4427 = vmatprep.subr.mxu0 0.0
        %4428 = vmatpush1.xpose.msra.mxu0 0.0
        %4429 = vmatprep.mubr.f32.mxu0 0.0
        %4430 = vmatmul.mubr.f32.gmra.mrb[0].mxu0 %v4361
        %v4431 = vpop.f32.mrb[0].mxu0
        %v4432 = vadd.f32 0.0, %v4431
        %v4433 = vpop.f32.mrb[0].mxu0
        %4434 = vdwg.mxu0
        %4435 = vrot.lane.b32.xlu0 %v3366, 104
        %v4436 = vpop.permute.xlu0 %4435
        %4437 = vrot.lane.b32.xlu0 %v3366, 72
        %v4438 = vpop.permute.xlu0 %4437
        %v4439 = vsel %vm1235, %v4436, 0
        %v4441 = vsel %vm1235, %v4438, 0
        %4443 = vmatprep.subr.mxu0 0.0
        %4444 = vmatpush1.xpose.msra.mxu0 %v4441
        %4445 = vmatprep.subr.mxu0 0.0
        %4446 = vmatpush1.xpose.msra.mxu0 0.0
        %4447 = vmatprep.subr.mxu0 0.0
        %4448 = vmatpush1.xpose.msra.mxu0 0.0
        %4449 = vmatprep.subr.mxu0 0.0
        %4450 = vmatpush1.xpose.msra.mxu0 0.0
        %4451 = vmatprep.subr.mxu0 0.0
        %4452 = vmatpush1.xpose.msra.mxu0 0.0
        %4453 = vmatprep.subr.mxu0 0.0
        %4454 = vmatpush1.xpose.msra.mxu0 0.0
        %4455 = vmatprep.subr.mxu0 0.0
        %4456 = vmatpush1.xpose.msra.mxu0 0.0
        %4457 = vmatprep.subr.mxu0 0.0
        %4458 = vmatpush1.xpose.msra.mxu0 0.0
        %4459 = vmatprep.subr.mxu0 0.0
        %4460 = vmatpush1.xpose.msra.mxu0 0.0
        %4461 = vmatprep.subr.mxu0 0.0
        %4462 = vmatpush1.xpose.msra.mxu0 0.0
        %4463 = vmatprep.subr.mxu0 0.0
        %4464 = vmatpush1.xpose.msra.mxu0 0.0
        %4465 = vmatprep.subr.mxu0 0.0
        %4466 = vmatpush1.xpose.msra.mxu0 0.0
        %4467 = vmatprep.subr.mxu0 0.0
        %4468 = vmatpush1.xpose.msra.mxu0 0.0
        %4469 = vmatprep.subr.mxu0 0.0
        %4470 = vmatpush1.xpose.msra.mxu0 0.0
        %4471 = vmatprep.subr.mxu0 0.0
        %4472 = vmatpush1.xpose.msra.mxu0 0.0
        %4473 = vmatprep.subr.mxu0 0.0
        %4474 = vmatpush1.xpose.msra.mxu0 0.0
        %4475 = vmatprep.subr.mxu0 0.0
        %4476 = vmatpush1.xpose.msra.mxu0 0.0
        %4477 = vmatprep.subr.mxu0 0.0
        %4478 = vmatpush1.xpose.msra.mxu0 0.0
        %4479 = vmatprep.subr.mxu0 0.0
        %4480 = vmatpush1.xpose.msra.mxu0 0.0
        %4481 = vmatprep.subr.mxu0 0.0
        %4482 = vmatpush1.xpose.msra.mxu0 0.0
        %4483 = vmatprep.subr.mxu0 0.0
        %4484 = vmatpush1.xpose.msra.mxu0 0.0
        %4485 = vmatprep.subr.mxu0 0.0
        %4486 = vmatpush1.xpose.msra.mxu0 0.0
        %4487 = vmatprep.subr.mxu0 0.0
        %4488 = vmatpush1.xpose.msra.mxu0 0.0
        %4489 = vmatprep.subr.mxu0 0.0
        %4490 = vmatpush1.xpose.msra.mxu0 0.0
        %4491 = vmatprep.subr.mxu0 0.0
        %4492 = vmatpush1.xpose.msra.mxu0 0.0
        %4493 = vmatprep.subr.mxu0 0.0
        %4494 = vmatpush1.xpose.msra.mxu0 0.0
        %4495 = vmatprep.subr.mxu0 0.0
        %4496 = vmatpush1.xpose.msra.mxu0 0.0
        %4497 = vmatprep.subr.mxu0 0.0
        %4498 = vmatpush1.xpose.msra.mxu0 0.0
        %4499 = vmatprep.subr.mxu0 0.0
        %4500 = vmatpush1.xpose.msra.mxu0 0.0
        %4501 = vmatprep.subr.mxu0 0.0
        %4502 = vmatpush1.xpose.msra.mxu0 0.0
        %4503 = vmatprep.subr.mxu0 0.0
        %4504 = vmatpush1.xpose.msra.mxu0 0.0
        %4505 = vmatprep.subr.mxu0 0.0
        %4506 = vmatpush1.xpose.msra.mxu0 0.0
        %4507 = vmatprep.mubr.f32.mxu0 0.0
        %4508 = vmatmul.mubr.f32.gmra.mrb[0].mxu0 %v4439
        %v4509 = vpop.f32.mrb[0].mxu0
        %v4510 = vadd.f32 0.0, %v4509
        %v4511 = vpop.f32.mrb[0].mxu0
        %4512 = vdwg.mxu0
        %v4513 = vsel %vm1235, %v4432, -inf
        %4514 = vmax.xlane.f32.xlu0 %v4513
        %v4515 = vpop.xlane.xlu0 %4514
        %v4516 = vsel %vm1235, %v4510, -inf
        %4517 = vmax.xlane.f32.xlu0 %v4516
        %v4518 = vpop.xlane.xlu0 %4517
        %v4519 = vsub.f32 %v4432, %v4515
        %v4520 = vsub.f32 %v4510, %v4518
        %v4521 = vmul.f32 %v4519, 1.442695
        %v4522 = vpow.pop %v4521
        %v4523 = vmul.f32 %v4520, 1.442695
        %v4524 = vpow.pop %v4523
        %v4525 = vsel %vm1235, %v4522, 0.0
        %4526 = vadd.xlane.f32.xlu0 %v4525
        %v4527 = vpop.xlane.xlu0 %4526
        %v4528 = vsel %vm1235, %v4524, 0.0
        %4529 = vadd.xlane.f32.xlu0 %v4528
        %v4530 = vpop.xlane.xlu0 %4529
        %v4531 = vrcp.pop %v4527
        %v4532 = vrcp.pop %v4530
        %v4533 = vmul.f32 %v4522, %v4531
        %v4534 = vmul.f32 %v4524, %v4532
        %4535 = vrot.lane.b32.xlu0 %v3361, 40
        %v4536 = vpop.permute.xlu0 %4535
        %v4539 = vsel %vm1235, %v4533, 0
        %4541 = vmatprep.subr.mxu0 0.0
        %4542 = vmatpush1.msra.mxu0 %v4536
        %4543 = vmatprep.subr.mxu0 0.0
        %4544 = vmatpush1.msra.mxu0 0.0
        %4545 = vmatprep.subr.mxu0 0.0
        %4546 = vmatpush1.msra.mxu0 0.0
        %4547 = vmatprep.subr.mxu0 0.0
        %4548 = vmatpush1.msra.mxu0 0.0
        %4549 = vmatprep.subr.mxu0 0.0
        %4550 = vmatpush1.msra.mxu0 0.0
        %4551 = vmatprep.subr.mxu0 0.0
        %4552 = vmatpush1.msra.mxu0 0.0
        %4553 = vmatprep.subr.mxu0 0.0
        %4554 = vmatpush1.msra.mxu0 0.0
        %4555 = vmatprep.subr.mxu0 0.0
        %4556 = vmatpush1.msra.mxu0 0.0
        %4557 = vmatprep.subr.mxu0 0.0
        %4558 = vmatpush1.msra.mxu0 0.0
        %4559 = vmatprep.subr.mxu0 0.0
        %4560 = vmatpush1.msra.mxu0 0.0
        %4561 = vmatprep.subr.mxu0 0.0
        %4562 = vmatpush1.msra.mxu0 0.0
        %4563 = vmatprep.subr.mxu0 0.0
        %4564 = vmatpush1.msra.mxu0 0.0
        %4565 = vmatprep.subr.mxu0 0.0
        %4566 = vmatpush1.msra.mxu0 0.0
        %4567 = vmatprep.subr.mxu0 0.0
        %4568 = vmatpush1.msra.mxu0 0.0
        %4569 = vmatprep.subr.mxu0 0.0
        %4570 = vmatpush1.msra.mxu0 0.0
        %4571 = vmatprep.subr.mxu0 0.0
        %4572 = vmatpush1.msra.mxu0 0.0
        %4573 = vmatprep.subr.mxu0 0.0
        %4574 = vmatpush1.msra.mxu0 0.0
        %4575 = vmatprep.subr.mxu0 0.0
        %4576 = vmatpush1.msra.mxu0 0.0
        %4577 = vmatprep.subr.mxu0 0.0
        %4578 = vmatpush1.msra.mxu0 0.0
        %4579 = vmatprep.subr.mxu0 0.0
        %4580 = vmatpush1.msra.mxu0 0.0
        %4581 = vmatprep.subr.mxu0 0.0
        %4582 = vmatpush1.msra.mxu0 0.0
        %4583 = vmatprep.subr.mxu0 0.0
        %4584 = vmatpush1.msra.mxu0 0.0
        %4585 = vmatprep.subr.mxu0 0.0
        %4586 = vmatpush1.msra.mxu0 0.0
        %4587 = vmatprep.subr.mxu0 0.0
        %4588 = vmatpush1.msra.mxu0 0.0
        %4589 = vmatprep.subr.mxu0 0.0
        %4590 = vmatpush1.msra.mxu0 0.0
        %4591 = vmatprep.subr.mxu0 0.0
        %4592 = vmatpush1.msra.mxu0 0.0
        %4593 = vmatprep.subr.mxu0 0.0
        %4594 = vmatpush1.msra.mxu0 0.0
        %4595 = vmatprep.subr.mxu0 0.0
        %4596 = vmatpush1.msra.mxu0 0.0
        %4597 = vmatprep.subr.mxu0 0.0
        %4598 = vmatpush1.msra.mxu0 0.0
        %4599 = vmatprep.subr.mxu0 0.0
        %4600 = vmatpush1.msra.mxu0 0.0
        %4601 = vmatprep.subr.mxu0 0.0
        %4602 = vmatpush1.msra.mxu0 0.0
        %4603 = vmatprep.subr.mxu0 0.0
        %4604 = vmatpush1.msra.mxu0 0.0
        %4605 = vmatprep.mubr.f32.mxu0 0.0
        %4606 = vmatmul.mubr.f32.gmra.mrb[0].mxu0 %v4539
        %v4607 = vpop.f32.mrb[0].mxu0
        %v4608 = vadd.f32 0.0, %v4607
        %v4609 = vpop.f32.mrb[0].mxu0
        %4610 = vdwg.mxu0
        %4611 = vrot.lane.b32.xlu0 %v3366, 40
        %v4612 = vpop.permute.xlu0 %4611
        %v4615 = vsel %vm1235, %v4534, 0
        %4617 = vmatprep.subr.mxu0 0.0
        %4618 = vmatpush1.msra.mxu0 %v4612
        %4619 = vmatprep.subr.mxu0 0.0
        %4620 = vmatpush1.msra.mxu0 0.0
        %4621 = vmatprep.subr.mxu0 0.0
        %4622 = vmatpush1.msra.mxu0 0.0
        %4623 = vmatprep.subr.mxu0 0.0
        %4624 = vmatpush1.msra.mxu0 0.0
        %4625 = vmatprep.subr.mxu0 0.0
        %4626 = vmatpush1.msra.mxu0 0.0
        %4627 = vmatprep.subr.mxu0 0.0
        %4628 = vmatpush1.msra.mxu0 0.0
        %4629 = vmatprep.subr.mxu0 0.0
        %4630 = vmatpush1.msra.mxu0 0.0
        %4631 = vmatprep.subr.mxu0 0.0
        %4632 = vmatpush1.msra.mxu0 0.0
        %4633 = vmatprep.subr.mxu0 0.0
        %4634 = vmatpush1.msra.mxu0 0.0
        %4635 = vmatprep.subr.mxu0 0.0
        %4636 = vmatpush1.msra.mxu0 0.0
        %4637 = vmatprep.subr.mxu0 0.0
        %4638 = vmatpush1.msra.mxu0 0.0
        %4639 = vmatprep.subr.mxu0 0.0
        %4640 = vmatpush1.msra.mxu0 0.0
        %4641 = vmatprep.subr.mxu0 0.0
        %4642 = vmatpush1.msra.mxu0 0.0
        %4643 = vmatprep.subr.mxu0 0.0
        %4644 = vmatpush1.msra.mxu0 0.0
        %4645 = vmatprep.subr.mxu0 0.0
        %4646 = vmatpush1.msra.mxu0 0.0
        %4647 = vmatprep.subr.mxu0 0.0
        %4648 = vmatpush1.msra.mxu0 0.0
        %4649 = vmatprep.subr.mxu0 0.0
        %4650 = vmatpush1.msra.mxu0 0.0
        %4651 = vmatprep.subr.mxu0 0.0
        %4652 = vmatpush1.msra.mxu0 0.0
        %4653 = vmatprep.subr.mxu0 0.0
        %4654 = vmatpush1.msra.mxu0 0.0
        %4655 = vmatprep.subr.mxu0 0.0
        %4656 = vmatpush1.msra.mxu0 0.0
        %4657 = vmatprep.subr.mxu0 0.0
        %4658 = vmatpush1.msra.mxu0 0.0
        %4659 = vmatprep.subr.mxu0 0.0
        %4660 = vmatpush1.msra.mxu0 0.0
        %4661 = vmatprep.subr.mxu0 0.0
        %4662 = vmatpush1.msra.mxu0 0.0
        %4663 = vmatprep.subr.mxu0 0.0
        %4664 = vmatpush1.msra.mxu0 0.0
        %4665 = vmatprep.subr.mxu0 0.0
        %4666 = vmatpush1.msra.mxu0 0.0
        %4667 = vmatprep.subr.mxu0 0.0
        %4668 = vmatpush1.msra.mxu0 0.0
        %4669 = vmatprep.subr.mxu0 0.0
        %4670 = vmatpush1.msra.mxu0 0.0
        %4671 = vmatprep.subr.mxu0 0.0
        %4672 = vmatpush1.msra.mxu0 0.0
        %4673 = vmatprep.subr.mxu0 0.0
        %4674 = vmatpush1.msra.mxu0 0.0
        %4675 = vmatprep.subr.mxu0 0.0
        %4676 = vmatpush1.msra.mxu0 0.0
        %4677 = vmatprep.subr.mxu0 0.0
        %4678 = vmatpush1.msra.mxu0 0.0
        %4679 = vmatprep.subr.mxu0 0.0
        %4680 = vmatpush1.msra.mxu0 0.0
        %4681 = vmatprep.mubr.f32.mxu0 0.0
        %4682 = vmatmul.mubr.f32.gmra.mrb[0].mxu0 %v4615
        %v4683 = vpop.f32.mrb[0].mxu0
        %v4684 = vadd.f32 0.0, %v4683
        %v4685 = vpop.f32.mrb[0].mxu0
        %4686 = vdwg.mxu0
        %4689 = vrot.lane.b32.xlu0 %v3948, 8
        %v4690 = vpop.permute.xlu0 %4689
        %4691 = vrot.lane.b32.xlu0 %v4024, 8
        %v4692 = vpop.permute.xlu0 %4691
        %4697 = vrot.lane.b32.xlu0 %v4278, 16
        %v4698 = vpop.permute.xlu0 %4697
        %4699 = vrot.lane.b32.xlu0 %v4354, 16
        %v4700 = vpop.permute.xlu0 %4699
        %4705 = vrot.lane.b32.xlu0 %v4608, 24
        %v4706 = vpop.permute.xlu0 %4705
        %4707 = vrot.lane.b32.xlu0 %v4684, 24
        %v4708 = vpop.permute.xlu0 %4707
        %v4711 = vsel %vm1235, %v3618, %v4690
        %v4712 = vsel %vm1235, %v3694, %v4692
        %v4713 = vsel %vm997, %v4711, %v4698
        %v4714 = vsel %vm997, %v4712, %v4700
        %v4715 = vsel %vm2882, %v4713, %v4706
        %v4716 = vsel %vm2882, %v4714, %v4708
        %v4718 = vlaneseq
        %v4719 = vshrl.u32 %v4718, 7
        %v4720 = vsub.s32 0, %v4719
        %v4721 = vrot.slane %v3263, %v4720
        %v4724 = vsel %vm1131, %v4715, 0
        %v4727 = vsel %vm1131, %v4716, 0
        %4729 = vmatprep.subr.mxu0 0.0
        %4730 = vmatpush1.msra.mxu0 %v3259
        %4731 = vmatprep.subr.mxu0 0.0
        %4732 = vmatpush1.msra.mxu0 %v3260
        %4733 = vmatprep.subr.mxu0 0.0
        %4734 = vmatpush1.msra.mxu0 %v3261
        %4735 = vmatprep.subr.mxu0 0.0
        %4736 = vmatpush1.msra.mxu0 %v3262
        %4737 = vmatprep.subr.mxu0 0.0
        %4738 = vmatpush1.msra.mxu0 0.0
        %4739 = vmatprep.subr.mxu0 0.0
        %4740 = vmatpush1.msra.mxu0 0.0
        %4741 = vmatprep.subr.mxu0 0.0
        %4742 = vmatpush1.msra.mxu0 0.0
        %4743 = vmatprep.subr.mxu0 0.0
        %4744 = vmatpush1.msra.mxu0 0.0
        %4745 = vmatprep.subr.mxu0 0.0
        %4746 = vmatpush1.msra.mxu0 0.0
        %4747 = vmatprep.subr.mxu0 0.0
        %4748 = vmatpush1.msra.mxu0 0.0
        %4749 = vmatprep.subr.mxu0 0.0
        %4750 = vmatpush1.msra.mxu0 0.0
        %4751 = vmatprep.subr.mxu0 0.0
        %4752 = vmatpush1.msra.mxu0 0.0
        %4753 = vmatprep.subr.mxu0 0.0
        %4754 = vmatpush1.msra.mxu0 0.0
        %4755 = vmatprep.subr.mxu0 0.0
        %4756 = vmatpush1.msra.mxu0 0.0
        %4757 = vmatprep.subr.mxu0 0.0
        %4758 = vmatpush1.msra.mxu0 0.0
        %4759 = vmatprep.subr.mxu0 0.0
        %4760 = vmatpush1.msra.mxu0 0.0
        %4761 = vmatprep.subr.mxu0 0.0
        %4762 = vmatpush1.msra.mxu0 0.0
        %4763 = vmatprep.subr.mxu0 0.0
        %4764 = vmatpush1.msra.mxu0 0.0
        %4765 = vmatprep.subr.mxu0 0.0
        %4766 = vmatpush1.msra.mxu0 0.0
        %4767 = vmatprep.subr.mxu0 0.0
        %4768 = vmatpush1.msra.mxu0 0.0
        %4769 = vmatprep.subr.mxu0 0.0
        %4770 = vmatpush1.msra.mxu0 0.0
        %4771 = vmatprep.subr.mxu0 0.0
        %4772 = vmatpush1.msra.mxu0 0.0
        %4773 = vmatprep.subr.mxu0 0.0
        %4774 = vmatpush1.msra.mxu0 0.0
        %4775 = vmatprep.subr.mxu0 0.0
        %4776 = vmatpush1.msra.mxu0 0.0
        %4777 = vmatprep.subr.mxu0 0.0
        %4778 = vmatpush1.msra.mxu0 0.0
        %4779 = vmatprep.subr.mxu0 0.0
        %4780 = vmatpush1.msra.mxu0 0.0
        %4781 = vmatprep.subr.mxu0 0.0
        %4782 = vmatpush1.msra.mxu0 0.0
        %4783 = vmatprep.subr.mxu0 0.0
        %4784 = vmatpush1.msra.mxu0 0.0
        %4785 = vmatprep.subr.mxu0 0.0
        %4786 = vmatpush1.msra.mxu0 0.0
        %4787 = vmatprep.subr.mxu0 0.0
        %4788 = vmatpush1.msra.mxu0 0.0
        %4789 = vmatprep.subr.mxu0 0.0
        %4790 = vmatpush1.msra.mxu0 0.0
        %4791 = vmatprep.subr.mxu0 0.0
        %4792 = vmatpush1.msra.mxu0 0.0
        %4793 = vmatprep.mubr.f32.mxu0 0.0
        %4794 = vmatmul.mubr.f32.gmra.mrb[0].mxu0 %v4724
        %v4795 = vpop.f32.mrb[0].mxu0
        %v4796 = vadd.f32 %v4721, %v4795
        %v4797 = vpop.f32.mrb[0].mxu0
        %4798 = vmatprep.mubr.f32.mxu0 0.0
        %4799 = vmatmul.mubr.f32.gmra.mrb[0].mxu0 %v4727
        %v4800 = vpop.f32.mrb[0].mxu0
        %v4801 = vadd.f32 %v4721, %v4800
        %v4802 = vpop.f32.mrb[0].mxu0
        %4803 = vdwg.mxu0
        %v4804 = vadd.f32 %v3280, %v4796
        %v4805 = vadd.f32 %v3281, %v4801
        %4806 = vst.msk [vmem:[#allocation2] sm:$0xff] %vm1131, %v4804
        %4807 = vst.msk [vmem:[#allocation2 + $0x10] sm:$0xff] %vm1131, %v4805
        %v4808 = vld [vmem:[%s2998] ss:$2 sm:$0xf]
        %v4809 = vld [vmem:[%s3000] ss:$2 sm:$0xf]
        %vm4810 = vcmask 257024
        %v4811 = vsel %vm4810, %v4808, 0.0
        %4812 = vadd.xlane.f32.xlu0 %v4811
        %v4813 = vpop.xlane.xlu0 %4812
        %v4814 = vsel %vm4810, %v4809, 0.0
        %4815 = vadd.xlane.f32.xlu0 %v4814
        %v4816 = vpop.xlane.xlu0 %4815
        %v4817 = vmul.f32 %v4813, %v3008
        %v4818 = vmul.f32 %v4816, %v3008
        %v4819 = vsub.f32 %v4808, %v4817
        %v4820 = vsub.f32 %v4809, %v4818
        %v4821 = vmul.f32 %v4819, %v4819
        %v4822 = vmul.f32 %v4820, %v4820
        %v4823 = vsel %vm4810, %v4821, 0.0
        %4824 = vadd.xlane.f32.xlu0 %v4823
        %v4825 = vpop.xlane.xlu0 %4824
        %v4826 = vsel %vm4810, %v4822, 0.0
        %4827 = vadd.xlane.f32.xlu0 %v4826
        %v4828 = vpop.xlane.xlu0 %4827
        %v4829 = vmul.f32 %v4825, %v3008
        %v4830 = vmul.f32 %v4828, %v3008
        %v4831 = vadd.f32 %v4829, 1e-05
        %v4832 = vadd.f32 %v4830, 1e-05
        %v4833 = vrsqrt.pop %v4831
        %v4834 = vrsqrt.pop %v4832
        %v4835 = vmul.f32 %v4819, %v4833
        %v4836 = vmul.f32 %v4820, %v4834
        %v4838 = vlaneseq
        %v4839 = vshrl.u32 %v4838, 7
        %v4840 = vsub.s32 0, %v4839
        %v4841 = vrot.slane %v3264, %v4840
        %v4843 = vmul.f32 %v4835, %v4841
        %v4844 = vmul.f32 %v4836, %v4841
        %v4846 = vlaneseq
        %v4847 = vshrl.u32 %v4846, 7
        %v4848 = vsub.s32 0, %v4847
        %v4849 = vrot.slane %v3265, %v4848
        %v4851 = vadd.f32 %v4843, %v4849
        %v4852 = vadd.f32 %v4844, %v4849
        %v4855 = vcombine.low %v4851, %v4852
        %v4856 = vsel %vm1131, %v4855, 0
        %4858 = vmatprep.subr.mxu0 0.0
        %4859 = vmatpush1.msra.mxu0 %v3266
        %4860 = vmatprep.subr.mxu0 0.0
        %4861 = vmatpush1.msra.mxu0 %v3267
        %4862 = vmatprep.subr.mxu0 0.0
        %4863 = vmatpush1.msra.mxu0 %v3268
        %4864 = vmatprep.subr.mxu0 0.0
        %4865 = vmatpush1.msra.mxu0 %v3269
        %4866 = vmatprep.subr.mxu0 0.0
        %4867 = vmatpush1.msra.mxu0 0.0
        %4868 = vmatprep.subr.mxu0 0.0
        %4869 = vmatpush1.msra.mxu0 0.0
        %4870 = vmatprep.subr.mxu0 0.0
        %4871 = vmatpush1.msra.mxu0 0.0
        %4872 = vmatprep.subr.mxu0 0.0
        %4873 = vmatpush1.msra.mxu0 0.0
        %4874 = vmatprep.subr.mxu0 0.0
        %4875 = vmatpush1.msra.mxu0 0.0
        %4876 = vmatprep.subr.mxu0 0.0
        %4877 = vmatpush1.msra.mxu0 0.0
        %4878 = vmatprep.subr.mxu0 0.0
        %4879 = vmatpush1.msra.mxu0 0.0
        %4880 = vmatprep.subr.mxu0 0.0
        %4881 = vmatpush1.msra.mxu0 0.0
        %4882 = vmatprep.subr.mxu0 0.0
        %4883 = vmatpush1.msra.mxu0 0.0
        %4884 = vmatprep.subr.mxu0 0.0
        %4885 = vmatpush1.msra.mxu0 0.0
        %4886 = vmatprep.subr.mxu0 0.0
        %4887 = vmatpush1.msra.mxu0 0.0
        %4888 = vmatprep.subr.mxu0 0.0
        %4889 = vmatpush1.msra.mxu0 0.0
        %4890 = vmatprep.subr.mxu0 0.0
        %4891 = vmatpush1.msra.mxu0 0.0
        %4892 = vmatprep.subr.mxu0 0.0
        %4893 = vmatpush1.msra.mxu0 0.0
        %4894 = vmatprep.subr.mxu0 0.0
        %4895 = vmatpush1.msra.mxu0 0.0
        %4896 = vmatprep.subr.mxu0 0.0
        %4897 = vmatpush1.msra.mxu0 0.0
        %4898 = vmatprep.subr.mxu0 0.0
        %4899 = vmatpush1.msra.mxu0 0.0
        %4900 = vmatprep.subr.mxu0 0.0
        %4901 = vmatpush1.msra.mxu0 0.0
        %4902 = vmatprep.subr.mxu0 0.0
        %4903 = vmatpush1.msra.mxu0 0.0
        %4904 = vmatprep.subr.mxu0 0.0
        %4905 = vmatpush1.msra.mxu0 0.0
        %4906 = vmatprep.subr.mxu0 0.0
        %4907 = vmatpush1.msra.mxu0 0.0
        %4908 = vmatprep.subr.mxu0 0.0
        %4909 = vmatpush1.msra.mxu0 0.0
        %4910 = vmatprep.subr.mxu0 0.0
        %4911 = vmatpush1.msra.mxu0 0.0
        %4912 = vmatprep.subr.mxu0 0.0
        %4913 = vmatpush1.msra.mxu0 0.0
        %4914 = vmatprep.subr.mxu0 0.0
        %4915 = vmatpush1.msra.mxu0 0.0
        %4916 = vmatprep.subr.mxu0 0.0
        %4917 = vmatpush1.msra.mxu0 0.0
        %4918 = vmatprep.subr.mxu0 0.0
        %4919 = vmatpush1.msra.mxu0 0.0
        %4920 = vmatprep.subr.mxu0 0.0
        %4921 = vmatpush1.msra.mxu0 0.0
        %4922 = vmatprep.mubr.f32.mxu0 0.0
        %4923 = vmatmul.mubr.f32.gmra.mrb[0].mxu0 %v4856
        %v4924 = vpop.f32.mrb[0].mxu0
        %v4925 = vadd.f32 0.0, %v4924
        %v4926 = vpop.f32.mrb[0].mxu0
        %4927 = vdwg.mxu0
        %v4928 = vmax.f32 %v4925, 0.0
        %v4930 = vsel %vm3128, %v4928, 0
        %4932 = vmatprep.subr.mxu0 0.0
        %4933 = vmatpush1.msra.mxu0 %v3270
        %4934 = vmatprep.subr.mxu0 0.0
        %4935 = vmatpush1.msra.mxu0 %v3271
        %4936 = vmatprep.subr.mxu0 0.0
        %4937 = vmatpush1.msra.mxu0 %v3272
        %4938 = vmatprep.subr.mxu0 0.0
        %4939 = vmatpush1.msra.mxu0 %v3273
        %4940 = vmatprep.subr.mxu0 0.0
        %4941 = vmatpush1.msra.mxu0 %v3274
        %4942 = vmatprep.subr.mxu0 0.0
        %4943 = vmatpush1.msra.mxu0 %v3275
        %4944 = vmatprep.subr.mxu0 0.0
        %4945 = vmatpush1.msra.mxu0 %v3276
        %4946 = vmatprep.subr.mxu0 0.0
        %4947 = vmatpush1.msra.mxu0 %v3277
        %4948 = vmatprep.subr.mxu0 0.0
        %4949 = vmatpush1.msra.mxu0 0.0
        %4950 = vmatprep.subr.mxu0 0.0
        %4951 = vmatpush1.msra.mxu0 0.0
        %4952 = vmatprep.subr.mxu0 0.0
        %4953 = vmatpush1.msra.mxu0 0.0
        %4954 = vmatprep.subr.mxu0 0.0
        %4955 = vmatpush1.msra.mxu0 0.0
        %4956 = vmatprep.subr.mxu0 0.0
        %4957 = vmatpush1.msra.mxu0 0.0
        %4958 = vmatprep.subr.mxu0 0.0
        %4959 = vmatpush1.msra.mxu0 0.0
        %4960 = vmatprep.subr.mxu0 0.0
        %4961 = vmatpush1.msra.mxu0 0.0
        %4962 = vmatprep.subr.mxu0 0.0
        %4963 = vmatpush1.msra.mxu0 0.0
        %4964 = vmatprep.subr.mxu0 0.0
        %4965 = vmatpush1.msra.mxu0 0.0
        %4966 = vmatprep.subr.mxu0 0.0
        %4967 = vmatpush1.msra.mxu0 0.0
        %4968 = vmatprep.subr.mxu0 0.0
        %4969 = vmatpush1.msra.mxu0 0.0
        %4970 = vmatprep.subr.mxu0 0.0
        %4971 = vmatpush1.msra.mxu0 0.0
        %4972 = vmatprep.subr.mxu0 0.0
        %4973 = vmatpush1.msra.mxu0 0.0
        %4974 = vmatprep.subr.mxu0 0.0
        %4975 = vmatpush1.msra.mxu0 0.0
        %4976 = vmatprep.subr.mxu0 0.0
        %4977 = vmatpush1.msra.mxu0 0.0
        %4978 = vmatprep.subr.mxu0 0.0
        %4979 = vmatpush1.msra.mxu0 0.0
        %4980 = vmatprep.subr.mxu0 0.0
        %4981 = vmatpush1.msra.mxu0 0.0
        %4982 = vmatprep.subr.mxu0 0.0
        %4983 = vmatpush1.msra.mxu0 0.0
        %4984 = vmatprep.subr.mxu0 0.0
        %4985 = vmatpush1.msra.mxu0 0.0
        %4986 = vmatprep.subr.mxu0 0.0
        %4987 = vmatpush1.msra.mxu0 0.0
        %4988 = vmatprep.subr.mxu0 0.0
        %4989 = vmatpush1.msra.mxu0 0.0
        %4990 = vmatprep.subr.mxu0 0.0
        %4991 = vmatpush1.msra.mxu0 0.0
        %4992 = vmatprep.subr.mxu0 0.0
        %4993 = vmatpush1.msra.mxu0 0.0
        %4994 = vmatprep.subr.mxu0 0.0
        %4995 = vmatpush1.msra.mxu0 0.0
        %4996 = vmatprep.mubr.f32.mxu0 0.0
        %4997 = vmatmul.mubr.f32.gmra.mrb[0].mxu0 %v4930
        %v4998 = vpop.f32.mrb[0].mxu0
        %v4999 = vadd.f32 0.0, %v4998
        %v5000 = vpop.f32.mrb[0].mxu0
        %5001 = vdwg.mxu0
        %v5003 = vcombine.high %v4999, %v4999
        %v5005 = vadd.f32 %v4851, %v4999
        %v5006 = vadd.f32 %v4852, %v5003
        %v5007 = vsel %vm4810, %v5005, 0.0
        %5008 = vadd.xlane.f32.xlu0 %v5007
        %v5009 = vpop.xlane.xlu0 %5008
        %v5010 = vsel %vm4810, %v5006, 0.0
        %5011 = vadd.xlane.f32.xlu0 %v5010
        %v5012 = vpop.xlane.xlu0 %5011
        %v5013 = vmul.f32 %v5009, %v3008
        %v5014 = vmul.f32 %v5012, %v3008
        %v5015 = vsub.f32 %v5005, %v5013
        %v5016 = vsub.f32 %v5006, %v5014
        %v5017 = vmul.f32 %v5015, %v5015
        %v5018 = vmul.f32 %v5016, %v5016
        %v5019 = vsel %vm4810, %v5017, 0.0
        %5020 = vadd.xlane.f32.xlu0 %v5019
        %v5021 = vpop.xlane.xlu0 %5020
        %v5022 = vsel %vm4810, %v5018, 0.0
        %5023 = vadd.xlane.f32.xlu0 %v5022
        %v5024 = vpop.xlane.xlu0 %5023
        %v5025 = vmul.f32 %v5021, %v3008
        %v5026 = vmul.f32 %v5024, %v3008
        %v5027 = vadd.f32 %v5025, 1e-05
        %v5028 = vadd.f32 %v5026, 1e-05
        %v5029 = vrsqrt.pop %v5027
        %v5030 = vrsqrt.pop %v5028
        %v5031 = vmul.f32 %v5015, %v5029
        %v5032 = vmul.f32 %v5016, %v5030
        %v5034 = vlaneseq
        %v5035 = vshrl.u32 %v5034, 7
        %v5036 = vsub.s32 0, %v5035
        %v5037 = vrot.slane %v3278, %v5036
        %v5039 = vmul.f32 %v5031, %v5037
        %v5040 = vmul.f32 %v5032, %v5037
        %v5042 = vlaneseq
        %v5043 = vshrl.u32 %v5042, 7
        %v5044 = vsub.s32 0, %v5043
        %v5045 = vrot.slane %v3279, %v5044
        %v5047 = vadd.f32 %v5039, %v5045
        %v5048 = vadd.f32 %v5040, %v5045
        %v5049 = vld [vmem:[#allocation24] sm:$0xff]
        %v5050 = vld [vmem:[#allocation24 + $0x8] sm:$0xff]
        %v5051 = vld [vmem:[#allocation24 + $0x10] sm:$0xff]
        %v5052 = vld [vmem:[#allocation24 + $0x18] sm:$0xff]
        %v5053 = vld [vmem:[%s25] sm:$0x1]
        %v5055 = vlaneseq
        %v5056 = vshrl.u32 %v5055, 7
        %v5057 = vsub.s32 0, %v5056
        %v5058 = vrot.slane %v5053, %v5057
        %v5062 = vcombine.low %v5047, %v5048
        %v5063 = vsel %vm1131, %v5062, 0
        %5065 = vmatprep.subr.mxu0 0.0
        %5066 = vmatpush1.msra.mxu0 %v5049
        %5067 = vmatprep.subr.mxu0 0.0
        %5068 = vmatpush1.msra.mxu0 %v5050
        %5069 = vmatprep.subr.mxu0 0.0
        %5070 = vmatpush1.msra.mxu0 %v5051
        %5071 = vmatprep.subr.mxu0 0.0
        %5072 = vmatpush1.msra.mxu0 %v5052
        %5073 = vmatprep.subr.mxu0 0.0
        %5074 = vmatpush1.msra.mxu0 0.0
        %5075 = vmatprep.subr.mxu0 0.0
        %5076 = vmatpush1.msra.mxu0 0.0
        %5077 = vmatprep.subr.mxu0 0.0
        %5078 = vmatpush1.msra.mxu0 0.0
        %5079 = vmatprep.subr.mxu0 0.0
        %5080 = vmatpush1.msra.mxu0 0.0
        %5081 = vmatprep.subr.mxu0 0.0
        %5082 = vmatpush1.msra.mxu0 0.0
        %5083 = vmatprep.subr.mxu0 0.0
        %5084 = vmatpush1.msra.mxu0 0.0
        %5085 = vmatprep.subr.mxu0 0.0
        %5086 = vmatpush1.msra.mxu0 0.0
        %5087 = vmatprep.subr.mxu0 0.0
        %5088 = vmatpush1.msra.mxu0 0.0
        %5089 = vmatprep.subr.mxu0 0.0
        %5090 = vmatpush1.msra.mxu0 0.0
        %5091 = vmatprep.subr.mxu0 0.0
        %5092 = vmatpush1.msra.mxu0 0.0
        %5093 = vmatprep.subr.mxu0 0.0
        %5094 = vmatpush1.msra.mxu0 0.0
        %5095 = vmatprep.subr.mxu0 0.0
        %5096 = vmatpush1.msra.mxu0 0.0
        %5097 = vmatprep.subr.mxu0 0.0
        %5098 = vmatpush1.msra.mxu0 0.0
        %5099 = vmatprep.subr.mxu0 0.0
        %5100 = vmatpush1.msra.mxu0 0.0
        %5101 = vmatprep.subr.mxu0 0.0
        %5102 = vmatpush1.msra.mxu0 0.0
        %5103 = vmatprep.subr.mxu0 0.0
        %5104 = vmatpush1.msra.mxu0 0.0
        %5105 = vmatprep.subr.mxu0 0.0
        %5106 = vmatpush1.msra.mxu0 0.0
        %5107 = vmatprep.subr.mxu0 0.0
        %5108 = vmatpush1.msra.mxu0 0.0
        %5109 = vmatprep.subr.mxu0 0.0
        %5110 = vmatpush1.msra.mxu0 0.0
        %5111 = vmatprep.subr.mxu0 0.0
        %5112 = vmatpush1.msra.mxu0 0.0
        %5113 = vmatprep.subr.mxu0 0.0
        %5114 = vmatpush1.msra.mxu0 0.0
        %5115 = vmatprep.subr.mxu0 0.0
        %5116 = vmatpush1.msra.mxu0 0.0
        %5117 = vmatprep.subr.mxu0 0.0
        %5118 = vmatpush1.msra.mxu0 0.0
        %5119 = vmatprep.subr.mxu0 0.0
        %5120 = vmatpush1.msra.mxu0 0.0
        %5121 = vmatprep.subr.mxu0 0.0
        %5122 = vmatpush1.msra.mxu0 0.0
        %5123 = vmatprep.subr.mxu0 0.0
        %5124 = vmatpush1.msra.mxu0 0.0
        %5125 = vmatprep.subr.mxu0 0.0
        %5126 = vmatpush1.msra.mxu0 0.0
        %5127 = vmatprep.subr.mxu0 0.0
        %5128 = vmatpush1.msra.mxu0 0.0
        %5129 = vmatprep.mubr.f32.mxu0 0.0
        %5130 = vmatmul.mubr.f32.gmra.mrb[0].mxu0 %v5063
        %v5131 = vpop.f32.mrb[0].mxu0
        %v5132 = vadd.f32 %v5058, %v5131
        %v5133 = vpop.f32.mrb[0].mxu0
        %5134 = vdwg.mxu0
        %v5136 = vcombine.high %v5132, %v5132
        %5138 = vst [vmem:[%s973] sm:$0xf] %v5132
        %5139 = vst [vmem:[%s973 + $0x4] sm:$0xf] %v5136
        %s5140 = sand.u32 %s607, 1
        %s5141 = scalar_lea.sflag [#allocation5], %s5140
        %s5142 = sand.u32 %s607, 1
        %s5143 = smul.addr %s5142, 8
        %s5144 = scalar_lea.vmem [#allocation26], %s5143
        // Predicated region
        $region181: #{strided_transformer_encoder.1} parent=123 // pred_check
          %p5145 = pneg %p617
        $region182: #{strided_transformer_encoder.1} parent=123 // pred_check_branch
          %5147 = sbr.rel (%p5145) target = $region184
        $region183: #{strided_transformer_encoder.1} parent=123 // pred_region
          %s5148 = smul.u32 2, %s48
          %s5150 = ssub.s32 128, 128
          %5151 = vsyncadd %s5141, %s5150
          %s5152 = smul.addr %s5148, 64
          %s5153 = scalar_lea.hbm %s26, %s5152
          %s5154 = sshll.u32 %s5144, 4
          %s5155 = int_to_ptr.vmem [resolvable:$true] %s5154
          %5160 = dma.vmem_to_hbm [thread:$0]  %s5155, 128, %s5153, %s5141, 64, 64, 4
        $region184: #{strided_transformer_encoder.1} parent=123 // pred_fallthru
          _
      $region124: #{strided_transformer_encoder.1} parent=5 // pred_fallthru
        _
      %p5161 = scmp.le.s32.totalorder 2, %s43
      // Predicated region
      $region185: #{strided_transformer_encoder.1} parent=5 // pred_check
        %p5162 = pneg %p5161
      $region186: #{strided_transformer_encoder.1} parent=5 // pred_check_branch
        %5164 = sbr.rel (%p5162) target = $region188
      $region187: #{strided_transformer_encoder.1} parent=5 // pred_region
        %s5165 = ssub.s32 %s43, 2
        // Predicated region
        $region189: #{strided_transformer_encoder.1} parent=187 // pred_check
          %p5166 = pneg %p623
        $region190: #{strided_transformer_encoder.1} parent=187 // pred_check_branch
          %5168 = sbr.rel (%p5166) target = $region192
        $region191: #{strided_transformer_encoder.1} parent=187 // pred_region
          %s5169 = sand.u32 %s608, 1
          %s5170 = scalar_lea.sflag [#allocation5], %s5169
          %s5171 = sand.u32 %s608, 1
          %s5172 = smul.addr %s5171, 8
          %s5173 = scalar_lea.vmem [#allocation26], %s5172
          %5174 = dma.done %s5170, 128
        $region192: #{strided_transformer_encoder.1} parent=187 // pred_fallthru
          _
      $region188: #{strided_transformer_encoder.1} parent=5 // pred_fallthru
        _
    $region6: #{strided_transformer_encoder.1} parent=1 // loop_footer
      %s47 = sadd.s32 1, %s43
    $region7: #{strided_transformer_encoder.1} parent=1 // loop_footer_branch
      %42 = sbr.rel target = $region3
    $region8: #{strided_transformer_encoder.1} parent=1 // loop_exit
      _
    %5175 = vsyncpa [#allocation4], 1
    %s5176 = scalar_lea.sflag [#allocation4], 1
    %5177 = vsyncpa %s5176, 1
    %5178 = vsyncpa [#allocation7], 1
    %5179 = vsyncpa [#allocation10], 1
    %5180 = vsyncpa [#allocation13], 1
    %5181 = vsyncpa [#allocation16], 1
    %5182 = vsyncpa [#allocation19], 1
    %5183 = vsyncpa [#allocation22], 1
    %5184 = vsyncpa [#allocation25], 1
    %5185 = vsyncpa [#allocation5], 1
    %s5186 = scalar_lea.sflag [#allocation5], 1
    %5187 = vsyncpa %s5186, 1

</llo_original>
